<compile_context>
chip_gen: v7x
topology: tpu7x:2x2x1
jax: 0.10.0
libtpu: 0.0.40
codegen_flags: <defaults>
</compile_context>

<pallas_src>
import jax
import jax.numpy as jnp
from jax import lax
from jax.experimental import pallas as pl
from jax.experimental.pallas import tpu as pltpu

EPS = 1e-5  # nn.BatchNorm2d default eps


def _round_up(x, m):
    return (x + m - 1) // m * m


def _pick_divisor(n, candidates):
    for c in candidates:
        if n % c == 0:
            return c
    return None


def _vmem_limit_bytes():
    cap = 64 << 20
    try:
        cap = int(getattr(pltpu.get_tpu_info(), "vmem_capacity_bytes", cap))
    except Exception:
        pass
    # 3/4 of physical VMEM, clamped: ~96 MiB on v5e/v6e (128 MiB), ~48 MiB on v7x (64 MiB).
    return int(min(max(cap * 3 // 4, 32 << 20), 112 << 20))


# ---------------------------------------------------------------------------
# Kernel 1: cv1 1x1 conv as a single-K bf16 matmul (f32 MXU accumulate) that
#           writes straight into the resident output block, plus per-M-tile
#           per-channel partial sum / sum-of-squares for BN1.
# ---------------------------------------------------------------------------
def _cv1_matmul_stats_kernel(x_ref, w_ref, y_ref, ps_ref, pq_ref):
    y = jnp.dot(x_ref[...], w_ref[...], preferred_element_type=jnp.float32)
    y_ref[...] = y
    ps_ref[...] = jnp.sum(y, axis=0, keepdims=True)[None]        # (1, 1, Coutp)
    pq_ref[...] = jnp.sum(y * y, axis=0, keepdims=True)[None]


# ---------------------------------------------------------------------------
# Kernel 2: fused BN1 affine + SiLU + 3x3 depthwise stride-2 conv (pad=1)
#           + per-(batch, row-block, channel-block) partial stats for BN2.
# Inputs are the pre-BN cv1 output in the free reshape (B, Ho, 2, Wo, 2*Coutp);
# xe/xo are the even/odd input-column phases (same HBM array, two specs),
# he/ho are the one-row halo (last odd row of the previous row block).
# ---------------------------------------------------------------------------
def _cv2_dw_kernel(xe_ref, xo_ref, he_ref, ho_ref, a_ref, b_ref, w_ref,
                   y_ref, ps_ref, pq_ref, zpad_ref):
    _, th, _, Wo, C = xe_ref.shape
    r = pl.program_id(1)
    a = a_ref[...]                      # (1, C) fused BN1 scale
    b = b_ref[...]                      # (1, C) fused BN1 shift

    # Left zero halo (input column -1).  Only column 0 is a halo that is never
    # rewritten below, so zero just that, not the whole scratch tile.
    zpad_ref[pl.ds(0, th + 1), pl.ds(0, 1), :] = jnp.zeros((th + 1, 1, C), jnp.float32)

    first = True
    for q in (0, 1):            # input row parity within a stride-2 pair
        for p in (0, 1):        # input column parity
            src = xe_ref if p == 0 else xo_ref
            x = src[0, :, q, :, :]                        # (th, Wo, C) pre-BN cv1 out
            z = x * a + b                                 # BN1 as one FMA
            z = z * jax.nn.sigmoid(z)                     # SiLU (EUP)
            zpad_ref[pl.ds(1, th), pl.ds(1, Wo), :] = z
            if q == 1:
                # Row halo for tap kh=0: last odd row of the previous row block
                # (zeros for the first block == top zero padding).
                hsrc = he_ref if p == 0 else ho_ref
                xh = hsrc[0, 0, 0, :, :]                  # (Wo, C)
                zh = xh * a + b
                zh = zh * jax.nn.sigmoid(zh)
                zh = jnp.where(r > 0, zh, jnp.zeros_like(zh))
                zpad_ref[pl.ds(0, 1), pl.ds(1, Wo), :] = zh[None]

            # Accumulate all taps of this (q, p) phase locally; y_ref is touched
            # once per phase (4 writes total instead of init + 9 RMWs).
            acc = None
            for kh in range(3):
                if (0 if kh == 1 else 1) != q:
                    continue
                for kw in range(3):
                    if (0 if kw == 1 else 1) != p:
                        continue
                    r0 = 0 if kh == 0 else 1              # kh==0 reads row ho-1 (halo)
                    c0 = 0 if kw == 0 else 1              # kw==0 reads col wo-1 (halo)
                    patch = zpad_ref[pl.ds(r0, th), pl.ds(c0, Wo), :]
                    t = patch * w_ref[kh * 3 + kw]
                    acc = t if acc is None else acc + t
            if first:
                y_ref[...] = acc[None]
                first = False
            else:
                y_ref[...] += acc[None]

    yv = y_ref[...]
    ps_ref[...] = jnp.sum(yv, axis=(0, 1, 2), keepdims=True)     # (1, 1, 1, C)
    pq_ref[...] = jnp.sum(yv * yv, axis=(0, 1, 2), keepdims=True)


# ---------------------------------------------------------------------------
# Wrapper
# ---------------------------------------------------------------------------
def scdown_forward(x_nchw, params):
    w1 = params["w1"].astype(jnp.float32)          # [Cin, Cout]  1x1 conv
    g1 = params["g1"].astype(jnp.float32)
    b1 = params["b1"].astype(jnp.float32)
    w2 = params["w2"].astype(jnp.float32)          # [3, 3, Cout] depthwise
    g2 = params["g2"].astype(jnp.float32)
    b2 = params["b2"].astype(jnp.float32)

    B, Cin, H, W = x_nchw.shape
    Cout = w1.shape[1]
    assert H % 2 == 0 and W % 2 == 0               # TODO(synk): odd H/W halo handling
    Ho, Wo = H // 2, W // 2
    Cinp = _round_up(Cin, 128)
    Coutp = _round_up(Cout, 128)
    vmem = _vmem_limit_bytes()

    # ---------------- cv1: single-K bf16 matmul + BN1 stat partials ----------------
    M = B * H * W
    # Cast to bf16 *before* the layout change so the NCHW->NHWC copy is half-width.
    x = jnp.transpose(x_nchw.astype(jnp.bfloat16), (0, 2, 3, 1))
    tm = _pick_divisor(M, (1024, 768, 512, 384, 256, 192, 128, 96, 64, 48, 32, 24, 16, 8))
    if tm is None:                                  # fallback: pad M (rare)
        tm = min(512, _round_up(M, 8))
    Mp = _round_up(M, tm)
    nm = Mp // tm

    x2d = x.reshape(M, Cin)
    if Mp != M or Cinp != Cin:
        # Zero-width for real SCDown shapes (Cin multiple of 128, M highly composite).
        x2d = jnp.pad(x2d, ((0, Mp - M), (0, Cinp - Cin)))
    w1p = jnp.pad(w1, ((0, Cinp - Cin), (0, Coutp - Cout))).astype(jnp.bfloat16)

    y1, ps1, pq1 = pl.pallas_call(
        _cv1_matmul_stats_kernel,
        out_shape=(
            jax.ShapeDtypeStruct((Mp, Coutp), jnp.float32),
            jax.ShapeDtypeStruct((nm, 1, Coutp), jnp.float32),
            jax.ShapeDtypeStruct((nm, 1, Coutp), jnp.float32),
        ),
        grid=(nm,),
        in_specs=[
            pl.BlockSpec((tm, Cinp), lambda i: (i, 0)),
            pl.BlockSpec((Cinp, Coutp), lambda i: (0, 0)),   # resident across the grid
        ],
        out_specs=(
            pl.BlockSpec((tm, Coutp), lambda i: (i, 0)),
            pl.BlockSpec((1, 1, Coutp), lambda i: (i, 0, 0)),
            pl.BlockSpec((1, 1, Coutp), lambda i: (i, 0, 0)),
        ),
        compiler_params=pltpu.CompilerParams(
            dimension_semantics=("parallel",),
            vmem_limit_bytes=vmem),
    )(x2d, w1p)

    # BN1 batch stats (global cross-tile reduction) -> fused scale/shift.
    # TODO(synk): one-pass E[x^2]-E[x]^2 (clamped); fine in f32 at these scales but less
    #             robust than a two-pass variance for extreme activation magnitudes.
    s1 = jnp.sum(ps1, axis=0)[0]
    q1 = jnp.sum(pq1, axis=0)[0]
    mean1 = s1 / M
    var1 = jnp.maximum(q1 / M - mean1 * mean1, 0.0)
    g1p = jnp.pad(g1, (0, Coutp - Cout))
    b1p = jnp.pad(b1, (0, Coutp - Cout))
    a1 = g1p * lax.rsqrt(var1 + EPS)
    c1 = b1p - mean1 * a1

    # ---------------- cv2: fused BN1+SiLU + depthwise 3x3 s2 + BN2 stats -----------
    # Free row-major reshape: (M, Coutp) -> (B, Ho, 2, Wo, 2*Coutp); the last dim is
    # [even-column channels | odd-column channels] so the stride-2 column access is
    # unit-stride channel-block selection.
    y1m = y1 if Mp == M else y1[:M]
    xr = y1m.reshape(B, Ho, 2, Wo, 2 * Coutp)
    w2p = jnp.pad(w2, ((0, 0), (0, 0), (0, Coutp - Cout))).reshape(9, 1, Coutp)

    cblk = Coutp if Coutp <= 256 else 128            # wider blocks -> longer DMA runs
    nc = Coutp // cblk
    th = _pick_divisor(Ho, (8, 7, 6, 5, 4, 3, 2, 1)) # row block: VMEM independent of map size
    nr = Ho // th

    y2, ps2, pq2 = pl.pallas_call(
        _cv2_dw_kernel,
        out_shape=(
            jax.ShapeDtypeStruct((B, Ho, Wo, Coutp), jnp.float32),
            jax.ShapeDtypeStruct((B, nr, 1, Coutp), jnp.float32),
            jax.ShapeDtypeStruct((B, nr, 1, Coutp), jnp.float32),
        ),
        grid=(B, nr, nc),
        in_specs=[
            # main row block, even / odd input columns
            pl.BlockSpec((1, th, 2, Wo, cblk), lambda b, r, c: (b, r, 0, 0, c)),
            pl.BlockSpec((1, th, 2, Wo, cblk), lambda b, r, c: (b, r, 0, 0, c + nc)),
            # one-row halo (last odd row of the previous row block), even / odd cols
            pl.BlockSpec((1, 1, 1, Wo, cblk),
                         lambda b, r, c: (b, jnp.maximum(r * th - 1, 0), 1, 0, c)),
            pl.BlockSpec((1, 1, 1, Wo, cblk),
                         lambda b, r, c: (b, jnp.maximum(r * th - 1, 0), 1, 0, c + nc)),
            pl.BlockSpec((1, cblk), lambda b, r, c: (0, c)),          # BN1 fused scale
            pl.BlockSpec((1, cblk), lambda b, r, c: (0, c)),          # BN1 fused shift
            pl.BlockSpec((9, 1, cblk), lambda b, r, c: (0, 0, c)),    # depthwise weights
        ],
        out_specs=(
            pl.BlockSpec((1, th, Wo, cblk), lambda b, r, c: (b, r, 0, c)),
            pl.BlockSpec((1, 1, 1, cblk), lambda b, r, c: (b, r, 0, c)),
            pl.BlockSpec((1, 1, 1, cblk), lambda b, r, c: (b, r, 0, c)),
        ),
        scratch_shapes=[pltpu.VMEM((th + 1, Wo + 1, cblk), jnp.float32)],
        compiler_params=pltpu.CompilerParams(
            dimension_semantics=("parallel", "parallel", "parallel"),
            vmem_limit_bytes=vmem),
    )(xr, xr, xr, xr, a1[None], c1[None], w2p)

    # BN2 batch stats -> fused affine; applied as plain jnp so XLA fuses it with the
    # channel crop and the final NCHW transpose into a single pass (no kernel 3).
    M2 = B * Ho * Wo
    s2 = jnp.sum(ps2, axis=(0, 1))[0]
    q2 = jnp.sum(pq2, axis=(0, 1))[0]
    mean2 = s2 / M2
    var2 = jnp.maximum(q2 / M2 - mean2 * mean2, 0.0)
    a2 = g2 * lax.rsqrt(var2[:Cout] + EPS)
    c2 = b2 - mean2[:Cout] * a2
    out = y2[..., :Cout] * a2 + c2
    return jnp.transpose(out, (0, 3, 1, 2))          # back to NCHW


# ---------------------------------------------------------------------------
# Pure-JAX reference (same math: bf16 matmul inputs, f32 everything else,
# training-mode batch statistics, like the PyTorch module in train()).
# ---------------------------------------------------------------------------
def scdown_reference(x_nchw, params):
    x = jnp.transpose(x_nchw, (0, 2, 3, 1)).astype(jnp.float32)
    B, H, W, Cin = x.shape
    w1 = params["w1"]
    Cout = w1.shape[1]

    y = jnp.einsum("bhwc,cd->bhwd",
                   x.astype(jnp.bfloat16), w1.astype(jnp.bfloat16),
                   preferred_element_type=jnp.float32)
    mean = jnp.mean(y, axis=(0, 1, 2), keepdims=True)
    var = jnp.mean(jnp.square(y - mean), axis=(0, 1, 2), keepdims=True)
    y = (y - mean) * lax.rsqrt(var + EPS) * params["g1"] + params["b1"]
    y = y * jax.nn.sigmoid(y)

    yp = jnp.pad(y, ((0, 0), (1, 1), (1, 1), (0, 0)))
    Ho, Wo = H // 2, W // 2
    acc = jnp.zeros((B, Ho, Wo, Cout), jnp.float32)
    for kh in range(3):
        for kw in range(3):
            acc = acc + yp[:, kh:kh + 2 * Ho:2, kw:kw + 2 * Wo:2, :] * params["w2"][kh, kw]
    mean2 = jnp.mean(acc, axis=(0, 1, 2), keepdims=True)
    var2 = jnp.mean(jnp.square(acc - mean2), axis=(0, 1, 2), keepdims=True)
    acc = (acc - mean2) * lax.rsqrt(var2 + EPS) * params["g2"] + params["b2"]
    return jnp.transpose(acc, (0, 3, 1, 2))


if __name__ == "__main__":
    def make_params(key, Cin, Cout):
        k1, k2 = jax.random.split(key)
        return {
            "w1": jax.random.normal(k1, (Cin, Cout), jnp.float32) * 0.1,
            "g1": jnp.full((Cout,), 1.1, jnp.float32),
            "b1": jnp.full((Cout,), 0.05, jnp.float32),
            "w2": jax.random.normal(k2, (3, 3, Cout), jnp.float32) * 0.1,
            "g2": jnp.full((Cout,), 0.9, jnp.float32),
            "b2": jnp.full((Cout,), -0.02, jnp.float32),
        }

    key = jax.random.PRNGKey(0)
    fwd = jax.jit(scdown_forward)

    # (B, Cin, Cout, H, W): second case exercises the row-block halo (nr=2) and nc>1.
    cases = [
        (2, 4, 8, 16, 16),
        (1, 16, 384, 32, 32),
    ]
    for (B, Cin, Cout, H, W) in cases:
        key, kp, kx = jax.random.split(key, 3)
        params = make_params(kp, Cin, Cout)
        x = jax.random.normal(kx, (B, Cin, H, W), jnp.float32)

        out = jax.block_until_ready(fwd(x, params))
        ref = jax.block_until_ready(scdown_reference(x, params))

        assert out.shape == (B, Cout, H // 2, W // 2), out.shape
        err = float(jnp.max(jnp.abs(out - ref)))
        assert jnp.allclose(out, ref, atol=2e-3, rtol=2e-3), err

    print("KERNEL_OK")
</pallas_src>

<mosaic_0001>
module attributes {stable_mosaic.version = 11 : i64} {
  func.func @_cv1_matmul_stats_kernel(%arg0: i32, %arg1: memref<512x128xbf16, #tpu.memory_space<vmem>>, %arg2: memref<128x128xbf16, #tpu.memory_space<vmem>>, %arg3: memref<512x128xf32, #tpu.memory_space<vmem>>, %arg4: memref<1x1x128xf32, #tpu.memory_space<vmem>>, %arg5: memref<1x1x128xf32, #tpu.memory_space<vmem>>) attributes {dimension_semantics = [#tpu.dimension_semantics<parallel>], iteration_bounds = array<i64: 1>, scalar_prefetch = 0 : i64, scratch_operands = 0 : i64, tpu.core_type = #tpu.core_type<tc>, window_params = [{transform_indices = @transform_0, window_bounds = array<i64: 512, 128>}, {pipeline_mode = #tpu.pipeline_mode<synchronous>, transform_indices = @transform_1, window_bounds = array<i64: 128, 128>}, {transform_indices = @transform_2, window_bounds = array<i64: 512, 128>}, {transform_indices = @transform_3, window_bounds = array<i64: 1, 1, 128>}, {transform_indices = @transform_4, window_bounds = array<i64: 1, 1, 128>}]} {
    %c0 = arith.constant 0 : index
    %c0_0 = arith.constant 0 : index
    %0 = vector.load %arg1[%c0, %c0_0] : memref<512x128xbf16, #tpu.memory_space<vmem>>, vector<512x128xbf16>
    %c0_1 = arith.constant 0 : index
    %c0_2 = arith.constant 0 : index
    %1 = vector.load %arg2[%c0_1, %c0_2] : memref<128x128xbf16, #tpu.memory_space<vmem>>, vector<128x128xbf16>
    %cst = arith.constant dense<0.000000e+00> : vector<512x128xf32>
    %2 = tpu.matmul %0, %1, %cst {dimension_numbers = #tpu.dot_dimension_numbers<[1], [0], [0], [1], [0, 0, 1, 1], [], []>} : vector<512x128xbf16>, vector<128x128xbf16>, vector<512x128xf32> -> vector<512x128xf32>
    %c0_3 = arith.constant 0 : index
    %c0_4 = arith.constant 0 : index
    %3 = vector.load %arg3[%c0_3, %c0_4] : memref<512x128xf32, #tpu.memory_space<vmem>>, vector<512x128xf32>
    tpu.vector_store %arg3[%c0_3, %c0_4], %2 {strides = array<i32>} : memref<512x128xf32, #tpu.memory_space<vmem>>, vector<512x128xf32>,
    %cst_5 = arith.constant dense<0.000000e+00> : vector<128xf32>
    %4 = vector.multi_reduction <add>, %2, %cst_5 [0] : vector<512x128xf32> to vector<128xf32>
    %5 = vector.shape_cast %4 : vector<128xf32> to vector<1x128xf32>
    %6 = vector.shape_cast %5 : vector<1x128xf32> to vector<1x1x128xf32>
    %c0_6 = arith.constant 0 : index
    %c0_7 = arith.constant 0 : index
    %c0_8 = arith.constant 0 : index
    %7 = vector.load %arg4[%c0_6, %c0_7, %c0_8] : memref<1x1x128xf32, #tpu.memory_space<vmem>>, vector<1x1x128xf32>
    tpu.vector_store %arg4[%c0_6, %c0_7, %c0_8], %6 {strides = array<i32>} : memref<1x1x128xf32, #tpu.memory_space<vmem>>, vector<1x1x128xf32>,
    %8 = arith.mulf %2, %2 : vector<512x128xf32>
    %cst_9 = arith.constant dense<0.000000e+00> : vector<128xf32>
    %9 = vector.multi_reduction <add>, %8, %cst_9 [0] : vector<512x128xf32> to vector<128xf32>
    %10 = vector.shape_cast %9 : vector<128xf32> to vector<1x128xf32>
    %11 = vector.shape_cast %10 : vector<1x128xf32> to vector<1x1x128xf32>
    %c0_10 = arith.constant 0 : index
    %c0_11 = arith.constant 0 : index
    %c0_12 = arith.constant 0 : index
    %12 = vector.load %arg5[%c0_10, %c0_11, %c0_12] : memref<1x1x128xf32, #tpu.memory_space<vmem>>, vector<1x1x128xf32>
    tpu.vector_store %arg5[%c0_10, %c0_11, %c0_12], %11 {strides = array<i32>} : memref<1x1x128xf32, #tpu.memory_space<vmem>>, vector<1x1x128xf32>,
    return
  }
  func.func @transform_0(%arg0: i32) -> (i32, i32) {
    %c0_i32 = arith.constant 0 : i32
    %c0_i32_0 = arith.constant 0 : i32
    return %arg0, %c0_i32 : i32, i32
  }
  func.func @transform_1(%arg0: i32) -> (i32, i32) {
    %c0_i32 = arith.constant 0 : i32
    %c0_i32_0 = arith.constant 0 : i32
    %c0_i32_1 = arith.constant 0 : i32
    return %c0_i32, %c0_i32_0 : i32, i32
  }
  func.func @transform_2(%arg0: i32) -> (i32, i32) {
    %c0_i32 = arith.constant 0 : i32
    %c0_i32_0 = arith.constant 0 : i32
    return %arg0, %c0_i32 : i32, i32
  }
  func.func @transform_3(%arg0: i32) -> (i32, i32, i32) {
    %c0_i32 = arith.constant 0 : i32
    %c0_i32_0 = arith.constant 0 : i32
    %c0_i32_1 = arith.constant 0 : i32
    return %arg0, %c0_i32, %c0_i32_0 : i32, i32, i32
  }
  func.func @transform_4(%arg0: i32) -> (i32, i32, i32) {
    %c0_i32 = arith.constant 0 : i32
    %c0_i32_0 = arith.constant 0 : i32
    %c0_i32_1 = arith.constant 0 : i32
    return %arg0, %c0_i32, %c0_i32_0 : i32, i32, i32
  }
}

module attributes {stable_mosaic.version = 11 : i64} {
  func.func @_cv2_dw_kernel(%arg0: i32, %arg1: i32, %arg2: i32, %arg3: memref<1x8x2x8x128xf32, #tpu.memory_space<vmem>>, %arg4: memref<1x8x2x8x128xf32, #tpu.memory_space<vmem>>, %arg5: memref<1x1x1x8x128xf32, #tpu.memory_space<vmem>>, %arg6: memref<1x1x1x8x128xf32, #tpu.memory_space<vmem>>, %arg7: memref<1x128xf32, #tpu.memory_space<vmem>>, %arg8: memref<1x128xf32, #tpu.memory_space<vmem>>, %arg9: memref<9x1x128xf32, #tpu.memory_space<vmem>>, %arg10: memref<1x8x8x128xf32, #tpu.memory_space<vmem>>, %arg11: memref<1x1x1x128xf32, #tpu.memory_space<vmem>>, %arg12: memref<1x1x1x128xf32, #tpu.memory_space<vmem>>, %arg13: memref<9x9x128xf32, #tpu.memory_space<vmem>>) attributes {dimension_semantics = [#tpu.dimension_semantics<parallel>, #tpu.dimension_semantics<parallel>, #tpu.dimension_semantics<parallel>], iteration_bounds = array<i64: 2, 1, 1>, scalar_prefetch = 0 : i64, scratch_operands = 1 : i64, tpu.core_type = #tpu.core_type<tc>, window_params = [{transform_indices = @transform_0, window_bounds = array<i64: 1, 8, 2, 8, 128>}, {transform_indices = @transform_1, window_bounds = array<i64: 1, 8, 2, 8, 128>}, {transform_indices = @transform_2, window_bounds = array<i64: 1, 1, 1, 8, 128>}, {transform_indices = @transform_3, window_bounds = array<i64: 1, 1, 1, 8, 128>}, {transform_indices = @transform_4, window_bounds = array<i64: 1, 128>}, {transform_indices = @transform_5, window_bounds = array<i64: 1, 128>}, {transform_indices = @transform_6, window_bounds = array<i64: 9, 1, 128>}, {transform_indices = @transform_7, window_bounds = array<i64: 1, 8, 8, 128>}, {transform_indices = @transform_8, window_bounds = array<i64: 1, 1, 1, 128>}, {transform_indices = @transform_9, window_bounds = array<i64: 1, 1, 1, 128>}]} {
    %c0 = arith.constant 0 : index
    %c0_0 = arith.constant 0 : index
    %0 = vector.load %arg7[%c0, %c0_0] : memref<1x128xf32, #tpu.memory_space<vmem>>, vector<1x128xf32>
    %c0_1 = arith.constant 0 : index
    %c0_2 = arith.constant 0 : index
    %1 = vector.load %arg8[%c0_1, %c0_2] : memref<1x128xf32, #tpu.memory_space<vmem>>, vector<1x128xf32>
    %cst = arith.constant 0.000000e+00 : f32
    %2 = vector.broadcast %cst : f32 to vector<9x1x128xf32>
    %c0_3 = arith.constant 0 : index
    %c0_4 = arith.constant 0 : index
    %c0_5 = arith.constant 0 : index
    %3 = vector.load %arg13[%c0_3, %c0_4, %c0_5] : memref<9x9x128xf32, #tpu.memory_space<vmem>>, vector<9x1x128xf32>
    tpu.vector_store %arg13[%c0_3, %c0_4, %c0_5], %2 {strides = array<i32>} : memref<9x9x128xf32, #tpu.memory_space<vmem>>, vector<9x1x128xf32>,
    %c0_6 = arith.constant 0 : index
    %c0_7 = arith.constant 0 : index
    %c0_8 = arith.constant 0 : index
    %c0_9 = arith.constant 0 : index
    %c0_10 = arith.constant 0 : index
    %4 = vector.load %arg3[%c0_6, %c0_7, %c0_8, %c0_9, %c0_10] : memref<1x8x2x8x128xf32, #tpu.memory_space<vmem>>, vector<1x8x1x8x128xf32>
    %5 = vector.shape_cast %4 : vector<1x8x1x8x128xf32> to vector<8x8x128xf32>
    %6 = vector.shape_cast %0 : vector<1x128xf32> to vector<1x1x128xf32>
    %7 = vector.broadcast %6 : vector<1x1x128xf32> to vector<8x8x128xf32>
    %8 = arith.mulf %5, %7 : vector<8x8x128xf32>
    %9 = vector.shape_cast %1 : vector<1x128xf32> to vector<1x1x128xf32>
    %10 = vector.broadcast %9 : vector<1x1x128xf32> to vector<8x8x128xf32>
    %11 = arith.addf %8, %10 : vector<8x8x128xf32>
    %12 = arith.negf %11 : vector<8x8x128xf32>
    %13 = math.exp %12 : vector<8x8x128xf32>
    %cst_11 = arith.constant 1.000000e+00 : f32
    %14 = vector.broadcast %cst_11 : f32 to vector<8x8x128xf32>
    %15 = arith.addf %14, %13 : vector<8x8x128xf32>
    %16 = arith.divf %14, %15 : vector<8x8x128xf32>
    %17 = arith.mulf %11, %16 : vector<8x8x128xf32>
    %c1 = arith.constant 1 : index
    %c1_12 = arith.constant 1 : index
    %c0_13 = arith.constant 0 : index
    %18 = vector.load %arg13[%c1, %c1_12, %c0_13] : memref<9x9x128xf32, #tpu.memory_space<vmem>>, vector<8x8x128xf32>
    tpu.vector_store %arg13[%c1, %c1_12, %c0_13], %17 {strides = array<i32>} : memref<9x9x128xf32, #tpu.memory_space<vmem>>, vector<8x8x128xf32>,
    %c1_14 = arith.constant 1 : index
    %c1_15 = arith.constant 1 : index
    %c0_16 = arith.constant 0 : index
    %19 = vector.load %arg13[%c1_14, %c1_15, %c0_16] : memref<9x9x128xf32, #tpu.memory_space<vmem>>, vector<8x8x128xf32>
    %c4 = arith.constant 4 : index
    %c0_17 = arith.constant 0 : index
    %c0_18 = arith.constant 0 : index
    %20 = vector.load %arg9[%c4, %c0_17, %c0_18] : memref<9x1x128xf32, #tpu.memory_space<vmem>>, vector<1x1x128xf32>
    %21 = vector.shape_cast %20 : vector<1x1x128xf32> to vector<1x128xf32>
    %22 = vector.shape_cast %21 : vector<1x128xf32> to vector<1x1x128xf32>
    %23 = vector.broadcast %22 : vector<1x1x128xf32> to vector<8x8x128xf32>
    %24 = arith.mulf %19, %23 : vector<8x8x128xf32>
    %25 = vector.shape_cast %24 : vector<8x8x128xf32> to vector<1x8x8x128xf32>
    %c0_19 = arith.constant 0 : index
    %c0_20 = arith.constant 0 : index
    %c0_21 = arith.constant 0 : index
    %c0_22 = arith.constant 0 : index
    %26 = vector.load %arg10[%c0_19, %c0_20, %c0_21, %c0_22] : memref<1x8x8x128xf32, #tpu.memory_space<vmem>>, vector<1x8x8x128xf32>
    tpu.vector_store %arg10[%c0_19, %c0_20, %c0_21, %c0_22], %25 {strides = array<i32>} : memref<1x8x8x128xf32, #tpu.memory_space<vmem>>, vector<1x8x8x128xf32>,
    %c0_23 = arith.constant 0 : index
    %c0_24 = arith.constant 0 : index
    %c0_25 = arith.constant 0 : index
    %c0_26 = arith.constant 0 : index
    %c0_27 = arith.constant 0 : index
    %27 = vector.load %arg4[%c0_23, %c0_24, %c0_25, %c0_26, %c0_27] : memref<1x8x2x8x128xf32, #tpu.memory_space<vmem>>, vector<1x8x1x8x128xf32>
    %28 = vector.shape_cast %27 : vector<1x8x1x8x128xf32> to vector<8x8x128xf32>
    %29 = vector.shape_cast %0 : vector<1x128xf32> to vector<1x1x128xf32>
    %30 = vector.broadcast %29 : vector<1x1x128xf32> to vector<8x8x128xf32>
    %31 = arith.mulf %28, %30 : vector<8x8x128xf32>
    %32 = vector.shape_cast %1 : vector<1x128xf32> to vector<1x1x128xf32>
    %33 = vector.broadcast %32 : vector<1x1x128xf32> to vector<8x8x128xf32>
    %34 = arith.addf %31, %33 : vector<8x8x128xf32>
    %35 = arith.negf %34 : vector<8x8x128xf32>
    %36 = math.exp %35 : vector<8x8x128xf32>
    %cst_28 = arith.constant 1.000000e+00 : f32
    %37 = vector.broadcast %cst_28 : f32 to vector<8x8x128xf32>
    %38 = arith.addf %37, %36 : vector<8x8x128xf32>
    %39 = arith.divf %37, %38 : vector<8x8x128xf32>
    %40 = arith.mulf %34, %39 : vector<8x8x128xf32>
    %c1_29 = arith.constant 1 : index
    %c1_30 = arith.constant 1 : index
    %c0_31 = arith.constant 0 : index
    %41 = vector.load %arg13[%c1_29, %c1_30, %c0_31] : memref<9x9x128xf32, #tpu.memory_space<vmem>>, vector<8x8x128xf32>
    tpu.vector_store %arg13[%c1_29, %c1_30, %c0_31], %40 {strides = array<i32>} : memref<9x9x128xf32, #tpu.memory_space<vmem>>, vector<8x8x128xf32>,
    %c1_32 = arith.constant 1 : index
    %c0_33 = arith.constant 0 : index
    %c0_34 = arith.constant 0 : index
    %42 = vector.load %arg13[%c1_32, %c0_33, %c0_34] : memref<9x9x128xf32, #tpu.memory_space<vmem>>, vector<8x8x128xf32>
    %c3 = arith.constant 3 : index
    %c0_35 = arith.constant 0 : index
    %c0_36 = arith.constant 0 : index
    %43 = vector.load %arg9[%c3, %c0_35, %c0_36] : memref<9x1x128xf32, #tpu.memory_space<vmem>>, vector<1x1x128xf32>
    %44 = vector.shape_cast %43 : vector<1x1x128xf32> to vector<1x128xf32>
    %45 = vector.shape_cast %44 : vector<1x128xf32> to vector<1x1x128xf32>
    %46 = vector.broadcast %45 : vector<1x1x128xf32> to vector<8x8x128xf32>
    %47 = arith.mulf %42, %46 : vector<8x8x128xf32>
    %c1_37 = arith.constant 1 : index
    %c1_38 = arith.constant 1 : index
    %c0_39 = arith.constant 0 : index
    %48 = vector.load %arg13[%c1_37, %c1_38, %c0_39] : memref<9x9x128xf32, #tpu.memory_space<vmem>>, vector<8x8x128xf32>
    %c5 = arith.constant 5 : index
    %c0_40 = arith.constant 0 : index
    %c0_41 = arith.constant 0 : index
    %49 = vector.load %arg9[%c5, %c0_40, %c0_41] : memref<9x1x128xf32, #tpu.memory_space<vmem>>, vector<1x1x128xf32>
    %50 = vector.shape_cast %49 : vector<1x1x128xf32> to vector<1x128xf32>
    %51 = vector.shape_cast %50 : vector<1x128xf32> to vector<1x1x128xf32>
    %52 = vector.broadcast %51 : vector<1x1x128xf32> to vector<8x8x128xf32>
    %53 = arith.mulf %48, %52 : vector<8x8x128xf32>
    %54 = arith.addf %47, %53 : vector<8x8x128xf32>
    %c0_42 = arith.constant 0 : index
    %c0_43 = arith.constant 0 : index
    %c0_44 = arith.constant 0 : index
    %c0_45 = arith.constant 0 : index
    %55 = vector.load %arg10[%c0_42, %c0_43, %c0_44, %c0_45] : memref<1x8x8x128xf32, #tpu.memory_space<vmem>>, vector<1x8x8x128xf32>
    %56 = vector.shape_cast %54 : vector<8x8x128xf32> to vector<1x8x8x128xf32>
    %57 = arith.addf %55, %56 : vector<1x8x8x128xf32>
    %c0_46 = arith.constant 0 : index
    %c0_47 = arith.constant 0 : index
    %c0_48 = arith.constant 0 : index
    %c0_49 = arith.constant 0 : index
    %58 = vector.load %arg10[%c0_46, %c0_47, %c0_48, %c0_49] : memref<1x8x8x128xf32, #tpu.memory_space<vmem>>, vector<1x8x8x128xf32>
    tpu.vector_store %arg10[%c0_46, %c0_47, %c0_48, %c0_49], %57 {strides = array<i32>} : memref<1x8x8x128xf32, #tpu.memory_space<vmem>>, vector<1x8x8x128xf32>,
    %c0_50 = arith.constant 0 : index
    %c0_51 = arith.constant 0 : index
    %c1_52 = arith.constant 1 : index
    %c0_53 = arith.constant 0 : index
    %c0_54 = arith.constant 0 : index
    %59 = vector.load %arg3[%c0_50, %c0_51, %c1_52, %c0_53, %c0_54] : memref<1x8x2x8x128xf32, #tpu.memory_space<vmem>>, vector<1x8x1x8x128xf32>
    %60 = vector.shape_cast %59 : vector<1x8x1x8x128xf32> to vector<8x8x128xf32>
    %61 = vector.shape_cast %0 : vector<1x128xf32> to vector<1x1x128xf32>
    %62 = vector.broadcast %61 : vector<1x1x128xf32> to vector<8x8x128xf32>
    %63 = arith.mulf %60, %62 : vector<8x8x128xf32>
    %64 = vector.shape_cast %1 : vector<1x128xf32> to vector<1x1x128xf32>
    %65 = vector.broadcast %64 : vector<1x1x128xf32> to vector<8x8x128xf32>
    %66 = arith.addf %63, %65 : vector<8x8x128xf32>
    %67 = arith.negf %66 : vector<8x8x128xf32>
    %68 = math.exp %67 : vector<8x8x128xf32>
    %cst_55 = arith.constant 1.000000e+00 : f32
    %69 = vector.broadcast %cst_55 : f32 to vector<8x8x128xf32>
    %70 = arith.addf %69, %68 : vector<8x8x128xf32>
    %71 = arith.divf %69, %70 : vector<8x8x128xf32>
    %72 = arith.mulf %66, %71 : vector<8x8x128xf32>
    %c1_56 = arith.constant 1 : index
    %c1_57 = arith.constant 1 : index
    %c0_58 = arith.constant 0 : index
    %73 = vector.load %arg13[%c1_56, %c1_57, %c0_58] : memref<9x9x128xf32, #tpu.memory_space<vmem>>, vector<8x8x128xf32>
    tpu.vector_store %arg13[%c1_56, %c1_57, %c0_58], %72 {strides = array<i32>} : memref<9x9x128xf32, #tpu.memory_space<vmem>>, vector<8x8x128xf32>,
    %c0_59 = arith.constant 0 : index
    %c0_60 = arith.constant 0 : index
    %c0_61 = arith.constant 0 : index
    %c0_62 = arith.constant 0 : index
    %c0_63 = arith.constant 0 : index
    %74 = vector.load %arg5[%c0_59, %c0_60, %c0_61, %c0_62, %c0_63] : memref<1x1x1x8x128xf32, #tpu.memory_space<vmem>>, vector<1x1x1x8x128xf32>
    %75 = vector.shape_cast %74 : vector<1x1x1x8x128xf32> to vector<8x128xf32>
    %76 = vector.broadcast %0 : vector<1x128xf32> to vector<8x128xf32>
    %77 = arith.mulf %75, %76 : vector<8x128xf32>
    %78 = vector.broadcast %1 : vector<1x128xf32> to vector<8x128xf32>
    %79 = arith.addf %77, %78 : vector<8x128xf32>
    %80 = arith.negf %79 : vector<8x128xf32>
    %81 = math.exp %80 : vector<8x128xf32>
    %cst_64 = arith.constant 1.000000e+00 : f32
    %82 = vector.broadcast %cst_64 : f32 to vector<8x128xf32>
    %83 = arith.addf %82, %81 : vector<8x128xf32>
    %84 = arith.divf %82, %83 : vector<8x128xf32>
    %85 = arith.mulf %79, %84 : vector<8x128xf32>
    %c0_i32 = arith.constant 0 : i32
    %86 = arith.cmpi sgt, %arg1, %c0_i32 : i32
    %cst_65 = arith.constant 0.000000e+00 : f32
    %87 = vector.broadcast %cst_65 : f32 to vector<8x128xf32>
    %88 = arith.select %86, %85, %87 : vector<8x128xf32>
    %89 = vector.shape_cast %88 : vector<8x128xf32> to vector<1x8x128xf32>
    %c0_66 = arith.constant 0 : index
    %c1_67 = arith.constant 1 : index
    %c0_68 = arith.constant 0 : index
    %90 = vector.load %arg13[%c0_66, %c1_67, %c0_68] : memref<9x9x128xf32, #tpu.memory_space<vmem>>, vector<1x8x128xf32>
    tpu.vector_store %arg13[%c0_66, %c1_67, %c0_68], %89 {strides = array<i32>} : memref<9x9x128xf32, #tpu.memory_space<vmem>>, vector<1x8x128xf32>,
    %c0_69 = arith.constant 0 : index
    %c1_70 = arith.constant 1 : index
    %c0_71 = arith.constant 0 : index
    %91 = vector.load %arg13[%c0_69, %c1_70, %c0_71] : memref<9x9x128xf32, #tpu.memory_space<vmem>>, vector<8x8x128xf32>
    %c1_72 = arith.constant 1 : index
    %c0_73 = arith.constant 0 : index
    %c0_74 = arith.constant 0 : index
    %92 = vector.load %arg9[%c1_72, %c0_73, %c0_74] : memref<9x1x128xf32, #tpu.memory_space<vmem>>, vector<1x1x128xf32>
    %93 = vector.shape_cast %92 : vector<1x1x128xf32> to vector<1x128xf32>
    %94 = vector.shape_cast %93 : vector<1x128xf32> to vector<1x1x128xf32>
    %95 = vector.broadcast %94 : vector<1x1x128xf32> to vector<8x8x128xf32>
    %96 = arith.mulf %91, %95 : vector<8x8x128xf32>
    %c1_75 = arith.constant 1 : index
    %c1_76 = arith.constant 1 : index
    %c0_77 = arith.constant 0 : index
    %97 = vector.load %arg13[%c1_75, %c1_76, %c0_77] : memref<9x9x128xf32, #tpu.memory_space<vmem>>, vector<8x8x128xf32>
    %c7 = arith.constant 7 : index
    %c0_78 = arith.constant 0 : index
    %c0_79 = arith.constant 0 : index
    %98 = vector.load %arg9[%c7, %c0_78, %c0_79] : memref<9x1x128xf32, #tpu.memory_space<vmem>>, vector<1x1x128xf32>
    %99 = vector.shape_cast %98 : vector<1x1x128xf32> to vector<1x128xf32>
    %100 = vector.shape_cast %99 : vector<1x128xf32> to vector<1x1x128xf32>
    %101 = vector.broadcast %100 : vector<1x1x128xf32> to vector<8x8x128xf32>
    %102 = arith.mulf %97, %101 : vector<8x8x128xf32>
    %103 = arith.addf %96, %102 : vector<8x8x128xf32>
    %c0_80 = arith.constant 0 : index
    %c0_81 = arith.constant 0 : index
    %c0_82 = arith.constant 0 : index
    %c0_83 = arith.constant 0 : index
    %104 = vector.load %arg10[%c0_80, %c0_81, %c0_82, %c0_83] : memref<1x8x8x128xf32, #tpu.memory_space<vmem>>, vector<1x8x8x128xf32>
    %105 = vector.shape_cast %103 : vector<8x8x128xf32> to vector<1x8x8x128xf32>
    %106 = arith.addf %104, %105 : vector<1x8x8x128xf32>
    %c0_84 = arith.constant 0 : index
    %c0_85 = arith.constant 0 : index
    %c0_86 = arith.constant 0 : index
    %c0_87 = arith.constant 0 : index
    %107 = vector.load %arg10[%c0_84, %c0_85, %c0_86, %c0_87] : memref<1x8x8x128xf32, #tpu.memory_space<vmem>>, vector<1x8x8x128xf32>
    tpu.vector_store %arg10[%c0_84, %c0_85, %c0_86, %c0_87], %106 {strides = array<i32>} : memref<1x8x8x128xf32, #tpu.memory_space<vmem>>, vector<1x8x8x128xf32>,
    %c0_88 = arith.constant 0 : index
    %c0_89 = arith.constant 0 : index
    %c1_90 = arith.constant 1 : index
    %c0_91 = arith.constant 0 : index
    %c0_92 = arith.constant 0 : index
    %108 = vector.load %arg4[%c0_88, %c0_89, %c1_90, %c0_91, %c0_92] : memref<1x8x2x8x128xf32, #tpu.memory_space<vmem>>, vector<1x8x1x8x128xf32>
    %109 = vector.shape_cast %108 : vector<1x8x1x8x128xf32> to vector<8x8x128xf32>
    %110 = vector.shape_cast %0 : vector<1x128xf32> to vector<1x1x128xf32>
    %111 = vector.broadcast %110 : vector<1x1x128xf32> to vector<8x8x128xf32>
    %112 = arith.mulf %109, %111 : vector<8x8x128xf32>
    %113 = vector.shape_cast %1 : vector<1x128xf32> to vector<1x1x128xf32>
    %114 = vector.broadcast %113 : vector<1x1x128xf32> to vector<8x8x128xf32>
    %115 = arith.addf %112, %114 : vector<8x8x128xf32>
    %116 = arith.negf %115 : vector<8x8x128xf32>
    %117 = math.exp %116 : vector<8x8x128xf32>
    %cst_93 = arith.constant 1.000000e+00 : f32
    %118 = vector.broadcast %cst_93 : f32 to vector<8x8x128xf32>
    %119 = arith.addf %118, %117 : vector<8x8x128xf32>
    %120 = arith.divf %118, %119 : vector<8x8x128xf32>
    %121 = arith.mulf %115, %120 : vector<8x8x128xf32>
    %c1_94 = arith.constant 1 : index
    %c1_95 = arith.constant 1 : index
    %c0_96 = arith.constant 0 : index
    %122 = vector.load %arg13[%c1_94, %c1_95, %c0_96] : memref<9x9x128xf32, #tpu.memory_space<vmem>>, vector<8x8x128xf32>
    tpu.vector_store %arg13[%c1_94, %c1_95, %c0_96], %121 {strides = array<i32>} : memref<9x9x128xf32, #tpu.memory_space<vmem>>, vector<8x8x128xf32>,
    %c0_97 = arith.constant 0 : index
    %c0_98 = arith.constant 0 : index
    %c0_99 = arith.constant 0 : index
    %c0_100 = arith.constant 0 : index
    %c0_101 = arith.constant 0 : index
    %123 = vector.load %arg6[%c0_97, %c0_98, %c0_99, %c0_100, %c0_101] : memref<1x1x1x8x128xf32, #tpu.memory_space<vmem>>, vector<1x1x1x8x128xf32>
    %124 = vector.shape_cast %123 : vector<1x1x1x8x128xf32> to vector<8x128xf32>
    %125 = vector.broadcast %0 : vector<1x128xf32> to vector<8x128xf32>
    %126 = arith.mulf %124, %125 : vector<8x128xf32>
    %127 = vector.broadcast %1 : vector<1x128xf32> to vector<8x128xf32>
    %128 = arith.addf %126, %127 : vector<8x128xf32>
    %129 = arith.negf %128 : vector<8x128xf32>
    %130 = math.exp %129 : vector<8x128xf32>
    %cst_102 = arith.constant 1.000000e+00 : f32
    %131 = vector.broadcast %cst_102 : f32 to vector<8x128xf32>
    %132 = arith.addf %131, %130 : vector<8x128xf32>
    %133 = arith.divf %131, %132 : vector<8x128xf32>
    %134 = arith.mulf %128, %133 : vector<8x128xf32>
    %c0_i32_103 = arith.constant 0 : i32
    %135 = arith.cmpi sgt, %arg1, %c0_i32_103 : i32
    %cst_104 = arith.constant 0.000000e+00 : f32
    %136 = vector.broadcast %cst_104 : f32 to vector<8x128xf32>
    %137 = arith.select %135, %134, %136 : vector<8x128xf32>
    %138 = vector.shape_cast %137 : vector<8x128xf32> to vector<1x8x128xf32>
    %c0_105 = arith.constant 0 : index
    %c1_106 = arith.constant 1 : index
    %c0_107 = arith.constant 0 : index
    %139 = vector.load %arg13[%c0_105, %c1_106, %c0_107] : memref<9x9x128xf32, #tpu.memory_space<vmem>>, vector<1x8x128xf32>
    tpu.vector_store %arg13[%c0_105, %c1_106, %c0_107], %138 {strides = array<i32>} : memref<9x9x128xf32, #tpu.memory_space<vmem>>, vector<1x8x128xf32>,
    %c0_108 = arith.constant 0 : index
    %c0_109 = arith.constant 0 : index
    %c0_110 = arith.constant 0 : index
    %140 = vector.load %arg13[%c0_108, %c0_109, %c0_110] : memref<9x9x128xf32, #tpu.memory_space<vmem>>, vector<8x8x128xf32>
    %c0_111 = arith.constant 0 : index
    %c0_112 = arith.constant 0 : index
    %c0_113 = arith.constant 0 : index
    %141 = vector.load %arg9[%c0_111, %c0_112, %c0_113] : memref<9x1x128xf32, #tpu.memory_space<vmem>>, vector<1x1x128xf32>
    %142 = vector.shape_cast %141 : vector<1x1x128xf32> to vector<1x128xf32>
    %143 = vector.shape_cast %142 : vector<1x128xf32> to vector<1x1x128xf32>
    %144 = vector.broadcast %143 : vector<1x1x128xf32> to vector<8x8x128xf32>
    %145 = arith.mulf %140, %144 : vector<8x8x128xf32>
    %c0_114 = arith.constant 0 : index
    %c1_115 = arith.constant 1 : index
    %c0_116 = arith.constant 0 : index
    %146 = vector.load %arg13[%c0_114, %c1_115, %c0_116] : memref<9x9x128xf32, #tpu.memory_space<vmem>>, vector<8x8x128xf32>
    %c2 = arith.constant 2 : index
    %c0_117 = arith.constant 0 : index
    %c0_118 = arith.constant 0 : index
    %147 = vector.load %arg9[%c2, %c0_117, %c0_118] : memref<9x1x128xf32, #tpu.memory_space<vmem>>, vector<1x1x128xf32>
    %148 = vector.shape_cast %147 : vector<1x1x128xf32> to vector<1x128xf32>
    %149 = vector.shape_cast %148 : vector<1x128xf32> to vector<1x1x128xf32>
    %150 = vector.broadcast %149 : vector<1x1x128xf32> to vector<8x8x128xf32>
    %151 = arith.mulf %146, %150 : vector<8x8x128xf32>
    %152 = arith.addf %145, %151 : vector<8x8x128xf32>
    %c1_119 = arith.constant 1 : index
    %c0_120 = arith.constant 0 : index
    %c0_121 = arith.constant 0 : index
    %153 = vector.load %arg13[%c1_119, %c0_120, %c0_121] : memref<9x9x128xf32, #tpu.memory_space<vmem>>, vector<8x8x128xf32>
    %c6 = arith.constant 6 : index
    %c0_122 = arith.constant 0 : index
    %c0_123 = arith.constant 0 : index
    %154 = vector.load %arg9[%c6, %c0_122, %c0_123] : memref<9x1x128xf32, #tpu.memory_space<vmem>>, vector<1x1x128xf32>
    %155 = vector.shape_cast %154 : vector<1x1x128xf32> to vector<1x128xf32>
    %156 = vector.shape_cast %155 : vector<1x128xf32> to vector<1x1x128xf32>
    %157 = vector.broadcast %156 : vector<1x1x128xf32> to vector<8x8x128xf32>
    %158 = arith.mulf %153, %157 : vector<8x8x128xf32>
    %159 = arith.addf %152, %158 : vector<8x8x128xf32>
    %c1_124 = arith.constant 1 : index
    %c1_125 = arith.constant 1 : index
    %c0_126 = arith.constant 0 : index
    %160 = vector.load %arg13[%c1_124, %c1_125, %c0_126] : memref<9x9x128xf32, #tpu.memory_space<vmem>>, vector<8x8x128xf32>
    %c8 = arith.constant 8 : index
    %c0_127 = arith.constant 0 : index
    %c0_128 = arith.constant 0 : index
    %161 = vector.load %arg9[%c8, %c0_127, %c0_128] : memref<9x1x128xf32, #tpu.memory_space<vmem>>, vector<1x1x128xf32>
    %162 = vector.shape_cast %161 : vector<1x1x128xf32> to vector<1x128xf32>
    %163 = vector.shape_cast %162 : vector<1x128xf32> to vector<1x1x128xf32>
    %164 = vector.broadcast %163 : vector<1x1x128xf32> to vector<8x8x128xf32>
    %165 = arith.mulf %160, %164 : vector<8x8x128xf32>
    %166 = arith.addf %159, %165 : vector<8x8x128xf32>
    %c0_129 = arith.constant 0 : index
    %c0_130 = arith.constant 0 : index
    %c0_131 = arith.constant 0 : index
    %c0_132 = arith.constant 0 : index
    %167 = vector.load %arg10[%c0_129, %c0_130, %c0_131, %c0_132] : memref<1x8x8x128xf32, #tpu.memory_space<vmem>>, vector<1x8x8x128xf32>
    %168 = vector.shape_cast %166 : vector<8x8x128xf32> to vector<1x8x8x128xf32>
    %169 = arith.addf %167, %168 : vector<1x8x8x128xf32>
    %c0_133 = arith.constant 0 : index
    %c0_134 = arith.constant 0 : index
    %c0_135 = arith.constant 0 : index
    %c0_136 = arith.constant 0 : index
    %170 = vector.load %arg10[%c0_133, %c0_134, %c0_135, %c0_136] : memref<1x8x8x128xf32, #tpu.memory_space<vmem>>, vector<1x8x8x128xf32>
    tpu.vector_store %arg10[%c0_133, %c0_134, %c0_135, %c0_136], %169 {strides = array<i32>} : memref<1x8x8x128xf32, #tpu.memory_space<vmem>>, vector<1x8x8x128xf32>,
    %c0_137 = arith.constant 0 : index
    %c0_138 = arith.constant 0 : index
    %c0_139 = arith.constant 0 : index
    %c0_140 = arith.constant 0 : index
    %171 = vector.load %arg10[%c0_137, %c0_138, %c0_139, %c0_140] : memref<1x8x8x128xf32, #tpu.memory_space<vmem>>, vector<1x8x8x128xf32>
    %cst_141 = arith.constant dense<0.000000e+00> : vector<128xf32>
    %172 = vector.multi_reduction <add>, %171, %cst_141 [0, 1, 2] : vector<1x8x8x128xf32> to vector<128xf32>
    %173 = vector.shape_cast %172 : vector<128xf32> to vector<1x1x1x128xf32>
    %c0_142 = arith.constant 0 : index
    %c0_143 = arith.constant 0 : index
    %c0_144 = arith.constant 0 : index
    %c0_145 = arith.constant 0 : index
    %174 = vector.load %arg11[%c0_142, %c0_143, %c0_144, %c0_145] : memref<1x1x1x128xf32, #tpu.memory_space<vmem>>, vector<1x1x1x128xf32>
    tpu.vector_store %arg11[%c0_142, %c0_143, %c0_144, %c0_145], %173 {strides = array<i32>} : memref<1x1x1x128xf32, #tpu.memory_space<vmem>>, vector<1x1x1x128xf32>,
    %175 = arith.mulf %171, %171 : vector<1x8x8x128xf32>
    %cst_146 = arith.constant dense<0.000000e+00> : vector<128xf32>
    %176 = vector.multi_reduction <add>, %175, %cst_146 [0, 1, 2] : vector<1x8x8x128xf32> to vector<128xf32>
    %177 = vector.shape_cast %176 : vector<128xf32> to vector<1x1x1x128xf32>
    %c0_147 = arith.constant 0 : index
    %c0_148 = arith.constant 0 : index
    %c0_149 = arith.constant 0 : index
    %c0_150 = arith.constant 0 : index
    %178 = vector.load %arg12[%c0_147, %c0_148, %c0_149, %c0_150] : memref<1x1x1x128xf32, #tpu.memory_space<vmem>>, vector<1x1x1x128xf32>
    tpu.vector_store %arg12[%c0_147, %c0_148, %c0_149, %c0_150], %177 {strides = array<i32>} : memref<1x1x1x128xf32, #tpu.memory_space<vmem>>, vector<1x1x1x128xf32>,
    return
  }
  func.func @transform_0(%arg0: i32, %arg1: i32, %arg2: i32) -> (i32, i32, i32, i32, i32) {
    %c0_i32 = arith.constant 0 : i32
    %c0_i32_0 = arith.constant 0 : i32
    %c0_i32_1 = arith.constant 0 : i32
    return %arg0, %arg1, %c0_i32, %c0_i32_0, %arg2 : i32, i32, i32, i32, i32
  }
  func.func @transform_1(%arg0: i32, %arg1: i32, %arg2: i32) -> (i32, i32, i32, i32, i32) {
    %c1_i32 = arith.constant 1 : i32
    %0 = arith.addi %arg2, %c1_i32 : i32
    %c0_i32 = arith.constant 0 : i32
    %c0_i32_0 = arith.constant 0 : i32
    %c0_i32_1 = arith.constant 0 : i32
    return %arg0, %arg1, %c0_i32, %c0_i32_0, %0 : i32, i32, i32, i32, i32
  }
  func.func @transform_2(%arg0: i32, %arg1: i32, %arg2: i32) -> (i32, i32, i32, i32, i32) {
    %c8_i32 = arith.constant 8 : i32
    %0 = arith.muli %arg1, %c8_i32 : i32
    %c1_i32 = arith.constant 1 : i32
    %1 = arith.subi %0, %c1_i32 : i32
    %c0_i32 = arith.constant 0 : i32
    %2 = arith.maxsi %1, %c0_i32 : i32
    %c1_i32_0 = arith.constant 1 : i32
    %c0_i32_1 = arith.constant 0 : i32
    %c0_i32_2 = arith.constant 0 : i32
    return %arg0, %2, %c1_i32_0, %c0_i32_1, %arg2 : i32, i32, i32, i32, i32
  }
  func.func @transform_3(%arg0: i32, %arg1: i32, %arg2: i32) -> (i32, i32, i32, i32, i32) {
    %c8_i32 = arith.constant 8 : i32
    %0 = arith.muli %arg1, %c8_i32 : i32
    %c1_i32 = arith.constant 1 : i32
    %1 = arith.subi %0, %c1_i32 : i32
    %c0_i32 = arith.constant 0 : i32
    %2 = arith.maxsi %1, %c0_i32 : i32
    %c1_i32_0 = arith.constant 1 : i32
    %3 = arith.addi %arg2, %c1_i32_0 : i32
    %c1_i32_1 = arith.constant 1 : i32
    %c0_i32_2 = arith.constant 0 : i32
    %c0_i32_3 = arith.constant 0 : i32
    return %arg0, %2, %c1_i32_1, %c0_i32_2, %3 : i32, i32, i32, i32, i32
  }
  func.func @transform_4(%arg0: i32, %arg1: i32, %arg2: i32) -> (i32, i32) {
    %c0_i32 = arith.constant 0 : i32
    %c0_i32_0 = arith.constant 0 : i32
    return %c0_i32, %arg2 : i32, i32
  }
  func.func @transform_5(%arg0: i32, %arg1: i32, %arg2: i32) -> (i32, i32) {
    %c0_i32 = arith.constant 0 : i32
    %c0_i32_0 = arith.constant 0 : i32
    return %c0_i32, %arg2 : i32, i32
  }
  func.func @transform_6(%arg0: i32, %arg1: i32, %arg2: i32) -> (i32, i32, i32) {
    %c0_i32 = arith.constant 0 : i32
    %c0_i32_0 = arith.constant 0 : i32
    %c0_i32_1 = arith.constant 0 : i32
    return %c0_i32, %c0_i32_0, %arg2 : i32, i32, i32
  }
  func.func @transform_7(%arg0: i32, %arg1: i32, %arg2: i32) -> (i32, i32, i32, i32) {
    %c0_i32 = arith.constant 0 : i32
    %c0_i32_0 = arith.constant 0 : i32
    return %arg0, %arg1, %c0_i32, %arg2 : i32, i32, i32, i32
  }
  func.func @transform_8(%arg0: i32, %arg1: i32, %arg2: i32) -> (i32, i32, i32, i32) {
    %c0_i32 = arith.constant 0 : i32
    %c0_i32_0 = arith.constant 0 : i32
    return %arg0, %arg1, %c0_i32, %arg2 : i32, i32, i32, i32
  }
  func.func @transform_9(%arg0: i32, %arg1: i32, %arg2: i32) -> (i32, i32, i32, i32) {
    %c0_i32 = arith.constant 0 : i32
    %c0_i32_0 = arith.constant 0 : i32
    return %arg0, %arg1, %c0_i32, %arg2 : i32, i32, i32, i32
  }
}

</mosaic_0001>

<llo_original>
// kernel: scdown_forward.2
$region0: #{scdown_forward.2}
  #allocation0 [shape = 'u32[]', space=smem, size = 0x4, offset = 0x4, fixed_abs, tag = 'smem constant byte address 0x4 - core index']
  #allocation1 [shape = 'u32[144,128]{1,0:T(1,128)}', space=vmem, size = 0x12000, scoped, tag = 'internal scratch']
  %s0 = inlined_call_operand.vmem [shape: bf16[512,128], index: 0, kind: input, shape index: {}]
  %s1 = inlined_call_operand.vmem [shape: bf16[128,128], index: 1, kind: input, shape index: {}]
  %s2 = inlined_call_operand.vmem [shape: f32[512,128], index: 2, kind: output, shape index: {0}]
  %s3 = inlined_call_operand.vmem [shape: f32[1,1,128], index: 3, kind: output, shape index: {1}]
  %s4 = inlined_call_operand.vmem [shape: f32[1,1,128], index: 4, kind: output, shape index: {2}]
  %5 = xla_tuple %s2, %s3, %s4
  %s6 = sld [smem:[#allocation0]]
  $region34: #{scdown_forward.2} parent=0
    _
  %s8 = ssub.s32 1, %s6
  %s9 = scalar_select 0, %s8, %s6
  // Predicated region
  $region2: #{scdown_forward.2} parent=0 // pred_check
    _
  $region3: #{scdown_forward.2} parent=0 // pred_check_branch
    %11 = sbr.rel (0) target = $region5
  $region4: #{scdown_forward.2} parent=0 // pred_region
    _
  $region5: #{scdown_forward.2} parent=0 // pred_fallthru
    _
  // Predicated region
  $region6: #{scdown_forward.2} parent=0 // pred_check
    _
  $region7: #{scdown_forward.2} parent=0 // pred_check_branch
    %13 = sbr.rel (0) target = $region9
  $region8: #{scdown_forward.2} parent=0 // pred_region
    _
  $region9: #{scdown_forward.2} parent=0 // pred_fallthru
    _
  %v15 = vld [vmem:[%s0] sm:$0xf]
  %v16 = vld [vmem:[%s0 + $0x4] sm:$0xf]
  %v17 = vld [vmem:[%s0 + $0x8] sm:$0xf]
  %v18 = vld [vmem:[%s0 + $0xc] sm:$0xf]
  %v19 = vld [vmem:[%s0 + $0x10] sm:$0xf]
  %v20 = vld [vmem:[%s0 + $0x14] sm:$0xf]
  %v21 = vld [vmem:[%s0 + $0x18] sm:$0xf]
  %v22 = vld [vmem:[%s0 + $0x1c] sm:$0xf]
  %v23 = vld [vmem:[%s0 + $0x20] sm:$0xf]
  %v24 = vld [vmem:[%s0 + $0x24] sm:$0xf]
  %v25 = vld [vmem:[%s0 + $0x28] sm:$0xf]
  %v26 = vld [vmem:[%s0 + $0x2c] sm:$0xf]
  %v27 = vld [vmem:[%s0 + $0x30] sm:$0xf]
  %v28 = vld [vmem:[%s0 + $0x34] sm:$0xf]
  %v29 = vld [vmem:[%s0 + $0x38] sm:$0xf]
  %v30 = vld [vmem:[%s0 + $0x3c] sm:$0xf]
  %v31 = vld [vmem:[%s0 + $0x40] sm:$0xf]
  %v32 = vld [vmem:[%s0 + $0x44] sm:$0xf]
  %v33 = vld [vmem:[%s0 + $0x48] sm:$0xf]
  %v34 = vld [vmem:[%s0 + $0x4c] sm:$0xf]
  %v35 = vld [vmem:[%s0 + $0x50] sm:$0xf]
  %v36 = vld [vmem:[%s0 + $0x54] sm:$0xf]
  %v37 = vld [vmem:[%s0 + $0x58] sm:$0xf]
  %v38 = vld [vmem:[%s0 + $0x5c] sm:$0xf]
  %v39 = vld [vmem:[%s0 + $0x60] sm:$0xf]
  %v40 = vld [vmem:[%s0 + $0x64] sm:$0xf]
  %v41 = vld [vmem:[%s0 + $0x68] sm:$0xf]
  %v42 = vld [vmem:[%s0 + $0x6c] sm:$0xf]
  %v43 = vld [vmem:[%s0 + $0x70] sm:$0xf]
  %v44 = vld [vmem:[%s0 + $0x74] sm:$0xf]
  %v45 = vld [vmem:[%s0 + $0x78] sm:$0xf]
  %v46 = vld [vmem:[%s0 + $0x7c] sm:$0xf]
  %v47 = vld [vmem:[%s0 + $0x80] sm:$0xf]
  %v48 = vld [vmem:[%s0 + $0x84] sm:$0xf]
  %v49 = vld [vmem:[%s0 + $0x88] sm:$0xf]
  %v50 = vld [vmem:[%s0 + $0x8c] sm:$0xf]
  %v51 = vld [vmem:[%s0 + $0x90] sm:$0xf]
  %v52 = vld [vmem:[%s0 + $0x94] sm:$0xf]
  %v53 = vld [vmem:[%s0 + $0x98] sm:$0xf]
  %v54 = vld [vmem:[%s0 + $0x9c] sm:$0xf]
  %v55 = vld [vmem:[%s0 + $0xa0] sm:$0xf]
  %v56 = vld [vmem:[%s0 + $0xa4] sm:$0xf]
  %v57 = vld [vmem:[%s0 + $0xa8] sm:$0xf]
  %v58 = vld [vmem:[%s0 + $0xac] sm:$0xf]
  %v59 = vld [vmem:[%s0 + $0xb0] sm:$0xf]
  %v60 = vld [vmem:[%s0 + $0xb4] sm:$0xf]
  %v61 = vld [vmem:[%s0 + $0xb8] sm:$0xf]
  %v62 = vld [vmem:[%s0 + $0xbc] sm:$0xf]
  %v63 = vld [vmem:[%s0 + $0xc0] sm:$0xf]
  %v64 = vld [vmem:[%s0 + $0xc4] sm:$0xf]
  %v65 = vld [vmem:[%s0 + $0xc8] sm:$0xf]
  %v66 = vld [vmem:[%s0 + $0xcc] sm:$0xf]
  %v67 = vld [vmem:[%s0 + $0xd0] sm:$0xf]
  %v68 = vld [vmem:[%s0 + $0xd4] sm:$0xf]
  %v69 = vld [vmem:[%s0 + $0xd8] sm:$0xf]
  %v70 = vld [vmem:[%s0 + $0xdc] sm:$0xf]
  %v71 = vld [vmem:[%s0 + $0xe0] sm:$0xf]
  %v72 = vld [vmem:[%s0 + $0xe4] sm:$0xf]
  %v73 = vld [vmem:[%s0 + $0xe8] sm:$0xf]
  %v74 = vld [vmem:[%s0 + $0xec] sm:$0xf]
  %v75 = vld [vmem:[%s0 + $0xf0] sm:$0xf]
  %v76 = vld [vmem:[%s0 + $0xf4] sm:$0xf]
  %v77 = vld [vmem:[%s0 + $0xf8] sm:$0xf]
  %v78 = vld [vmem:[%s0 + $0xfc] sm:$0xf]
  %v79 = vld [vmem:[%s1] sm:$0xf]
  %v80 = vld [vmem:[%s1 + $0x4] sm:$0xf]
  %v81 = vld [vmem:[%s1 + $0x8] sm:$0xf]
  %v82 = vld [vmem:[%s1 + $0xc] sm:$0xf]
  %v83 = vld [vmem:[%s1 + $0x10] sm:$0xf]
  %v84 = vld [vmem:[%s1 + $0x14] sm:$0xf]
  %v85 = vld [vmem:[%s1 + $0x18] sm:$0xf]
  %v86 = vld [vmem:[%s1 + $0x1c] sm:$0xf]
  %v87 = vld [vmem:[%s1 + $0x20] sm:$0xf]
  %v88 = vld [vmem:[%s1 + $0x24] sm:$0xf]
  %v89 = vld [vmem:[%s1 + $0x28] sm:$0xf]
  %v90 = vld [vmem:[%s1 + $0x2c] sm:$0xf]
  %v91 = vld [vmem:[%s1 + $0x30] sm:$0xf]
  %v92 = vld [vmem:[%s1 + $0x34] sm:$0xf]
  %v93 = vld [vmem:[%s1 + $0x38] sm:$0xf]
  %v94 = vld [vmem:[%s1 + $0x3c] sm:$0xf]
  %v159 = vunpack.c.l.b16 %v15
  %v160 = vunpack.c.l.b16 %v16
  %v161 = vunpack.c.l.b16 %v17
  %v162 = vunpack.c.l.b16 %v18
  %v163 = vunpack.c.l.b16 %v19
  %v164 = vunpack.c.l.b16 %v20
  %v165 = vunpack.c.l.b16 %v21
  %v166 = vunpack.c.l.b16 %v22
  %v167 = vunpack.c.l.b16 %v23
  %v168 = vunpack.c.l.b16 %v24
  %v169 = vunpack.c.l.b16 %v25
  %v170 = vunpack.c.l.b16 %v26
  %v171 = vunpack.c.l.b16 %v27
  %v172 = vunpack.c.l.b16 %v28
  %v173 = vunpack.c.l.b16 %v29
  %v174 = vunpack.c.l.b16 %v30
  %v175 = vunpack.c.l.b16 %v31
  %v176 = vunpack.c.l.b16 %v32
  %v177 = vunpack.c.l.b16 %v33
  %v178 = vunpack.c.l.b16 %v34
  %v179 = vunpack.c.l.b16 %v35
  %v180 = vunpack.c.l.b16 %v36
  %v181 = vunpack.c.l.b16 %v37
  %v182 = vunpack.c.l.b16 %v38
  %v183 = vunpack.c.l.b16 %v39
  %v184 = vunpack.c.l.b16 %v40
  %v185 = vunpack.c.l.b16 %v41
  %v186 = vunpack.c.l.b16 %v42
  %v187 = vunpack.c.l.b16 %v43
  %v188 = vunpack.c.l.b16 %v44
  %v189 = vunpack.c.l.b16 %v45
  %v190 = vunpack.c.l.b16 %v46
  %v191 = vunpack.c.l.b16 %v47
  %v192 = vunpack.c.l.b16 %v48
  %v193 = vunpack.c.l.b16 %v49
  %v194 = vunpack.c.l.b16 %v50
  %v195 = vunpack.c.l.b16 %v51
  %v196 = vunpack.c.l.b16 %v52
  %v197 = vunpack.c.l.b16 %v53
  %v198 = vunpack.c.l.b16 %v54
  %v199 = vunpack.c.l.b16 %v55
  %v200 = vunpack.c.l.b16 %v56
  %v201 = vunpack.c.l.b16 %v57
  %v202 = vunpack.c.l.b16 %v58
  %v203 = vunpack.c.l.b16 %v59
  %v204 = vunpack.c.l.b16 %v60
  %v205 = vunpack.c.l.b16 %v61
  %v206 = vunpack.c.l.b16 %v62
  %v207 = vunpack.c.l.b16 %v63
  %v208 = vunpack.c.l.b16 %v64
  %v209 = vunpack.c.l.b16 %v65
  %v210 = vunpack.c.l.b16 %v66
  %v211 = vunpack.c.l.b16 %v67
  %v212 = vunpack.c.l.b16 %v68
  %v213 = vunpack.c.l.b16 %v69
  %v214 = vunpack.c.l.b16 %v70
  %v215 = vunpack.c.l.b16 %v71
  %v216 = vunpack.c.l.b16 %v72
  %v217 = vunpack.c.l.b16 %v73
  %v218 = vunpack.c.l.b16 %v74
  %v219 = vunpack.c.l.b16 %v75
  %v220 = vunpack.c.l.b16 %v76
  %v221 = vunpack.c.l.b16 %v77
  %v222 = vunpack.c.l.b16 %v78
  %v223 = vpack.c.b16 %v160, %v159
  %v224 = vpack.c.b16 %v162, %v161
  %v225 = vpack.c.b16 %v164, %v163
  %v226 = vpack.c.b16 %v166, %v165
  %v227 = vpack.c.b16 %v168, %v167
  %v228 = vpack.c.b16 %v170, %v169
  %v229 = vpack.c.b16 %v172, %v171
  %v230 = vpack.c.b16 %v174, %v173
  %v231 = vpack.c.b16 %v176, %v175
  %v232 = vpack.c.b16 %v178, %v177
  %v233 = vpack.c.b16 %v180, %v179
  %v234 = vpack.c.b16 %v182, %v181
  %v235 = vpack.c.b16 %v184, %v183
  %v236 = vpack.c.b16 %v186, %v185
  %v237 = vpack.c.b16 %v188, %v187
  %v238 = vpack.c.b16 %v190, %v189
  %v239 = vpack.c.b16 %v192, %v191
  %v240 = vpack.c.b16 %v194, %v193
  %v241 = vpack.c.b16 %v196, %v195
  %v242 = vpack.c.b16 %v198, %v197
  %v243 = vpack.c.b16 %v200, %v199
  %v244 = vpack.c.b16 %v202, %v201
  %v245 = vpack.c.b16 %v204, %v203
  %v246 = vpack.c.b16 %v206, %v205
  %v247 = vpack.c.b16 %v208, %v207
  %v248 = vpack.c.b16 %v210, %v209
  %v249 = vpack.c.b16 %v212, %v211
  %v250 = vpack.c.b16 %v214, %v213
  %v251 = vpack.c.b16 %v216, %v215
  %v252 = vpack.c.b16 %v218, %v217
  %v253 = vpack.c.b16 %v220, %v219
  %v254 = vpack.c.b16 %v222, %v221
  %v303 = vunpack.c.l.b16 %v79
  %v304 = vunpack.c.l.b16 %v80
  %v305 = vunpack.c.l.b16 %v81
  %v306 = vunpack.c.l.b16 %v82
  %v307 = vunpack.c.l.b16 %v83
  %v308 = vunpack.c.l.b16 %v84
  %v309 = vunpack.c.l.b16 %v85
  %v310 = vunpack.c.l.b16 %v86
  %v311 = vunpack.c.l.b16 %v87
  %v312 = vunpack.c.l.b16 %v88
  %v313 = vunpack.c.l.b16 %v89
  %v314 = vunpack.c.l.b16 %v90
  %v315 = vunpack.c.l.b16 %v91
  %v316 = vunpack.c.l.b16 %v92
  %v317 = vunpack.c.l.b16 %v93
  %v318 = vunpack.c.l.b16 %v94
  %v319 = vpack.c.b16 %v304, %v303
  %v320 = vpack.c.b16 %v306, %v305
  %v321 = vpack.c.b16 %v308, %v307
  %v322 = vpack.c.b16 %v310, %v309
  %v323 = vpack.c.b16 %v312, %v311
  %v324 = vpack.c.b16 %v314, %v313
  %v325 = vpack.c.b16 %v316, %v315
  %v326 = vpack.c.b16 %v318, %v317
  %335 = vmatprep.subr.bf16.mxu0 0
  %336 = vmatpush1.bf16.msra.mxu0 %v319
  %337 = vmatprep.subr.bf16.mxu0 0
  %338 = vmatpush1.bf16.msra.mxu0 %v320
  %339 = vmatprep.subr.bf16.mxu0 0
  %340 = vmatpush1.bf16.msra.mxu0 %v321
  %341 = vmatprep.subr.bf16.mxu0 0
  %342 = vmatpush1.bf16.msra.mxu0 %v322
  %343 = vmatprep.subr.bf16.mxu0 0
  %344 = vmatpush1.bf16.msra.mxu0 %v323
  %345 = vmatprep.subr.bf16.mxu0 0
  %346 = vmatpush1.bf16.msra.mxu0 %v324
  %347 = vmatprep.subr.bf16.mxu0 0
  %348 = vmatpush1.bf16.msra.mxu0 %v325
  %349 = vmatprep.subr.bf16.mxu0 0
  %350 = vmatpush1.bf16.msra.mxu0 %v326
  %351 = vmatprep.subr.bf16.mxu0 0
  %352 = vmatpush1.bf16.msra.mxu0 0
  %353 = vmatprep.subr.bf16.mxu0 0
  %354 = vmatpush1.bf16.msra.mxu0 0
  %355 = vmatprep.subr.bf16.mxu0 0
  %356 = vmatpush1.bf16.msra.mxu0 0
  %357 = vmatprep.subr.bf16.mxu0 0
  %358 = vmatpush1.bf16.msra.mxu0 0
  %359 = vmatprep.subr.bf16.mxu0 0
  %360 = vmatpush1.bf16.msra.mxu0 0
  %361 = vmatprep.subr.bf16.mxu0 0
  %362 = vmatpush1.bf16.msra.mxu0 0
  %363 = vmatprep.subr.bf16.mxu0 0
  %364 = vmatpush1.bf16.msra.mxu0 0
  %365 = vmatprep.subr.bf16.mxu0 0
  %366 = vmatpush1.bf16.msra.mxu0 0
  %367 = vmatprep.mubr.bf16.mxu0 0
  %368 = vmatmul.mubr.bf16.gmra.mrb[0].mxu0 %v223
  %v369 = vpop.f32.mrb[0].mxu0
  %v370 = vadd.f32 0.0, %v369
  %v371 = vpop.f32.mrb[0].mxu0
  %v372 = vpop.f32.mrb[0].mxu0
  %v373 = vadd.f32 0.0, %v372
  %v374 = vpop.f32.mrb[0].mxu0
  %375 = vmatprep.mubr.bf16.mxu0 0
  %376 = vmatmul.mubr.bf16.gmra.mrb[0].mxu0 %v224
  %v377 = vpop.f32.mrb[0].mxu0
  %v378 = vadd.f32 0.0, %v377
  %v379 = vpop.f32.mrb[0].mxu0
  %v380 = vpop.f32.mrb[0].mxu0
  %v381 = vadd.f32 0.0, %v380
  %v382 = vpop.f32.mrb[0].mxu0
  %383 = vmatprep.mubr.bf16.mxu0 0
  %384 = vmatmul.mubr.bf16.gmra.mrb[0].mxu0 %v225
  %v385 = vpop.f32.mrb[0].mxu0
  %v386 = vadd.f32 0.0, %v385
  %v387 = vpop.f32.mrb[0].mxu0
  %v388 = vpop.f32.mrb[0].mxu0
  %v389 = vadd.f32 0.0, %v388
  %v390 = vpop.f32.mrb[0].mxu0
  %391 = vmatprep.mubr.bf16.mxu0 0
  %392 = vmatmul.mubr.bf16.gmra.mrb[0].mxu0 %v226
  %v393 = vpop.f32.mrb[0].mxu0
  %v394 = vadd.f32 0.0, %v393
  %v395 = vpop.f32.mrb[0].mxu0
  %v396 = vpop.f32.mrb[0].mxu0
  %v397 = vadd.f32 0.0, %v396
  %v398 = vpop.f32.mrb[0].mxu0
  %399 = vmatprep.mubr.bf16.mxu0 0
  %400 = vmatmul.mubr.bf16.gmra.mrb[0].mxu0 %v227
  %v401 = vpop.f32.mrb[0].mxu0
  %v402 = vadd.f32 0.0, %v401
  %v403 = vpop.f32.mrb[0].mxu0
  %v404 = vpop.f32.mrb[0].mxu0
  %v405 = vadd.f32 0.0, %v404
  %v406 = vpop.f32.mrb[0].mxu0
  %407 = vmatprep.mubr.bf16.mxu0 0
  %408 = vmatmul.mubr.bf16.gmra.mrb[0].mxu0 %v228
  %v409 = vpop.f32.mrb[0].mxu0
  %v410 = vadd.f32 0.0, %v409
  %v411 = vpop.f32.mrb[0].mxu0
  %v412 = vpop.f32.mrb[0].mxu0
  %v413 = vadd.f32 0.0, %v412
  %v414 = vpop.f32.mrb[0].mxu0
  %415 = vmatprep.mubr.bf16.mxu0 0
  %416 = vmatmul.mubr.bf16.gmra.mrb[0].mxu0 %v229
  %v417 = vpop.f32.mrb[0].mxu0
  %v418 = vadd.f32 0.0, %v417
  %v419 = vpop.f32.mrb[0].mxu0
  %v420 = vpop.f32.mrb[0].mxu0
  %v421 = vadd.f32 0.0, %v420
  %v422 = vpop.f32.mrb[0].mxu0
  %423 = vmatprep.mubr.bf16.mxu0 0
  %424 = vmatmul.mubr.bf16.gmra.mrb[0].mxu0 %v230
  %v425 = vpop.f32.mrb[0].mxu0
  %v426 = vadd.f32 0.0, %v425
  %v427 = vpop.f32.mrb[0].mxu0
  %v428 = vpop.f32.mrb[0].mxu0
  %v429 = vadd.f32 0.0, %v428
  %v430 = vpop.f32.mrb[0].mxu0
  %431 = vmatprep.mubr.bf16.mxu0 0
  %432 = vmatmul.mubr.bf16.gmra.mrb[0].mxu0 %v231
  %v433 = vpop.f32.mrb[0].mxu0
  %v434 = vadd.f32 0.0, %v433
  %v435 = vpop.f32.mrb[0].mxu0
  %v436 = vpop.f32.mrb[0].mxu0
  %v437 = vadd.f32 0.0, %v436
  %v438 = vpop.f32.mrb[0].mxu0
  %439 = vmatprep.mubr.bf16.mxu0 0
  %440 = vmatmul.mubr.bf16.gmra.mrb[0].mxu0 %v232
  %v441 = vpop.f32.mrb[0].mxu0
  %v442 = vadd.f32 0.0, %v441
  %v443 = vpop.f32.mrb[0].mxu0
  %v444 = vpop.f32.mrb[0].mxu0
  %v445 = vadd.f32 0.0, %v444
  %v446 = vpop.f32.mrb[0].mxu0
  %447 = vmatprep.mubr.bf16.mxu0 0
  %448 = vmatmul.mubr.bf16.gmra.mrb[0].mxu0 %v233
  %v449 = vpop.f32.mrb[0].mxu0
  %v450 = vadd.f32 0.0, %v449
  %v451 = vpop.f32.mrb[0].mxu0
  %v452 = vpop.f32.mrb[0].mxu0
  %v453 = vadd.f32 0.0, %v452
  %v454 = vpop.f32.mrb[0].mxu0
  %455 = vmatprep.mubr.bf16.mxu0 0
  %456 = vmatmul.mubr.bf16.gmra.mrb[0].mxu0 %v234
  %v457 = vpop.f32.mrb[0].mxu0
  %v458 = vadd.f32 0.0, %v457
  %v459 = vpop.f32.mrb[0].mxu0
  %v460 = vpop.f32.mrb[0].mxu0
  %v461 = vadd.f32 0.0, %v460
  %v462 = vpop.f32.mrb[0].mxu0
  %463 = vmatprep.mubr.bf16.mxu0 0
  %464 = vmatmul.mubr.bf16.gmra.mrb[0].mxu0 %v235
  %v465 = vpop.f32.mrb[0].mxu0
  %v466 = vadd.f32 0.0, %v465
  %v467 = vpop.f32.mrb[0].mxu0
  %v468 = vpop.f32.mrb[0].mxu0
  %v469 = vadd.f32 0.0, %v468
  %v470 = vpop.f32.mrb[0].mxu0
  %471 = vmatprep.mubr.bf16.mxu0 0
  %472 = vmatmul.mubr.bf16.gmra.mrb[0].mxu0 %v236
  %v473 = vpop.f32.mrb[0].mxu0
  %v474 = vadd.f32 0.0, %v473
  %v475 = vpop.f32.mrb[0].mxu0
  %v476 = vpop.f32.mrb[0].mxu0
  %v477 = vadd.f32 0.0, %v476
  %v478 = vpop.f32.mrb[0].mxu0
  %479 = vmatprep.mubr.bf16.mxu0 0
  %480 = vmatmul.mubr.bf16.gmra.mrb[0].mxu0 %v237
  %v481 = vpop.f32.mrb[0].mxu0
  %v482 = vadd.f32 0.0, %v481
  %v483 = vpop.f32.mrb[0].mxu0
  %v484 = vpop.f32.mrb[0].mxu0
  %v485 = vadd.f32 0.0, %v484
  %v486 = vpop.f32.mrb[0].mxu0
  %487 = vmatprep.mubr.bf16.mxu0 0
  %488 = vmatmul.mubr.bf16.gmra.mrb[0].mxu0 %v238
  %v489 = vpop.f32.mrb[0].mxu0
  %v490 = vadd.f32 0.0, %v489
  %v491 = vpop.f32.mrb[0].mxu0
  %v492 = vpop.f32.mrb[0].mxu0
  %v493 = vadd.f32 0.0, %v492
  %v494 = vpop.f32.mrb[0].mxu0
  %495 = vmatprep.mubr.bf16.mxu0 0
  %496 = vmatmul.mubr.bf16.gmra.mrb[0].mxu0 %v239
  %v497 = vpop.f32.mrb[0].mxu0
  %v498 = vadd.f32 0.0, %v497
  %v499 = vpop.f32.mrb[0].mxu0
  %v500 = vpop.f32.mrb[0].mxu0
  %v501 = vadd.f32 0.0, %v500
  %v502 = vpop.f32.mrb[0].mxu0
  %503 = vmatprep.mubr.bf16.mxu0 0
  %504 = vmatmul.mubr.bf16.gmra.mrb[0].mxu0 %v240
  %v505 = vpop.f32.mrb[0].mxu0
  %v506 = vadd.f32 0.0, %v505
  %v507 = vpop.f32.mrb[0].mxu0
  %v508 = vpop.f32.mrb[0].mxu0
  %v509 = vadd.f32 0.0, %v508
  %v510 = vpop.f32.mrb[0].mxu0
  %511 = vmatprep.mubr.bf16.mxu0 0
  %512 = vmatmul.mubr.bf16.gmra.mrb[0].mxu0 %v241
  %v513 = vpop.f32.mrb[0].mxu0
  %v514 = vadd.f32 0.0, %v513
  %v515 = vpop.f32.mrb[0].mxu0
  %v516 = vpop.f32.mrb[0].mxu0
  %v517 = vadd.f32 0.0, %v516
  %v518 = vpop.f32.mrb[0].mxu0
  %519 = vmatprep.mubr.bf16.mxu0 0
  %520 = vmatmul.mubr.bf16.gmra.mrb[0].mxu0 %v242
  %v521 = vpop.f32.mrb[0].mxu0
  %v522 = vadd.f32 0.0, %v521
  %v523 = vpop.f32.mrb[0].mxu0
  %v524 = vpop.f32.mrb[0].mxu0
  %v525 = vadd.f32 0.0, %v524
  %v526 = vpop.f32.mrb[0].mxu0
  %527 = vmatprep.mubr.bf16.mxu0 0
  %528 = vmatmul.mubr.bf16.gmra.mrb[0].mxu0 %v243
  %v529 = vpop.f32.mrb[0].mxu0
  %v530 = vadd.f32 0.0, %v529
  %v531 = vpop.f32.mrb[0].mxu0
  %v532 = vpop.f32.mrb[0].mxu0
  %v533 = vadd.f32 0.0, %v532
  %v534 = vpop.f32.mrb[0].mxu0
  %535 = vmatprep.mubr.bf16.mxu0 0
  %536 = vmatmul.mubr.bf16.gmra.mrb[0].mxu0 %v244
  %v537 = vpop.f32.mrb[0].mxu0
  %v538 = vadd.f32 0.0, %v537
  %v539 = vpop.f32.mrb[0].mxu0
  %v540 = vpop.f32.mrb[0].mxu0
  %v541 = vadd.f32 0.0, %v540
  %v542 = vpop.f32.mrb[0].mxu0
  %543 = vmatprep.mubr.bf16.mxu0 0
  %544 = vmatmul.mubr.bf16.gmra.mrb[0].mxu0 %v245
  %v545 = vpop.f32.mrb[0].mxu0
  %v546 = vadd.f32 0.0, %v545
  %v547 = vpop.f32.mrb[0].mxu0
  %v548 = vpop.f32.mrb[0].mxu0
  %v549 = vadd.f32 0.0, %v548
  %v550 = vpop.f32.mrb[0].mxu0
  %551 = vmatprep.mubr.bf16.mxu0 0
  %552 = vmatmul.mubr.bf16.gmra.mrb[0].mxu0 %v246
  %v553 = vpop.f32.mrb[0].mxu0
  %v554 = vadd.f32 0.0, %v553
  %v555 = vpop.f32.mrb[0].mxu0
  %v556 = vpop.f32.mrb[0].mxu0
  %v557 = vadd.f32 0.0, %v556
  %v558 = vpop.f32.mrb[0].mxu0
  %559 = vmatprep.mubr.bf16.mxu0 0
  %560 = vmatmul.mubr.bf16.gmra.mrb[0].mxu0 %v247
  %v561 = vpop.f32.mrb[0].mxu0
  %v562 = vadd.f32 0.0, %v561
  %v563 = vpop.f32.mrb[0].mxu0
  %v564 = vpop.f32.mrb[0].mxu0
  %v565 = vadd.f32 0.0, %v564
  %v566 = vpop.f32.mrb[0].mxu0
  %567 = vmatprep.mubr.bf16.mxu0 0
  %568 = vmatmul.mubr.bf16.gmra.mrb[0].mxu0 %v248
  %v569 = vpop.f32.mrb[0].mxu0
  %v570 = vadd.f32 0.0, %v569
  %v571 = vpop.f32.mrb[0].mxu0
  %v572 = vpop.f32.mrb[0].mxu0
  %v573 = vadd.f32 0.0, %v572
  %v574 = vpop.f32.mrb[0].mxu0
  %575 = vmatprep.mubr.bf16.mxu0 0
  %576 = vmatmul.mubr.bf16.gmra.mrb[0].mxu0 %v249
  %v577 = vpop.f32.mrb[0].mxu0
  %v578 = vadd.f32 0.0, %v577
  %v579 = vpop.f32.mrb[0].mxu0
  %v580 = vpop.f32.mrb[0].mxu0
  %v581 = vadd.f32 0.0, %v580
  %v582 = vpop.f32.mrb[0].mxu0
  %583 = vmatprep.mubr.bf16.mxu0 0
  %584 = vmatmul.mubr.bf16.gmra.mrb[0].mxu0 %v250
  %v585 = vpop.f32.mrb[0].mxu0
  %v586 = vadd.f32 0.0, %v585
  %v587 = vpop.f32.mrb[0].mxu0
  %v588 = vpop.f32.mrb[0].mxu0
  %v589 = vadd.f32 0.0, %v588
  %v590 = vpop.f32.mrb[0].mxu0
  %591 = vmatprep.mubr.bf16.mxu0 0
  %592 = vmatmul.mubr.bf16.gmra.mrb[0].mxu0 %v251
  %v593 = vpop.f32.mrb[0].mxu0
  %v594 = vadd.f32 0.0, %v593
  %v595 = vpop.f32.mrb[0].mxu0
  %v596 = vpop.f32.mrb[0].mxu0
  %v597 = vadd.f32 0.0, %v596
  %v598 = vpop.f32.mrb[0].mxu0
  %599 = vmatprep.mubr.bf16.mxu0 0
  %600 = vmatmul.mubr.bf16.gmra.mrb[0].mxu0 %v252
  %v601 = vpop.f32.mrb[0].mxu0
  %v602 = vadd.f32 0.0, %v601
  %v603 = vpop.f32.mrb[0].mxu0
  %v604 = vpop.f32.mrb[0].mxu0
  %v605 = vadd.f32 0.0, %v604
  %v606 = vpop.f32.mrb[0].mxu0
  %607 = vmatprep.mubr.bf16.mxu0 0
  %608 = vmatmul.mubr.bf16.gmra.mrb[0].mxu0 %v253
  %v609 = vpop.f32.mrb[0].mxu0
  %v610 = vadd.f32 0.0, %v609
  %v611 = vpop.f32.mrb[0].mxu0
  %v612 = vpop.f32.mrb[0].mxu0
  %v613 = vadd.f32 0.0, %v612
  %v614 = vpop.f32.mrb[0].mxu0
  %615 = vmatprep.mubr.bf16.mxu0 0
  %616 = vmatmul.mubr.bf16.gmra.mrb[0].mxu0 %v254
  %v617 = vpop.f32.mrb[0].mxu0
  %v618 = vadd.f32 0.0, %v617
  %v619 = vpop.f32.mrb[0].mxu0
  %v620 = vpop.f32.mrb[0].mxu0
  %v621 = vadd.f32 0.0, %v620
  %v622 = vpop.f32.mrb[0].mxu0
  %623 = vdwg.mxu0
  %624 = vst [vmem:[%s2] sm:$0xff] %v370
  %625 = vst [vmem:[%s2 + $0x8] sm:$0xff] %v373
  %626 = vst [vmem:[%s2 + $0x10] sm:$0xff] %v378
  %627 = vst [vmem:[%s2 + $0x18] sm:$0xff] %v381
  %628 = vst [vmem:[%s2 + $0x20] sm:$0xff] %v386
  %629 = vst [vmem:[%s2 + $0x28] sm:$0xff] %v389
  %630 = vst [vmem:[%s2 + $0x30] sm:$0xff] %v394
  %631 = vst [vmem:[%s2 + $0x38] sm:$0xff] %v397
  %632 = vst [vmem:[%s2 + $0x40] sm:$0xff] %v402
  %633 = vst [vmem:[%s2 + $0x48] sm:$0xff] %v405
  %634 = vst [vmem:[%s2 + $0x50] sm:$0xff] %v410
  %635 = vst [vmem:[%s2 + $0x58] sm:$0xff] %v413
  %636 = vst [vmem:[%s2 + $0x60] sm:$0xff] %v418
  %637 = vst [vmem:[%s2 + $0x68] sm:$0xff] %v421
  %638 = vst [vmem:[%s2 + $0x70] sm:$0xff] %v426
  %639 = vst [vmem:[%s2 + $0x78] sm:$0xff] %v429
  %640 = vst [vmem:[%s2 + $0x80] sm:$0xff] %v434
  %641 = vst [vmem:[%s2 + $0x88] sm:$0xff] %v437
  %642 = vst [vmem:[%s2 + $0x90] sm:$0xff] %v442
  %643 = vst [vmem:[%s2 + $0x98] sm:$0xff] %v445
  %644 = vst [vmem:[%s2 + $0xa0] sm:$0xff] %v450
  %645 = vst [vmem:[%s2 + $0xa8] sm:$0xff] %v453
  %646 = vst [vmem:[%s2 + $0xb0] sm:$0xff] %v458
  %647 = vst [vmem:[%s2 + $0xb8] sm:$0xff] %v461
  %648 = vst [vmem:[%s2 + $0xc0] sm:$0xff] %v466
  %649 = vst [vmem:[%s2 + $0xc8] sm:$0xff] %v469
  %650 = vst [vmem:[%s2 + $0xd0] sm:$0xff] %v474
  %651 = vst [vmem:[%s2 + $0xd8] sm:$0xff] %v477
  %652 = vst [vmem:[%s2 + $0xe0] sm:$0xff] %v482
  %653 = vst [vmem:[%s2 + $0xe8] sm:$0xff] %v485
  %654 = vst [vmem:[%s2 + $0xf0] sm:$0xff] %v490
  %655 = vst [vmem:[%s2 + $0xf8] sm:$0xff] %v493
  %656 = vst [vmem:[%s2 + $0x100] sm:$0xff] %v498
  %657 = vst [vmem:[%s2 + $0x108] sm:$0xff] %v501
  %658 = vst [vmem:[%s2 + $0x110] sm:$0xff] %v506
  %659 = vst [vmem:[%s2 + $0x118] sm:$0xff] %v509
  %660 = vst [vmem:[%s2 + $0x120] sm:$0xff] %v514
  %661 = vst [vmem:[%s2 + $0x128] sm:$0xff] %v517
  %662 = vst [vmem:[%s2 + $0x130] sm:$0xff] %v522
  %663 = vst [vmem:[%s2 + $0x138] sm:$0xff] %v525
  %664 = vst [vmem:[%s2 + $0x140] sm:$0xff] %v530
  %665 = vst [vmem:[%s2 + $0x148] sm:$0xff] %v533
  %666 = vst [vmem:[%s2 + $0x150] sm:$0xff] %v538
  %667 = vst [vmem:[%s2 + $0x158] sm:$0xff] %v541
  %668 = vst [vmem:[%s2 + $0x160] sm:$0xff] %v546
  %669 = vst [vmem:[%s2 + $0x168] sm:$0xff] %v549
  %670 = vst [vmem:[%s2 + $0x170] sm:$0xff] %v554
  %671 = vst [vmem:[%s2 + $0x178] sm:$0xff] %v557
  %672 = vst [vmem:[%s2 + $0x180] sm:$0xff] %v562
  %673 = vst [vmem:[%s2 + $0x188] sm:$0xff] %v565
  %674 = vst [vmem:[%s2 + $0x190] sm:$0xff] %v570
  %675 = vst [vmem:[%s2 + $0x198] sm:$0xff] %v573
  %676 = vst [vmem:[%s2 + $0x1a0] sm:$0xff] %v578
  %677 = vst [vmem:[%s2 + $0x1a8] sm:$0xff] %v581
  %678 = vst [vmem:[%s2 + $0x1b0] sm:$0xff] %v586
  %679 = vst [vmem:[%s2 + $0x1b8] sm:$0xff] %v589
  %680 = vst [vmem:[%s2 + $0x1c0] sm:$0xff] %v594
  %681 = vst [vmem:[%s2 + $0x1c8] sm:$0xff] %v597
  %682 = vst [vmem:[%s2 + $0x1d0] sm:$0xff] %v602
  %683 = vst [vmem:[%s2 + $0x1d8] sm:$0xff] %v605
  %684 = vst [vmem:[%s2 + $0x1e0] sm:$0xff] %v610
  %685 = vst [vmem:[%s2 + $0x1e8] sm:$0xff] %v613
  %686 = vst [vmem:[%s2 + $0x1f0] sm:$0xff] %v618
  %687 = vst [vmem:[%s2 + $0x1f8] sm:$0xff] %v621
  %v688 = vadd.f32 %v370, %v373
  %v689 = vadd.f32 %v688, %v378
  %v690 = vadd.f32 %v689, %v381
  %v691 = vadd.f32 %v690, %v386
  %v692 = vadd.f32 %v691, %v389
  %v693 = vadd.f32 %v692, %v394
  %v694 = vadd.f32 %v693, %v397
  %v695 = vadd.f32 %v694, %v402
  %v696 = vadd.f32 %v695, %v405
  %v697 = vadd.f32 %v696, %v410
  %v698 = vadd.f32 %v697, %v413
  %v699 = vadd.f32 %v698, %v418
  %v700 = vadd.f32 %v699, %v421
  %v701 = vadd.f32 %v700, %v426
  %v702 = vadd.f32 %v701, %v429
  %v703 = vadd.f32 %v702, %v434
  %v704 = vadd.f32 %v703, %v437
  %v705 = vadd.f32 %v704, %v442
  %v706 = vadd.f32 %v705, %v445
  %v707 = vadd.f32 %v706, %v450
  %v708 = vadd.f32 %v707, %v453
  %v709 = vadd.f32 %v708, %v458
  %v710 = vadd.f32 %v709, %v461
  %v711 = vadd.f32 %v710, %v466
  %v712 = vadd.f32 %v711, %v469
  %v713 = vadd.f32 %v712, %v474
  %v714 = vadd.f32 %v713, %v477
  %v715 = vadd.f32 %v714, %v482
  %v716 = vadd.f32 %v715, %v485
  %v717 = vadd.f32 %v716, %v490
  %v718 = vadd.f32 %v717, %v493
  %v719 = vadd.f32 %v718, %v498
  %v720 = vadd.f32 %v719, %v501
  %v721 = vadd.f32 %v720, %v506
  %v722 = vadd.f32 %v721, %v509
  %v723 = vadd.f32 %v722, %v514
  %v724 = vadd.f32 %v723, %v517
  %v725 = vadd.f32 %v724, %v522
  %v726 = vadd.f32 %v725, %v525
  %v727 = vadd.f32 %v726, %v530
  %v728 = vadd.f32 %v727, %v533
  %v729 = vadd.f32 %v728, %v538
  %v730 = vadd.f32 %v729, %v541
  %v731 = vadd.f32 %v730, %v546
  %v732 = vadd.f32 %v731, %v549
  %v733 = vadd.f32 %v732, %v554
  %v734 = vadd.f32 %v733, %v557
  %v735 = vadd.f32 %v734, %v562
  %v736 = vadd.f32 %v735, %v565
  %v737 = vadd.f32 %v736, %v570
  %v738 = vadd.f32 %v737, %v573
  %v739 = vadd.f32 %v738, %v578
  %v740 = vadd.f32 %v739, %v581
  %v741 = vadd.f32 %v740, %v586
  %v742 = vadd.f32 %v741, %v589
  %v743 = vadd.f32 %v742, %v594
  %v744 = vadd.f32 %v743, %v597
  %v745 = vadd.f32 %v744, %v602
  %v746 = vadd.f32 %v745, %v605
  %v747 = vadd.f32 %v746, %v610
  %v748 = vadd.f32 %v747, %v613
  %v749 = vadd.f32 %v748, %v618
  %v750 = vadd.f32 %v749, %v621
  %v751 = vrot.slane %v750, 4
  %v752 = vadd.f32 %v750, %v751
  %v753 = vrot.slane %v752, 2
  %v754 = vadd.f32 %v752, %v753
  %v755 = vrot.slane %v754, 1
  %v756 = vadd.f32 %v754, %v755
  %757 = vst [vmem:[%s3] sm:$0x1] %v756
  %v758 = vmul.f32 %v370, %v370
  %v759 = vmul.f32 %v373, %v373
  %v760 = vmul.f32 %v378, %v378
  %v761 = vmul.f32 %v381, %v381
  %v762 = vmul.f32 %v386, %v386
  %v763 = vmul.f32 %v389, %v389
  %v764 = vmul.f32 %v394, %v394
  %v765 = vmul.f32 %v397, %v397
  %v766 = vmul.f32 %v402, %v402
  %v767 = vmul.f32 %v405, %v405
  %v768 = vmul.f32 %v410, %v410
  %v769 = vmul.f32 %v413, %v413
  %v770 = vmul.f32 %v418, %v418
  %v771 = vmul.f32 %v421, %v421
  %v772 = vmul.f32 %v426, %v426
  %v773 = vmul.f32 %v429, %v429
  %v774 = vmul.f32 %v434, %v434
  %v775 = vmul.f32 %v437, %v437
  %v776 = vmul.f32 %v442, %v442
  %v777 = vmul.f32 %v445, %v445
  %v778 = vmul.f32 %v450, %v450
  %v779 = vmul.f32 %v453, %v453
  %v780 = vmul.f32 %v458, %v458
  %v781 = vmul.f32 %v461, %v461
  %v782 = vmul.f32 %v466, %v466
  %v783 = vmul.f32 %v469, %v469
  %v784 = vmul.f32 %v474, %v474
  %v785 = vmul.f32 %v477, %v477
  %v786 = vmul.f32 %v482, %v482
  %v787 = vmul.f32 %v485, %v485
  %v788 = vmul.f32 %v490, %v490
  %v789 = vmul.f32 %v493, %v493
  %v790 = vmul.f32 %v498, %v498
  %v791 = vmul.f32 %v501, %v501
  %v792 = vmul.f32 %v506, %v506
  %v793 = vmul.f32 %v509, %v509
  %v794 = vmul.f32 %v514, %v514
  %v795 = vmul.f32 %v517, %v517
  %v796 = vmul.f32 %v522, %v522
  %v797 = vmul.f32 %v525, %v525
  %v798 = vmul.f32 %v530, %v530
  %v799 = vmul.f32 %v533, %v533
  %v800 = vmul.f32 %v538, %v538
  %v801 = vmul.f32 %v541, %v541
  %v802 = vmul.f32 %v546, %v546
  %v803 = vmul.f32 %v549, %v549
  %v804 = vmul.f32 %v554, %v554
  %v805 = vmul.f32 %v557, %v557
  %v806 = vmul.f32 %v562, %v562
  %v807 = vmul.f32 %v565, %v565
  %v808 = vmul.f32 %v570, %v570
  %v809 = vmul.f32 %v573, %v573
  %v810 = vmul.f32 %v578, %v578
  %v811 = vmul.f32 %v581, %v581
  %v812 = vmul.f32 %v586, %v586
  %v813 = vmul.f32 %v589, %v589
  %v814 = vmul.f32 %v594, %v594
  %v815 = vmul.f32 %v597, %v597
  %v816 = vmul.f32 %v602, %v602
  %v817 = vmul.f32 %v605, %v605
  %v818 = vmul.f32 %v610, %v610
  %v819 = vmul.f32 %v613, %v613
  %v820 = vmul.f32 %v618, %v618
  %v821 = vmul.f32 %v621, %v621
  %v822 = vadd.f32 %v758, %v759
  %v823 = vadd.f32 %v822, %v760
  %v824 = vadd.f32 %v823, %v761
  %v825 = vadd.f32 %v824, %v762
  %v826 = vadd.f32 %v825, %v763
  %v827 = vadd.f32 %v826, %v764
  %v828 = vadd.f32 %v827, %v765
  %v829 = vadd.f32 %v828, %v766
  %v830 = vadd.f32 %v829, %v767
  %v831 = vadd.f32 %v830, %v768
  %v832 = vadd.f32 %v831, %v769
  %v833 = vadd.f32 %v832, %v770
  %v834 = vadd.f32 %v833, %v771
  %v835 = vadd.f32 %v834, %v772
  %v836 = vadd.f32 %v835, %v773
  %v837 = vadd.f32 %v836, %v774
  %v838 = vadd.f32 %v837, %v775
  %v839 = vadd.f32 %v838, %v776
  %v840 = vadd.f32 %v839, %v777
  %v841 = vadd.f32 %v840, %v778
  %v842 = vadd.f32 %v841, %v779
  %v843 = vadd.f32 %v842, %v780
  %v844 = vadd.f32 %v843, %v781
  %v845 = vadd.f32 %v844, %v782
  %v846 = vadd.f32 %v845, %v783
  %v847 = vadd.f32 %v846, %v784
  %v848 = vadd.f32 %v847, %v785
  %v849 = vadd.f32 %v848, %v786
  %v850 = vadd.f32 %v849, %v787
  %v851 = vadd.f32 %v850, %v788
  %v852 = vadd.f32 %v851, %v789
  %v853 = vadd.f32 %v852, %v790
  %v854 = vadd.f32 %v853, %v791
  %v855 = vadd.f32 %v854, %v792
  %v856 = vadd.f32 %v855, %v793
  %v857 = vadd.f32 %v856, %v794
  %v858 = vadd.f32 %v857, %v795
  %v859 = vadd.f32 %v858, %v796
  %v860 = vadd.f32 %v859, %v797
  %v861 = vadd.f32 %v860, %v798
  %v862 = vadd.f32 %v861, %v799
  %v863 = vadd.f32 %v862, %v800
  %v864 = vadd.f32 %v863, %v801
  %v865 = vadd.f32 %v864, %v802
  %v866 = vadd.f32 %v865, %v803
  %v867 = vadd.f32 %v866, %v804
  %v868 = vadd.f32 %v867, %v805
  %v869 = vadd.f32 %v868, %v806
  %v870 = vadd.f32 %v869, %v807
  %v871 = vadd.f32 %v870, %v808
  %v872 = vadd.f32 %v871, %v809
  %v873 = vadd.f32 %v872, %v810
  %v874 = vadd.f32 %v873, %v811
  %v875 = vadd.f32 %v874, %v812
  %v876 = vadd.f32 %v875, %v813
  %v877 = vadd.f32 %v876, %v814
  %v878 = vadd.f32 %v877, %v815
  %v879 = vadd.f32 %v878, %v816
  %v880 = vadd.f32 %v879, %v817
  %v881 = vadd.f32 %v880, %v818
  %v882 = vadd.f32 %v881, %v819
  %v883 = vadd.f32 %v882, %v820
  %v884 = vadd.f32 %v883, %v821
  %v885 = vrot.slane %v884, 4
  %v886 = vadd.f32 %v884, %v885
  %v887 = vrot.slane %v886, 2
  %v888 = vadd.f32 %v886, %v887
  %v889 = vrot.slane %v888, 1
  %v890 = vadd.f32 %v888, %v889
  %891 = vst [vmem:[%s4] sm:$0x1] %v890
  // Predicated region
  $region10: #{scdown_forward.2} parent=0 // pred_check
    _
  $region11: #{scdown_forward.2} parent=0 // pred_check_branch
    %893 = sbr.rel (0) target = $region13
  $region12: #{scdown_forward.2} parent=0 // pred_region
    _
  $region13: #{scdown_forward.2} parent=0 // pred_fallthru
    _
  // Predicated region
  $region14: #{scdown_forward.2} parent=0 // pred_check
    _
  $region15: #{scdown_forward.2} parent=0 // pred_check_branch
    %895 = sbr.rel (0) target = $region17
  $region16: #{scdown_forward.2} parent=0 // pred_region
    _
  $region17: #{scdown_forward.2} parent=0 // pred_fallthru
    _
  // Predicated region
  $region18: #{scdown_forward.2} parent=0 // pred_check
    _
  $region19: #{scdown_forward.2} parent=0 // pred_check_branch
    %897 = sbr.rel (0) target = $region21
  $region20: #{scdown_forward.2} parent=0 // pred_region
    _
  $region21: #{scdown_forward.2} parent=0 // pred_fallthru
    _
  // Predicated region
  $region22: #{scdown_forward.2} parent=0 // pred_check
    _
  $region23: #{scdown_forward.2} parent=0 // pred_check_branch
    %899 = sbr.rel (0) target = $region25
  $region24: #{scdown_forward.2} parent=0 // pred_region
    _
  $region25: #{scdown_forward.2} parent=0 // pred_fallthru
    _
  // Predicated region
  $region26: #{scdown_forward.2} parent=0 // pred_check
    _
  $region27: #{scdown_forward.2} parent=0 // pred_check_branch
    %901 = sbr.rel (0) target = $region29
  $region28: #{scdown_forward.2} parent=0 // pred_region
    _
  $region29: #{scdown_forward.2} parent=0 // pred_fallthru
    _
  // Predicated region
  $region30: #{scdown_forward.2} parent=0 // pred_check
    _
  $region31: #{scdown_forward.2} parent=0 // pred_check_branch
    %903 = sbr.rel (0) target = $region33
  $region32: #{scdown_forward.2} parent=0 // pred_region
    _
  $region33: #{scdown_forward.2} parent=0 // pred_fallthru
    _

// kernel: scdown_forward.3
$region0: #{scdown_forward.3}
  #allocation0 [shape = 'u32[]', space=smem, size = 0x4, offset = 0x4, fixed_abs, tag = 'smem constant byte address 0x4 - core index']
  #allocation1 [shape = 'u32[144,128]{1,0:T(1,128)}', space=vmem, size = 0x12000, scoped, tag = 'internal scratch']
  #allocation2 [shape = 'f32[9,9,128]{2,1,0:T(8,128)}', space=vmem, size = 0x12000, scoped, tag = 'scratch operand']
  %s0 = inlined_call_operand.vmem [shape: f32[2,8,2,8,256], index: 0, kind: input, shape index: {}, may-alias: {0,1,2,3}]
  %s1 = inlined_call_operand.vmem [shape: f32[2,8,2,8,256], index: 1, kind: input, shape index: {}, may-alias: {0,1,2,3}]
  %s2 = inlined_call_operand.vmem [shape: f32[2,8,2,8,256], index: 2, kind: input, shape index: {}, may-alias: {0,1,2,3}]
  %s3 = inlined_call_operand.vmem [shape: f32[2,8,2,8,256], index: 3, kind: input, shape index: {}, may-alias: {0,1,2,3}]
  %s4 = inlined_call_operand.vmem [shape: f32[1,128], index: 4, kind: input, shape index: {}]
  %s5 = inlined_call_operand.vmem [shape: f32[1,128], index: 5, kind: input, shape index: {}]
  %s6 = inlined_call_operand.vmem [shape: f32[9,1,128], index: 6, kind: input, shape index: {}]
  %s7 = inlined_call_operand.vmem [shape: f32[2,8,8,128], index: 7, kind: output, shape index: {0}]
  %s8 = inlined_call_operand.vmem [shape: f32[2,1,1,128], index: 8, kind: output, shape index: {1}]
  %s9 = inlined_call_operand.vmem [shape: f32[2,1,1,128], index: 9, kind: output, shape index: {2}]
  %10 = xla_tuple %s7, %s8, %s9
  %s11 = sld [smem:[#allocation0]]
  $region153: #{scdown_forward.3} parent=0
    _
  %s13 = ssub.s32 1, %s11
  %s14 = scalar_select 0, %s13, %s11
  $region1: #{scdown_forward.3} parent=0
    #allocation3 [shape = 'u8[131072]{0}', space=vmem, size = 0x20000, scoped, tag = 'input window, operand 0']
    #allocation4 [shape = 'u8[131072]{0}', space=vmem, size = 0x20000, scoped, tag = 'input window, operand 1']
    loop: start=0, step=1, limit=4
    $region2: #{scdown_forward.3} parent=1 // loop_pre_header
      _
    $region3: #{scdown_forward.3} parent=1 // loop_header
      %s16 = sphi 0, %s20
      %p17 = scmp.ge.s32.totalorder %s16, 4
      %s23 = sphi 0, %s42
      %s24 = sphi 0, %s38
      %s25 = sphi 0, %s34
      %s26 = sphi 0, %s23
      %s27 = sphi 0, %s24
      %s28 = sphi 0, %s25
      %s29 = sphi 0, %s26
      %s30 = sphi 0, %s27
      %s31 = sphi 0, %s28
      %s49 = sphi 0, %s51
      %s52 = sphi 0, %s49
      %s53 = sphi 0, %s52
      %s69 = sphi 0, %s53
      %s81 = sphi 0, %s83
      %s84 = sphi 0, %s81
      %s85 = sphi 0, %s84
      %s101 = sphi 0, %s85
      %s119 = sphi 0, %s121
      %s122 = sphi 0, %s119
      %s123 = sphi 0, %s122
      %s139 = sphi 0, %s123
      %s159 = sphi 0, %s161
      %s162 = sphi 0, %s159
      %s163 = sphi 0, %s162
      %s179 = sphi 0, %s163
      %s185 = sphi 0, %s187
      %s188 = sphi 0, %s185
      %s189 = sphi 0, %s188
      %s205 = sphi 0, %s189
      %s211 = sphi 0, %s213
      %s214 = sphi 0, %s211
      %s215 = sphi 0, %s214
      %s231 = sphi 0, %s215
      %s237 = sphi 0, %s239
      %s240 = sphi 0, %s237
      %s241 = sphi 0, %s240
      %s257 = sphi 0, %s241
      %s267 = sphi 0, %s269
      %s270 = sphi 0, %s267
      %s271 = sphi 0, %s270
      %s287 = sphi 0, %s271
      %s297 = sphi 0, %s299
      %s300 = sphi 0, %s297
      %s301 = sphi 0, %s300
      %s317 = sphi 0, %s301
      %s327 = sphi 0, %s329
      %s330 = sphi 0, %s327
      %s331 = sphi 0, %s330
      %s347 = sphi 0, %s331
    $region4: #{scdown_forward.3} parent=1 // loop_header_branch
      %19 = sbr.rel (%p17) target = $region8
    $region5: #{scdown_forward.3} parent=1 // loop_body
      %s21 = ssub.s32 %s16, 1
      %s22 = ssub.s32 %s16, 2
      %s32 = sadd.s32 1, %s25
      %p33 = scmp.ge.s32.totalorder %s32, 1
      %s34 = scalar_select %p33, 0, %s32
      %s35 = sadd.s32 1, %s24
      %s36 = scalar_select %p33, %s35, %s24
      %p37 = scmp.ge.s32.totalorder %s36, 1
      %s38 = scalar_select %p37, 0, %s36
      %s39 = sadd.s32 1, %s23
      %s40 = scalar_select %p37, %s39, %s23
      %p41 = scmp.ge.s32.totalorder %s40, 2
      %s42 = scalar_select %p41, 0, %s40
      %s43 = ssub.s32 %s23, %s42
      %s44 = ssub.s32 %s24, %s38
      %s45 = sor.u32 %s43, %s44
      %s46 = ssub.s32 %s25, %s34
      %s47 = sor.u32 %s45, %s46
      %p48 = scmp.eq.s32.totalorder %s47, 0
      %s50 = sadd.s32 %s49, 1
      %s51 = scalar_select %p48, %s49, %s50
      %p54 = pneg %p48
      %p55 = scmp.eq.s32.totalorder %s16, 1
      %p56 = por %p54, %p55
      %p57 = scmp.ne.s32.totalorder %s49, %s52
      %p58 = scmp.eq.s32.totalorder %s16, 0
      %p59 = por %p57, %p58
      %p60 = scmp.ne.s32.totalorder %s49, %s52
      %p61 = scmp.eq.s32.totalorder %s21, 1
      %p62 = por %p60, %p61
      %p63 = scmp.ne.s32.totalorder %s52, %s53
      %p64 = scmp.eq.s32.totalorder %s21, 0
      %p65 = por %p63, %p64
      %p66 = scmp.ne.s32.totalorder %s52, %s53
      %p67 = scmp.eq.s32.totalorder %s22, 1
      %p68 = por %p66, %p67
      %p70 = scmp.ne.s32.totalorder %s53, %s69
      %p71 = scmp.eq.s32.totalorder %s22, 0
      %p72 = por %p70, %p71
      %s73 = sadd.s32 %s25, 1
      %s74 = sadd.s32 %s34, 1
      %s75 = ssub.s32 %s23, %s42
      %s76 = ssub.s32 %s24, %s38
      %s77 = sor.u32 %s75, %s76
      %s78 = ssub.s32 %s73, %s74
      %s79 = sor.u32 %s77, %s78
      %p80 = scmp.eq.s32.totalorder %s79, 0
      %s82 = sadd.s32 %s81, 1
      %s83 = scalar_select %p80, %s81, %s82
      %p86 = pneg %p80
      %p87 = scmp.eq.s32.totalorder %s16, 1
      %p88 = por %p86, %p87
      %p89 = scmp.ne.s32.totalorder %s81, %s84
      %p90 = scmp.eq.s32.totalorder %s16, 0
      %p91 = por %p89, %p90
      %p92 = scmp.ne.s32.totalorder %s81, %s84
      %p93 = scmp.eq.s32.totalorder %s21, 1
      %p94 = por %p92, %p93
      %p95 = scmp.ne.s32.totalorder %s84, %s85
      %p96 = scmp.eq.s32.totalorder %s21, 0
      %p97 = por %p95, %p96
      %p98 = scmp.ne.s32.totalorder %s84, %s85
      %p99 = scmp.eq.s32.totalorder %s22, 1
      %p100 = por %p98, %p99
      %p102 = scmp.ne.s32.totalorder %s85, %s101
      %p103 = scmp.eq.s32.totalorder %s22, 0
      %p104 = por %p102, %p103
      %s105 = smul.u32 %s24, 8
      %s106 = ssub.s32 %s105, 1
      %p107 = scmp.gt.s32.totalorder %s106, 0
      %s108 = scalar_select %p107, %s106, 0
      %s109 = smul.u32 %s38, 8
      %s110 = ssub.s32 %s109, 1
      %p111 = scmp.gt.s32.totalorder %s110, 0
      %s112 = scalar_select %p111, %s110, 0
      %s113 = ssub.s32 %s23, %s42
      %s114 = ssub.s32 %s108, %s112
      %s115 = sor.u32 %s113, %s114
      %s116 = ssub.s32 %s25, %s34
      %s117 = sor.u32 %s115, %s116
      %p118 = scmp.eq.s32.totalorder %s117, 0
      %s120 = sadd.s32 %s119, 1
      %s121 = scalar_select %p118, %s119, %s120
      %p124 = pneg %p118
      %p125 = scmp.eq.s32.totalorder %s16, 1
      %p126 = por %p124, %p125
      %p127 = scmp.ne.s32.totalorder %s119, %s122
      %p128 = scmp.eq.s32.totalorder %s16, 0
      %p129 = por %p127, %p128
      %p130 = scmp.ne.s32.totalorder %s119, %s122
      %p131 = scmp.eq.s32.totalorder %s21, 1
      %p132 = por %p130, %p131
      %p133 = scmp.ne.s32.totalorder %s122, %s123
      %p134 = scmp.eq.s32.totalorder %s21, 0
      %p135 = por %p133, %p134
      %p136 = scmp.ne.s32.totalorder %s122, %s123
      %p137 = scmp.eq.s32.totalorder %s22, 1
      %p138 = por %p136, %p137
      %p140 = scmp.ne.s32.totalorder %s123, %s139
      %p141 = scmp.eq.s32.totalorder %s22, 0
      %p142 = por %p140, %p141
      %s143 = smul.u32 %s24, 8
      %s144 = ssub.s32 %s143, 1
      %p145 = scmp.gt.s32.totalorder %s144, 0
      %s146 = scalar_select %p145, %s144, 0
      %s147 = sadd.s32 %s25, 1
      %s148 = smul.u32 %s38, 8
      %s149 = ssub.s32 %s148, 1
      %p150 = scmp.gt.s32.totalorder %s149, 0
      %s151 = scalar_select %p150, %s149, 0
      %s152 = sadd.s32 %s34, 1
      %s153 = ssub.s32 %s23, %s42
      %s154 = ssub.s32 %s146, %s151
      %s155 = sor.u32 %s153, %s154
      %s156 = ssub.s32 %s147, %s152
      %s157 = sor.u32 %s155, %s156
      %p158 = scmp.eq.s32.totalorder %s157, 0
      %s160 = sadd.s32 %s159, 1
      %s161 = scalar_select %p158, %s159, %s160
      %p164 = pneg %p158
      %p165 = scmp.eq.s32.totalorder %s16, 1
      %p166 = por %p164, %p165
      %p167 = scmp.ne.s32.totalorder %s159, %s162
      %p168 = scmp.eq.s32.totalorder %s16, 0
      %p169 = por %p167, %p168
      %p170 = scmp.ne.s32.totalorder %s159, %s162
      %p171 = scmp.eq.s32.totalorder %s21, 1
      %p172 = por %p170, %p171
      %p173 = scmp.ne.s32.totalorder %s162, %s163
      %p174 = scmp.eq.s32.totalorder %s21, 0
      %p175 = por %p173, %p174
      %p176 = scmp.ne.s32.totalorder %s162, %s163
      %p177 = scmp.eq.s32.totalorder %s22, 1
      %p178 = por %p176, %p177
      %p180 = scmp.ne.s32.totalorder %s163, %s179
      %p181 = scmp.eq.s32.totalorder %s22, 0
      %p182 = por %p180, %p181
      %s183 = ssub.s32 %s25, %s34
      %p184 = scmp.eq.s32.totalorder %s183, 0
      %s186 = sadd.s32 %s185, 1
      %s187 = scalar_select %p184, %s185, %s186
      %p190 = pneg %p184
      %p191 = scmp.eq.s32.totalorder %s16, 1
      %p192 = por %p190, %p191
      %p193 = scmp.ne.s32.totalorder %s185, %s188
      %p194 = scmp.eq.s32.totalorder %s16, 0
      %p195 = por %p193, %p194
      %p196 = scmp.ne.s32.totalorder %s185, %s188
      %p197 = scmp.eq.s32.totalorder %s21, 1
      %p198 = por %p196, %p197
      %p199 = scmp.ne.s32.totalorder %s188, %s189
      %p200 = scmp.eq.s32.totalorder %s21, 0
      %p201 = por %p199, %p200
      %p202 = scmp.ne.s32.totalorder %s188, %s189
      %p203 = scmp.eq.s32.totalorder %s22, 1
      %p204 = por %p202, %p203
      %p206 = scmp.ne.s32.totalorder %s189, %s205
      %p207 = scmp.eq.s32.totalorder %s22, 0
      %p208 = por %p206, %p207
      %s209 = ssub.s32 %s25, %s34
      %p210 = scmp.eq.s32.totalorder %s209, 0
      %s212 = sadd.s32 %s211, 1
      %s213 = scalar_select %p210, %s211, %s212
      %p216 = pneg %p210
      %p217 = scmp.eq.s32.totalorder %s16, 1
      %p218 = por %p216, %p217
      %p219 = scmp.ne.s32.totalorder %s211, %s214
      %p220 = scmp.eq.s32.totalorder %s16, 0
      %p221 = por %p219, %p220
      %p222 = scmp.ne.s32.totalorder %s211, %s214
      %p223 = scmp.eq.s32.totalorder %s21, 1
      %p224 = por %p222, %p223
      %p225 = scmp.ne.s32.totalorder %s214, %s215
      %p226 = scmp.eq.s32.totalorder %s21, 0
      %p227 = por %p225, %p226
      %p228 = scmp.ne.s32.totalorder %s214, %s215
      %p229 = scmp.eq.s32.totalorder %s22, 1
      %p230 = por %p228, %p229
      %p232 = scmp.ne.s32.totalorder %s215, %s231
      %p233 = scmp.eq.s32.totalorder %s22, 0
      %p234 = por %p232, %p233
      %s235 = ssub.s32 %s25, %s34
      %p236 = scmp.eq.s32.totalorder %s235, 0
      %s238 = sadd.s32 %s237, 1
      %s239 = scalar_select %p236, %s237, %s238
      %p242 = pneg %p236
      %p243 = scmp.eq.s32.totalorder %s16, 1
      %p244 = por %p242, %p243
      %p245 = scmp.ne.s32.totalorder %s237, %s240
      %p246 = scmp.eq.s32.totalorder %s16, 0
      %p247 = por %p245, %p246
      %p248 = scmp.ne.s32.totalorder %s237, %s240
      %p249 = scmp.eq.s32.totalorder %s21, 1
      %p250 = por %p248, %p249
      %p251 = scmp.ne.s32.totalorder %s240, %s241
      %p252 = scmp.eq.s32.totalorder %s21, 0
      %p253 = por %p251, %p252
      %p254 = scmp.ne.s32.totalorder %s240, %s241
      %p255 = scmp.eq.s32.totalorder %s22, 1
      %p256 = por %p254, %p255
      %p258 = scmp.ne.s32.totalorder %s241, %s257
      %p259 = scmp.eq.s32.totalorder %s22, 0
      %p260 = por %p258, %p259
      %s261 = ssub.s32 %s23, %s42
      %s262 = ssub.s32 %s24, %s38
      %s263 = sor.u32 %s261, %s262
      %s264 = ssub.s32 %s25, %s34
      %s265 = sor.u32 %s263, %s264
      %p266 = scmp.eq.s32.totalorder %s265, 0
      %s268 = sadd.s32 %s267, 1
      %s269 = scalar_select %p266, %s267, %s268
      %p272 = pneg %p266
      %p273 = scmp.eq.s32.totalorder %s16, 1
      %p274 = por %p272, %p273
      %p275 = scmp.ne.s32.totalorder %s267, %s270
      %p276 = scmp.eq.s32.totalorder %s16, 0
      %p277 = por %p275, %p276
      %p278 = scmp.ne.s32.totalorder %s267, %s270
      %p279 = scmp.eq.s32.totalorder %s21, 1
      %p280 = por %p278, %p279
      %p281 = scmp.ne.s32.totalorder %s270, %s271
      %p282 = scmp.eq.s32.totalorder %s21, 0
      %p283 = por %p281, %p282
      %p284 = scmp.ne.s32.totalorder %s270, %s271
      %p285 = scmp.eq.s32.totalorder %s22, 1
      %p286 = por %p284, %p285
      %p288 = scmp.ne.s32.totalorder %s271, %s287
      %p289 = scmp.eq.s32.totalorder %s22, 0
      %p290 = por %p288, %p289
      %s291 = ssub.s32 %s23, %s42
      %s292 = ssub.s32 %s24, %s38
      %s293 = sor.u32 %s291, %s292
      %s294 = ssub.s32 %s25, %s34
      %s295 = sor.u32 %s293, %s294
      %p296 = scmp.eq.s32.totalorder %s295, 0
      %s298 = sadd.s32 %s297, 1
      %s299 = scalar_select %p296, %s297, %s298
      %p302 = pneg %p296
      %p303 = scmp.eq.s32.totalorder %s16, 1
      %p304 = por %p302, %p303
      %p305 = scmp.ne.s32.totalorder %s297, %s300
      %p306 = scmp.eq.s32.totalorder %s16, 0
      %p307 = por %p305, %p306
      %p308 = scmp.ne.s32.totalorder %s297, %s300
      %p309 = scmp.eq.s32.totalorder %s21, 1
      %p310 = por %p308, %p309
      %p311 = scmp.ne.s32.totalorder %s300, %s301
      %p312 = scmp.eq.s32.totalorder %s21, 0
      %p313 = por %p311, %p312
      %p314 = scmp.ne.s32.totalorder %s300, %s301
      %p315 = scmp.eq.s32.totalorder %s22, 1
      %p316 = por %p314, %p315
      %p318 = scmp.ne.s32.totalorder %s301, %s317
      %p319 = scmp.eq.s32.totalorder %s22, 0
      %p320 = por %p318, %p319
      %s321 = ssub.s32 %s23, %s42
      %s322 = ssub.s32 %s24, %s38
      %s323 = sor.u32 %s321, %s322
      %s324 = ssub.s32 %s25, %s34
      %s325 = sor.u32 %s323, %s324
      %p326 = scmp.eq.s32.totalorder %s325, 0
      %s328 = sadd.s32 %s327, 1
      %s329 = scalar_select %p326, %s327, %s328
      %p332 = pneg %p326
      %p333 = scmp.eq.s32.totalorder %s16, 1
      %p334 = por %p332, %p333
      %p335 = scmp.ne.s32.totalorder %s327, %s330
      %p336 = scmp.eq.s32.totalorder %s16, 0
      %p337 = por %p335, %p336
      %p338 = scmp.ne.s32.totalorder %s327, %s330
      %p339 = scmp.eq.s32.totalorder %s21, 1
      %p340 = por %p338, %p339
      %p341 = scmp.ne.s32.totalorder %s330, %s331
      %p342 = scmp.eq.s32.totalorder %s21, 0
      %p343 = por %p341, %p342
      %p344 = scmp.ne.s32.totalorder %s330, %s331
      %p345 = scmp.eq.s32.totalorder %s22, 1
      %p346 = por %p344, %p345
      %p348 = scmp.ne.s32.totalorder %s331, %s347
      %p349 = scmp.eq.s32.totalorder %s22, 0
      %p350 = por %p348, %p349
      %p351 = scmp.le.s32.totalorder 1, %s16
      %p352 = scmp.lt.s32.totalorder %s16, 3
      %p353 = pnand %p351, %p352
      %p354 = pneg %p353
      // Predicated region
      $region9: #{scdown_forward.3} parent=5 // pred_check
        _
      $region10: #{scdown_forward.3} parent=5 // pred_check_branch
        %356 = sbr.rel (%p353) target = $region12
      $region11: #{scdown_forward.3} parent=5 // pred_region
        %s357 = ssub.s32 %s16, 1
        // Predicated region
        $region13: #{scdown_forward.3} parent=11 // pred_check
          %p358 = pneg %p201
        $region14: #{scdown_forward.3} parent=11 // pred_check_branch
          %360 = sbr.rel (%p358) target = $region16
        $region15: #{scdown_forward.3} parent=11 // pred_region
          %p361 = scmp.lt.s32.totalorder %s28, 0
          %s362 = scalar_select %p361, %s28, 0
          %s363 = scalar_lea.vmem %s4, %s362
        $region16: #{scdown_forward.3} parent=11 // pred_fallthru
          _
        // Predicated region
        $region17: #{scdown_forward.3} parent=11 // pred_check
          %p364 = pneg %p227
        $region18: #{scdown_forward.3} parent=11 // pred_check_branch
          %366 = sbr.rel (%p364) target = $region20
        $region19: #{scdown_forward.3} parent=11 // pred_region
          %p367 = scmp.lt.s32.totalorder %s28, 0
          %s368 = scalar_select %p367, %s28, 0
          %s369 = scalar_lea.vmem %s5, %s368
        $region20: #{scdown_forward.3} parent=11 // pred_fallthru
          _
        // Predicated region
        $region21: #{scdown_forward.3} parent=11 // pred_check
          %p370 = pneg %p253
        $region22: #{scdown_forward.3} parent=11 // pred_check_branch
          %372 = sbr.rel (%p370) target = $region24
        $region23: #{scdown_forward.3} parent=11 // pred_region
          %p373 = scmp.lt.s32.totalorder %s28, 0
          %s374 = scalar_select %p373, %s28, 0
          %s375 = scalar_lea.vmem %s6, %s374
        $region24: #{scdown_forward.3} parent=11 // pred_fallthru
          _
      $region12: #{scdown_forward.3} parent=5 // pred_fallthru
        _
      %p376 = scmp.lt.s32.totalorder %s16, 2
      // Predicated region
      $region25: #{scdown_forward.3} parent=5 // pred_check
        %p377 = pneg %p376
      $region26: #{scdown_forward.3} parent=5 // pred_check_branch
        %379 = sbr.rel (%p377) target = $region28
      $region27: #{scdown_forward.3} parent=5 // pred_region
        // Predicated region
        $region29: #{scdown_forward.3} parent=27 // pred_check
          %p380 = pneg %p59
        $region30: #{scdown_forward.3} parent=27 // pred_check_branch
          %382 = sbr.rel (%p380) target = $region32
        $region31: #{scdown_forward.3} parent=27 // pred_region
          %s383 = sand.u32 %s49, 1
          %s384 = sand.u32 %s49, 1
          %s385 = smul.addr %s384, 128
          %s386 = scalar_lea.vmem [#allocation3], %s385
          %s387 = smul.u32 8, %s24
          %s388 = smul.addr %s387, 4
          %s389 = sadd.s32 %s25, %s388
          %s390 = smul.addr %s23, 32
          %s391 = sadd.s32 %s389, %s390
          %s392 = smul.addr %s391, 8
          %s393 = scalar_lea.vmem %s0, %s392
          // Predicated region
          $region33: #{scdown_forward.3} parent=31 // pred_check
            _
          $region34: #{scdown_forward.3} parent=31 // pred_check_branch
            %395 = sbr.rel (0) target = $region36
          $region35: #{scdown_forward.3} parent=31 // pred_region
            // Predicated region
            $region37: #{scdown_forward.3} parent=35 // pred_check
              _
            $region38: #{scdown_forward.3} parent=35 // pred_check_branch
              %397 = sbr.rel (0) target = $region40
            $region39: #{scdown_forward.3} parent=35 // pred_region
              // Predicated region
              $region52: #{scdown_forward.3} parent=39 // pred_check
                _
              $region53: #{scdown_forward.3} parent=39 // pred_check_branch
                %442 = sbr.rel (0) target = $region55
              $region54: #{scdown_forward.3} parent=39 // pred_region
                loop: start=0, step=1, limit=1
                $region56: #{scdown_forward.3} parent=54 // loop_pre_header
                  _
                $region57: #{scdown_forward.3} parent=54 // loop_header
                  %s444 = sphi 0, %s448
                  %p445 = scmp.ge.s32.totalorder %s444, 1
                  %s449 = sphi %s393, %s393
                  %s450 = sphi %s386, %s386
                $region58: #{scdown_forward.3} parent=54 // loop_header_branch
                  %447 = sbr.rel (%p445) target = $region62
                $region59: #{scdown_forward.3} parent=54 // loop_body
                  %v451 = vld [vmem:[%s449] sm:$0xff]
                  %452 = vst [vmem:[%s450] sm:$0xff] %v451
                  %v453 = vld [vmem:[%s449 + $0x10] sm:$0xff]
                  %454 = vst [vmem:[%s450 + $0x8] sm:$0xff] %v453
                  %v455 = vld [vmem:[%s449 + $0x20] sm:$0xff]
                  %456 = vst [vmem:[%s450 + $0x10] sm:$0xff] %v455
                  %v457 = vld [vmem:[%s449 + $0x30] sm:$0xff]
                  %458 = vst [vmem:[%s450 + $0x18] sm:$0xff] %v457
                  %v459 = vld [vmem:[%s449 + $0x40] sm:$0xff]
                  %460 = vst [vmem:[%s450 + $0x20] sm:$0xff] %v459
                  %v461 = vld [vmem:[%s449 + $0x50] sm:$0xff]
                  %462 = vst [vmem:[%s450 + $0x28] sm:$0xff] %v461
                  %v463 = vld [vmem:[%s449 + $0x60] sm:$0xff]
                  %464 = vst [vmem:[%s450 + $0x30] sm:$0xff] %v463
                  %v465 = vld [vmem:[%s449 + $0x70] sm:$0xff]
                  %466 = vst [vmem:[%s450 + $0x38] sm:$0xff] %v465
                  %v467 = vld [vmem:[%s449 + $0x80] sm:$0xff]
                  %468 = vst [vmem:[%s450 + $0x40] sm:$0xff] %v467
                  %v469 = vld [vmem:[%s449 + $0x90] sm:$0xff]
                  %470 = vst [vmem:[%s450 + $0x48] sm:$0xff] %v469
                  %v471 = vld [vmem:[%s449 + $0xa0] sm:$0xff]
                  %472 = vst [vmem:[%s450 + $0x50] sm:$0xff] %v471
                  %v473 = vld [vmem:[%s449 + $0xb0] sm:$0xff]
                  %474 = vst [vmem:[%s450 + $0x58] sm:$0xff] %v473
                  %v475 = vld [vmem:[%s449 + $0xc0] sm:$0xff]
                  %476 = vst [vmem:[%s450 + $0x60] sm:$0xff] %v475
                  %v477 = vld [vmem:[%s449 + $0xd0] sm:$0xff]
                  %478 = vst [vmem:[%s450 + $0x68] sm:$0xff] %v477
                  %v479 = vld [vmem:[%s449 + $0xe0] sm:$0xff]
                  %480 = vst [vmem:[%s450 + $0x70] sm:$0xff] %v479
                  %v481 = vld [vmem:[%s449 + $0xf0] sm:$0xff]
                  %482 = vst [vmem:[%s450 + $0x78] sm:$0xff] %v481
                $region60: #{scdown_forward.3} parent=54 // loop_footer
                  %s448 = sadd.s32 1, %s444
                $region61: #{scdown_forward.3} parent=54 // loop_footer_branch
                  %443 = sbr.rel target = $region57
                $region62: #{scdown_forward.3} parent=54 // loop_exit
                  _
              $region55: #{scdown_forward.3} parent=39 // pred_fallthru
                _
              // Predicated region
              $region63: #{scdown_forward.3} parent=39 // pred_check
                _
              $region64: #{scdown_forward.3} parent=39 // pred_check_branch
                %484 = sbr.rel target = $region66
              $region65: #{scdown_forward.3} parent=39 // pred_region
                _
              $region66: #{scdown_forward.3} parent=39 // pred_fallthru
                _
            $region40: #{scdown_forward.3} parent=35 // pred_fallthru
              _
            // Predicated region
            $region41: #{scdown_forward.3} parent=35 // pred_check
              _
            $region42: #{scdown_forward.3} parent=35 // pred_check_branch
              %399 = sbr.rel target = $region44
            $region43: #{scdown_forward.3} parent=35 // pred_region
              loop: start=0, step=1, limit=1
              $region45: #{scdown_forward.3} parent=43 // loop_pre_header
                _
              $region46: #{scdown_forward.3} parent=43 // loop_header
                %s402 = sphi 0, %s406
                %p403 = scmp.ge.s32.totalorder %s402, 1
                %s407 = sphi %s393, %s393
                %s408 = sphi %s386, %s386
              $region47: #{scdown_forward.3} parent=43 // loop_header_branch
                %405 = sbr.rel (%p403) target = $region51
              $region48: #{scdown_forward.3} parent=43 // loop_body
                %v409 = vld [vmem:[%s407] sm:$0xff]
                %410 = vst [vmem:[%s408] sm:$0xff] %v409
                %v411 = vld [vmem:[%s407 + $0x10] sm:$0xff]
                %412 = vst [vmem:[%s408 + $0x8] sm:$0xff] %v411
                %v413 = vld [vmem:[%s407 + $0x20] sm:$0xff]
                %414 = vst [vmem:[%s408 + $0x10] sm:$0xff] %v413
                %v415 = vld [vmem:[%s407 + $0x30] sm:$0xff]
                %416 = vst [vmem:[%s408 + $0x18] sm:$0xff] %v415
                %v417 = vld [vmem:[%s407 + $0x40] sm:$0xff]
                %418 = vst [vmem:[%s408 + $0x20] sm:$0xff] %v417
                %v419 = vld [vmem:[%s407 + $0x50] sm:$0xff]
                %420 = vst [vmem:[%s408 + $0x28] sm:$0xff] %v419
                %v421 = vld [vmem:[%s407 + $0x60] sm:$0xff]
                %422 = vst [vmem:[%s408 + $0x30] sm:$0xff] %v421
                %v423 = vld [vmem:[%s407 + $0x70] sm:$0xff]
                %424 = vst [vmem:[%s408 + $0x38] sm:$0xff] %v423
                %v425 = vld [vmem:[%s407 + $0x80] sm:$0xff]
                %426 = vst [vmem:[%s408 + $0x40] sm:$0xff] %v425
                %v427 = vld [vmem:[%s407 + $0x90] sm:$0xff]
                %428 = vst [vmem:[%s408 + $0x48] sm:$0xff] %v427
                %v429 = vld [vmem:[%s407 + $0xa0] sm:$0xff]
                %430 = vst [vmem:[%s408 + $0x50] sm:$0xff] %v429
                %v431 = vld [vmem:[%s407 + $0xb0] sm:$0xff]
                %432 = vst [vmem:[%s408 + $0x58] sm:$0xff] %v431
                %v433 = vld [vmem:[%s407 + $0xc0] sm:$0xff]
                %434 = vst [vmem:[%s408 + $0x60] sm:$0xff] %v433
                %v435 = vld [vmem:[%s407 + $0xd0] sm:$0xff]
                %436 = vst [vmem:[%s408 + $0x68] sm:$0xff] %v435
                %v437 = vld [vmem:[%s407 + $0xe0] sm:$0xff]
                %438 = vst [vmem:[%s408 + $0x70] sm:$0xff] %v437
                %v439 = vld [vmem:[%s407 + $0xf0] sm:$0xff]
                %440 = vst [vmem:[%s408 + $0x78] sm:$0xff] %v439
              $region49: #{scdown_forward.3} parent=43 // loop_footer
                %s406 = sadd.s32 1, %s402
              $region50: #{scdown_forward.3} parent=43 // loop_footer_branch
                %401 = sbr.rel target = $region46
              $region51: #{scdown_forward.3} parent=43 // loop_exit
                _
            $region44: #{scdown_forward.3} parent=35 // pred_fallthru
              _
          $region36: #{scdown_forward.3} parent=31 // pred_fallthru
            _
          %485 = vnop
        $region32: #{scdown_forward.3} parent=27 // pred_fallthru
          _
        // Predicated region
        $region67: #{scdown_forward.3} parent=27 // pred_check
          %p486 = pneg %p91
        $region68: #{scdown_forward.3} parent=27 // pred_check_branch
          %488 = sbr.rel (%p486) target = $region70
        $region69: #{scdown_forward.3} parent=27 // pred_region
          %s489 = sand.u32 %s81, 1
          %s490 = sand.u32 %s81, 1
          %s491 = smul.addr %s490, 128
          %s492 = scalar_lea.vmem [#allocation4], %s491
          %s493 = sadd.s32 %s25, 1
          %s494 = smul.u32 8, %s24
          %s495 = smul.addr %s494, 4
          %s496 = sadd.s32 %s493, %s495
          %s497 = smul.addr %s23, 32
          %s498 = sadd.s32 %s496, %s497
          %s499 = smul.addr %s498, 8
          %s500 = scalar_lea.vmem %s1, %s499
          // Predicated region
          $region71: #{scdown_forward.3} parent=69 // pred_check
            _
          $region72: #{scdown_forward.3} parent=69 // pred_check_branch
            %502 = sbr.rel (0) target = $region74
          $region73: #{scdown_forward.3} parent=69 // pred_region
            // Predicated region
            $region75: #{scdown_forward.3} parent=73 // pred_check
              _
            $region76: #{scdown_forward.3} parent=73 // pred_check_branch
              %504 = sbr.rel (0) target = $region78
            $region77: #{scdown_forward.3} parent=73 // pred_region
              // Predicated region
              $region90: #{scdown_forward.3} parent=77 // pred_check
                _
              $region91: #{scdown_forward.3} parent=77 // pred_check_branch
                %549 = sbr.rel (0) target = $region93
              $region92: #{scdown_forward.3} parent=77 // pred_region
                loop: start=0, step=1, limit=1
                $region94: #{scdown_forward.3} parent=92 // loop_pre_header
                  _
                $region95: #{scdown_forward.3} parent=92 // loop_header
                  %s551 = sphi 0, %s555
                  %p552 = scmp.ge.s32.totalorder %s551, 1
                  %s556 = sphi %s500, %s500
                  %s557 = sphi %s492, %s492
                $region96: #{scdown_forward.3} parent=92 // loop_header_branch
                  %554 = sbr.rel (%p552) target = $region100
                $region97: #{scdown_forward.3} parent=92 // loop_body
                  %v558 = vld [vmem:[%s556] sm:$0xff]
                  %559 = vst [vmem:[%s557] sm:$0xff] %v558
                  %v560 = vld [vmem:[%s556 + $0x10] sm:$0xff]
                  %561 = vst [vmem:[%s557 + $0x8] sm:$0xff] %v560
                  %v562 = vld [vmem:[%s556 + $0x20] sm:$0xff]
                  %563 = vst [vmem:[%s557 + $0x10] sm:$0xff] %v562
                  %v564 = vld [vmem:[%s556 + $0x30] sm:$0xff]
                  %565 = vst [vmem:[%s557 + $0x18] sm:$0xff] %v564
                  %v566 = vld [vmem:[%s556 + $0x40] sm:$0xff]
                  %567 = vst [vmem:[%s557 + $0x20] sm:$0xff] %v566
                  %v568 = vld [vmem:[%s556 + $0x50] sm:$0xff]
                  %569 = vst [vmem:[%s557 + $0x28] sm:$0xff] %v568
                  %v570 = vld [vmem:[%s556 + $0x60] sm:$0xff]
                  %571 = vst [vmem:[%s557 + $0x30] sm:$0xff] %v570
                  %v572 = vld [vmem:[%s556 + $0x70] sm:$0xff]
                  %573 = vst [vmem:[%s557 + $0x38] sm:$0xff] %v572
                  %v574 = vld [vmem:[%s556 + $0x80] sm:$0xff]
                  %575 = vst [vmem:[%s557 + $0x40] sm:$0xff] %v574
                  %v576 = vld [vmem:[%s556 + $0x90] sm:$0xff]
                  %577 = vst [vmem:[%s557 + $0x48] sm:$0xff] %v576
                  %v578 = vld [vmem:[%s556 + $0xa0] sm:$0xff]
                  %579 = vst [vmem:[%s557 + $0x50] sm:$0xff] %v578
                  %v580 = vld [vmem:[%s556 + $0xb0] sm:$0xff]
                  %581 = vst [vmem:[%s557 + $0x58] sm:$0xff] %v580
                  %v582 = vld [vmem:[%s556 + $0xc0] sm:$0xff]
                  %583 = vst [vmem:[%s557 + $0x60] sm:$0xff] %v582
                  %v584 = vld [vmem:[%s556 + $0xd0] sm:$0xff]
                  %585 = vst [vmem:[%s557 + $0x68] sm:$0xff] %v584
                  %v586 = vld [vmem:[%s556 + $0xe0] sm:$0xff]
                  %587 = vst [vmem:[%s557 + $0x70] sm:$0xff] %v586
                  %v588 = vld [vmem:[%s556 + $0xf0] sm:$0xff]
                  %589 = vst [vmem:[%s557 + $0x78] sm:$0xff] %v588
                $region98: #{scdown_forward.3} parent=92 // loop_footer
                  %s555 = sadd.s32 1, %s551
                $region99: #{scdown_forward.3} parent=92 // loop_footer_branch
                  %550 = sbr.rel target = $region95
                $region100: #{scdown_forward.3} parent=92 // loop_exit
                  _
              $region93: #{scdown_forward.3} parent=77 // pred_fallthru
                _
              // Predicated region
              $region101: #{scdown_forward.3} parent=77 // pred_check
                _
              $region102: #{scdown_forward.3} parent=77 // pred_check_branch
                %591 = sbr.rel target = $region104
              $region103: #{scdown_forward.3} parent=77 // pred_region
                _
              $region104: #{scdown_forward.3} parent=77 // pred_fallthru
                _
            $region78: #{scdown_forward.3} parent=73 // pred_fallthru
              _
            // Predicated region
            $region79: #{scdown_forward.3} parent=73 // pred_check
              _
            $region80: #{scdown_forward.3} parent=73 // pred_check_branch
              %506 = sbr.rel target = $region82
            $region81: #{scdown_forward.3} parent=73 // pred_region
              loop: start=0, step=1, limit=1
              $region83: #{scdown_forward.3} parent=81 // loop_pre_header
                _
              $region84: #{scdown_forward.3} parent=81 // loop_header
                %s509 = sphi 0, %s513
                %p510 = scmp.ge.s32.totalorder %s509, 1
                %s514 = sphi %s500, %s500
                %s515 = sphi %s492, %s492
              $region85: #{scdown_forward.3} parent=81 // loop_header_branch
                %512 = sbr.rel (%p510) target = $region89
              $region86: #{scdown_forward.3} parent=81 // loop_body
                %v516 = vld [vmem:[%s514] sm:$0xff]
                %517 = vst [vmem:[%s515] sm:$0xff] %v516
                %v518 = vld [vmem:[%s514 + $0x10] sm:$0xff]
                %519 = vst [vmem:[%s515 + $0x8] sm:$0xff] %v518
                %v520 = vld [vmem:[%s514 + $0x20] sm:$0xff]
                %521 = vst [vmem:[%s515 + $0x10] sm:$0xff] %v520
                %v522 = vld [vmem:[%s514 + $0x30] sm:$0xff]
                %523 = vst [vmem:[%s515 + $0x18] sm:$0xff] %v522
                %v524 = vld [vmem:[%s514 + $0x40] sm:$0xff]
                %525 = vst [vmem:[%s515 + $0x20] sm:$0xff] %v524
                %v526 = vld [vmem:[%s514 + $0x50] sm:$0xff]
                %527 = vst [vmem:[%s515 + $0x28] sm:$0xff] %v526
                %v528 = vld [vmem:[%s514 + $0x60] sm:$0xff]
                %529 = vst [vmem:[%s515 + $0x30] sm:$0xff] %v528
                %v530 = vld [vmem:[%s514 + $0x70] sm:$0xff]
                %531 = vst [vmem:[%s515 + $0x38] sm:$0xff] %v530
                %v532 = vld [vmem:[%s514 + $0x80] sm:$0xff]
                %533 = vst [vmem:[%s515 + $0x40] sm:$0xff] %v532
                %v534 = vld [vmem:[%s514 + $0x90] sm:$0xff]
                %535 = vst [vmem:[%s515 + $0x48] sm:$0xff] %v534
                %v536 = vld [vmem:[%s514 + $0xa0] sm:$0xff]
                %537 = vst [vmem:[%s515 + $0x50] sm:$0xff] %v536
                %v538 = vld [vmem:[%s514 + $0xb0] sm:$0xff]
                %539 = vst [vmem:[%s515 + $0x58] sm:$0xff] %v538
                %v540 = vld [vmem:[%s514 + $0xc0] sm:$0xff]
                %541 = vst [vmem:[%s515 + $0x60] sm:$0xff] %v540
                %v542 = vld [vmem:[%s514 + $0xd0] sm:$0xff]
                %543 = vst [vmem:[%s515 + $0x68] sm:$0xff] %v542
                %v544 = vld [vmem:[%s514 + $0xe0] sm:$0xff]
                %545 = vst [vmem:[%s515 + $0x70] sm:$0xff] %v544
                %v546 = vld [vmem:[%s514 + $0xf0] sm:$0xff]
                %547 = vst [vmem:[%s515 + $0x78] sm:$0xff] %v546
              $region87: #{scdown_forward.3} parent=81 // loop_footer
                %s513 = sadd.s32 1, %s509
              $region88: #{scdown_forward.3} parent=81 // loop_footer_branch
                %508 = sbr.rel target = $region84
              $region89: #{scdown_forward.3} parent=81 // loop_exit
                _
            $region82: #{scdown_forward.3} parent=73 // pred_fallthru
              _
          $region74: #{scdown_forward.3} parent=69 // pred_fallthru
            _
          %592 = vnop
        $region70: #{scdown_forward.3} parent=27 // pred_fallthru
          _
        // Predicated region
        $region105: #{scdown_forward.3} parent=27 // pred_check
          %p593 = pneg %p129
        $region106: #{scdown_forward.3} parent=27 // pred_check_branch
          %595 = sbr.rel (%p593) target = $region108
        $region107: #{scdown_forward.3} parent=27 // pred_region
          %s596 = smul.u32 %s24, 8
          %s597 = ssub.s32 %s596, 1
          %p598 = scmp.gt.s32.totalorder %s597, 0
          %s599 = scalar_select %p598, %s597, 0
          %p600 = scmp.lt.s32.totalorder %s23, 1
          %s601 = scalar_select %p600, %s23, 1
          %p602 = scmp.lt.s32.totalorder %s599, 7
          %s603 = scalar_select %p602, %s599, 7
          %p604 = scmp.lt.s32.totalorder %s25, 1
          %s605 = scalar_select %p604, %s25, 1
          %s606 = sadd.s32 %s605, 2
          %s607 = smul.addr %s603, 4
          %s608 = sadd.s32 %s606, %s607
          %s609 = smul.addr %s601, 32
          %s610 = sadd.s32 %s608, %s609
          %s611 = smul.addr %s610, 8
          %s612 = scalar_lea.vmem %s2, %s611
          %s613 = smul.u32 %s24, 8
          %s614 = ssub.s32 %s613, 1
          %p615 = scmp.gt.s32.totalorder %s614, 0
          %s616 = scalar_select %p615, %s614, 0
        $region108: #{scdown_forward.3} parent=27 // pred_fallthru
          _
        // Predicated region
        $region109: #{scdown_forward.3} parent=27 // pred_check
          %p617 = pneg %p169
        $region110: #{scdown_forward.3} parent=27 // pred_check_branch
          %619 = sbr.rel (%p617) target = $region112
        $region111: #{scdown_forward.3} parent=27 // pred_region
          %s620 = smul.u32 %s24, 8
          %s621 = ssub.s32 %s620, 1
          %p622 = scmp.gt.s32.totalorder %s621, 0
          %s623 = scalar_select %p622, %s621, 0
          %s624 = sadd.s32 %s25, 1
          %p625 = scmp.lt.s32.totalorder %s23, 1
          %s626 = scalar_select %p625, %s23, 1
          %p627 = scmp.lt.s32.totalorder %s623, 7
          %s628 = scalar_select %p627, %s623, 7
          %p629 = scmp.lt.s32.totalorder %s624, 1
          %s630 = scalar_select %p629, %s624, 1
          %s631 = sadd.s32 %s630, 2
          %s632 = smul.addr %s628, 4
          %s633 = sadd.s32 %s631, %s632
          %s634 = smul.addr %s626, 32
          %s635 = sadd.s32 %s633, %s634
          %s636 = smul.addr %s635, 8
          %s637 = scalar_lea.vmem %s3, %s636
          %s638 = smul.u32 %s24, 8
          %s639 = ssub.s32 %s638, 1
          %p640 = scmp.gt.s32.totalorder %s639, 0
          %s641 = scalar_select %p640, %s639, 0
          %s642 = sadd.s32 %s25, 1
        $region112: #{scdown_forward.3} parent=27 // pred_fallthru
          _
      $region28: #{scdown_forward.3} parent=5 // pred_fallthru
        _
      %p643 = scmp.le.s32.totalorder 1, %s16
      %p644 = scmp.lt.s32.totalorder %s16, 3
      %p645 = pnand %p643, %p644
      %p646 = pneg %p645
      // Predicated region
      $region113: #{scdown_forward.3} parent=5 // pred_check
        _
      $region114: #{scdown_forward.3} parent=5 // pred_check_branch
        %648 = sbr.rel (%p645) target = $region116
      $region115: #{scdown_forward.3} parent=5 // pred_region
        %s649 = ssub.s32 %s16, 1
        %s650 = sand.u32 %s52, 1
        %s651 = sand.u32 %s52, 1
        %s652 = smul.addr %s651, 128
        %s653 = scalar_lea.vmem [#allocation3], %s652
        // Predicated region
        $region117: #{scdown_forward.3} parent=115 // pred_check
          %p654 = pneg %p65
        $region118: #{scdown_forward.3} parent=115 // pred_check_branch
          %656 = sbr.rel (%p654) target = $region120
        $region119: #{scdown_forward.3} parent=115 // pred_region
          _
        $region120: #{scdown_forward.3} parent=115 // pred_fallthru
          _
        %s657 = sand.u32 %s84, 1
        %s658 = sand.u32 %s84, 1
        %s659 = smul.addr %s658, 128
        %s660 = scalar_lea.vmem [#allocation4], %s659
        // Predicated region
        $region121: #{scdown_forward.3} parent=115 // pred_check
          %p661 = pneg %p97
        $region122: #{scdown_forward.3} parent=115 // pred_check_branch
          %663 = sbr.rel (%p661) target = $region124
        $region123: #{scdown_forward.3} parent=115 // pred_region
          _
        $region124: #{scdown_forward.3} parent=115 // pred_fallthru
          _
        %s664 = sand.u32 %s52, 1
        %s665 = sand.u32 %s52, 1
        %s666 = smul.addr %s665, 128
        %s667 = scalar_lea.vmem [#allocation3], %s666
        %p668 = pneg %p65
        %p669 = pneg %p62
        %s670 = sand.u32 %s84, 1
        %s671 = sand.u32 %s84, 1
        %s672 = smul.addr %s671, 128
        %s673 = scalar_lea.vmem [#allocation4], %s672
        %p674 = pneg %p97
        %p675 = pneg %p94
        %s676 = smul.u32 %s27, 8
        %s677 = ssub.s32 %s676, 1
        %p678 = scmp.gt.s32.totalorder %s677, 0
        %s679 = scalar_select %p678, %s677, 0
        %p680 = scmp.lt.s32.totalorder %s26, 1
        %s681 = scalar_select %p680, %s26, 1
        %p682 = scmp.lt.s32.totalorder %s679, 7
        %s683 = scalar_select %p682, %s679, 7
        %p684 = scmp.lt.s32.totalorder %s28, 1
        %s685 = scalar_select %p684, %s28, 1
        %s686 = sadd.s32 %s685, 2
        %s687 = smul.addr %s683, 4
        %s688 = sadd.s32 %s686, %s687
        %s689 = smul.addr %s681, 32
        %s690 = sadd.s32 %s688, %s689
        %s691 = smul.addr %s690, 8
        %s692 = scalar_lea.vmem %s2, %s691
        %p693 = pneg %p135
        %p694 = pneg %p132
        %s695 = smul.u32 %s27, 8
        %s696 = ssub.s32 %s695, 1
        %p697 = scmp.gt.s32.totalorder %s696, 0
        %s698 = scalar_select %p697, %s696, 0
        %s699 = sadd.s32 %s28, 1
        %p700 = scmp.lt.s32.totalorder %s26, 1
        %s701 = scalar_select %p700, %s26, 1
        %p702 = scmp.lt.s32.totalorder %s698, 7
        %s703 = scalar_select %p702, %s698, 7
        %p704 = scmp.lt.s32.totalorder %s699, 1
        %s705 = scalar_select %p704, %s699, 1
        %s706 = sadd.s32 %s705, 2
        %s707 = smul.addr %s703, 4
        %s708 = sadd.s32 %s706, %s707
        %s709 = smul.addr %s701, 32
        %s710 = sadd.s32 %s708, %s709
        %s711 = smul.addr %s710, 8
        %s712 = scalar_lea.vmem %s3, %s711
        %p713 = pneg %p175
        %p714 = pneg %p172
        %p715 = scmp.lt.s32.totalorder %s28, 0
        %s716 = scalar_select %p715, %s28, 0
        %s717 = scalar_lea.vmem %s4, %s716
        %p718 = pneg %p201
        %p719 = pneg %p198
        %p720 = scmp.lt.s32.totalorder %s28, 0
        %s721 = scalar_select %p720, %s28, 0
        %s722 = scalar_lea.vmem %s5, %s721
        %p723 = pneg %p227
        %p724 = pneg %p224
        %p725 = scmp.lt.s32.totalorder %s28, 0
        %s726 = scalar_select %p725, %s28, 0
        %s727 = scalar_lea.vmem %s6, %s726
        %p728 = pneg %p253
        %p729 = pneg %p250
        %p730 = pneg %p283
        %p731 = pneg %p280
        %s732 = smul.u32 8, %s27
        %p733 = scmp.lt.s32.totalorder %s26, 1
        %s734 = scalar_select %p733, %s26, 1
        %p735 = scmp.lt.s32.totalorder %s732, 7
        %s736 = scalar_select %p735, %s732, 7
        %p737 = scmp.lt.s32.totalorder %s28, 0
        %s738 = scalar_select %p737, %s28, 0
        %s739 = sadd.s32 %s738, %s736
        %s740 = smul.addr %s734, 8
        %s741 = sadd.s32 %s739, %s740
        %s742 = smul.addr %s741, 8
        %s743 = scalar_lea.vmem %s7, %s742
        %p744 = pneg %p313
        %p745 = pneg %p310
        %p746 = scmp.lt.s32.totalorder %s26, 1
        %s747 = scalar_select %p746, %s26, 1
        %p748 = scmp.lt.s32.totalorder %s27, 0
        %s749 = scalar_select %p748, %s27, 0
        %p750 = scmp.lt.s32.totalorder %s28, 0
        %s751 = scalar_select %p750, %s28, 0
        %s752 = sadd.s32 %s751, %s749
        %s753 = sadd.s32 %s752, %s747
        %s754 = scalar_lea.vmem %s8, %s753
        %p755 = pneg %p343
        %p756 = pneg %p340
        %p757 = scmp.lt.s32.totalorder %s26, 1
        %s758 = scalar_select %p757, %s26, 1
        %p759 = scmp.lt.s32.totalorder %s27, 0
        %s760 = scalar_select %p759, %s27, 0
        %p761 = scmp.lt.s32.totalorder %s28, 0
        %s762 = scalar_select %p761, %s28, 0
        %s763 = sadd.s32 %s762, %s760
        %s764 = sadd.s32 %s763, %s758
        %s765 = scalar_lea.vmem %s9, %s764
        %s766 = smul.u32 8, %s27
        %s767 = sadd.s32 %s28, 1
        %s768 = smul.u32 8, %s27
        %s769 = smul.u32 %s27, 8
        %s770 = ssub.s32 %s769, 1
        %p771 = scmp.gt.s32.totalorder %s770, 0
        %s772 = scalar_select %p771, %s770, 0
        %p773 = scmp.lt.s32.totalorder %s26, 1
        %s774 = scalar_select %p773, %s26, 1
        %p775 = scmp.lt.s32.totalorder %s772, 7
        %s776 = scalar_select %p775, %s772, 7
        %p777 = scmp.lt.s32.totalorder %s28, 1
        %s778 = scalar_select %p777, %s28, 1
        %s779 = sadd.s32 %s778, 2
        %s780 = smul.addr %s776, 4
        %s781 = sadd.s32 %s779, %s780
        %s782 = smul.addr %s774, 32
        %s783 = sadd.s32 %s781, %s782
        %s784 = smul.addr %s783, 8
        %s785 = scalar_lea.vmem %s2, %s784
        %s786 = smul.u32 %s27, 8
        %s787 = ssub.s32 %s786, 1
        %p788 = scmp.gt.s32.totalorder %s787, 0
        %s789 = scalar_select %p788, %s787, 0
        %s790 = smul.u32 %s27, 8
        %s791 = ssub.s32 %s790, 1
        %p792 = scmp.gt.s32.totalorder %s791, 0
        %s793 = scalar_select %p792, %s791, 0
        %s794 = sadd.s32 %s28, 1
        %p795 = scmp.lt.s32.totalorder %s26, 1
        %s796 = scalar_select %p795, %s26, 1
        %p797 = scmp.lt.s32.totalorder %s793, 7
        %s798 = scalar_select %p797, %s793, 7
        %p799 = scmp.lt.s32.totalorder %s794, 1
        %s800 = scalar_select %p799, %s794, 1
        %s801 = sadd.s32 %s800, 2
        %s802 = smul.addr %s798, 4
        %s803 = sadd.s32 %s801, %s802
        %s804 = smul.addr %s796, 32
        %s805 = sadd.s32 %s803, %s804
        %s806 = smul.addr %s805, 8
        %s807 = scalar_lea.vmem %s3, %s806
        %s808 = smul.u32 %s27, 8
        %s809 = ssub.s32 %s808, 1
        %p810 = scmp.gt.s32.totalorder %s809, 0
        %s811 = scalar_select %p810, %s809, 0
        %s812 = sadd.s32 %s28, 1
        %p813 = scmp.lt.s32.totalorder %s28, 0
        %s814 = scalar_select %p813, %s28, 0
        %s815 = scalar_lea.vmem %s4, %s814
        %p816 = scmp.lt.s32.totalorder %s28, 0
        %s817 = scalar_select %p816, %s28, 0
        %s818 = scalar_lea.vmem %s5, %s817
        %p819 = scmp.lt.s32.totalorder %s28, 0
        %s820 = scalar_select %p819, %s28, 0
        %s821 = scalar_lea.vmem %s6, %s820
        %s822 = smul.u32 8, %s27
        %p823 = scmp.lt.s32.totalorder %s26, 1
        %s824 = scalar_select %p823, %s26, 1
        %p825 = scmp.lt.s32.totalorder %s822, 7
        %s826 = scalar_select %p825, %s822, 7
        %p827 = scmp.lt.s32.totalorder %s28, 0
        %s828 = scalar_select %p827, %s28, 0
        %s829 = sadd.s32 %s828, %s826
        %s830 = smul.addr %s824, 8
        %s831 = sadd.s32 %s829, %s830
        %s832 = smul.addr %s831, 8
        %s833 = scalar_lea.vmem %s7, %s832
        %s834 = smul.u32 8, %s27
        %p835 = scmp.lt.s32.totalorder %s26, 1
        %s836 = scalar_select %p835, %s26, 1
        %p837 = scmp.lt.s32.totalorder %s27, 0
        %s838 = scalar_select %p837, %s27, 0
        %p839 = scmp.lt.s32.totalorder %s28, 0
        %s840 = scalar_select %p839, %s28, 0
        %s841 = sadd.s32 %s840, %s838
        %s842 = sadd.s32 %s841, %s836
        %s843 = scalar_lea.vmem %s8, %s842
        %p844 = scmp.lt.s32.totalorder %s26, 1
        %s845 = scalar_select %p844, %s26, 1
        %p846 = scmp.lt.s32.totalorder %s27, 0
        %s847 = scalar_select %p846, %s27, 0
        %p848 = scmp.lt.s32.totalorder %s28, 0
        %s849 = scalar_select %p848, %s28, 0
        %s850 = sadd.s32 %s849, %s847
        %s851 = sadd.s32 %s850, %s845
        %s852 = scalar_lea.vmem %s9, %s851
        %v853 = vld [vmem:[%s815] sm:$0x1]
        %v854 = vld [vmem:[%s818] sm:$0x1]
        %855 = vst [vmem:[#allocation2] sm:$0x1] 0.0
        %856 = vst [vmem:[#allocation2 + $0x10] sm:$0x1] 0.0
        %857 = vst [vmem:[#allocation2 + $0x20] sm:$0x1] 0.0
        %858 = vst [vmem:[#allocation2 + $0x30] sm:$0x1] 0.0
        %859 = vst [vmem:[#allocation2 + $0x40] sm:$0x1] 0.0
        %860 = vst [vmem:[#allocation2 + $0x50] sm:$0x1] 0.0
        %861 = vst [vmem:[#allocation2 + $0x60] sm:$0x1] 0.0
        %862 = vst [vmem:[#allocation2 + $0x70] sm:$0x1] 0.0
        %863 = vst [vmem:[#allocation2 + $0x80] sm:$0x1] 0.0
        %v864 = vld [vmem:[%s653] sm:$0xff]
        %v865 = vld [vmem:[%s653 + $0x10] sm:$0xff]
        %v866 = vld [vmem:[%s653 + $0x20] sm:$0xff]
        %v867 = vld [vmem:[%s653 + $0x30] sm:$0xff]
        %v868 = vld [vmem:[%s653 + $0x40] sm:$0xff]
        %v869 = vld [vmem:[%s653 + $0x50] sm:$0xff]
        %v870 = vld [vmem:[%s653 + $0x60] sm:$0xff]
        %v871 = vld [vmem:[%s653 + $0x70] sm:$0xff]
        %v873 = vlaneseq
        %v874 = vshrl.u32 %v873, 7
        %v875 = vsub.s32 0, %v874
        %v876 = vrot.slane %v853, %v875
        %v878 = vmul.f32 %v864, %v876
        %v879 = vmul.f32 %v865, %v876
        %v880 = vmul.f32 %v866, %v876
        %v881 = vmul.f32 %v867, %v876
        %v882 = vmul.f32 %v868, %v876
        %v883 = vmul.f32 %v869, %v876
        %v884 = vmul.f32 %v870, %v876
        %v885 = vmul.f32 %v871, %v876
        %v887 = vlaneseq
        %v888 = vshrl.u32 %v887, 7
        %v889 = vsub.s32 0, %v888
        %v890 = vrot.slane %v854, %v889
        %v892 = vadd.f32 %v878, %v890
        %v893 = vadd.f32 %v879, %v890
        %v894 = vadd.f32 %v880, %v890
        %v895 = vadd.f32 %v881, %v890
        %v896 = vadd.f32 %v882, %v890
        %v897 = vadd.f32 %v883, %v890
        %v898 = vadd.f32 %v884, %v890
        %v899 = vadd.f32 %v885, %v890
        %v900 = vxor.u32 %v892, 2147483648
        %v901 = vxor.u32 %v893, 2147483648
        %v902 = vxor.u32 %v894, 2147483648
        %v903 = vxor.u32 %v895, 2147483648
        %v904 = vxor.u32 %v896, 2147483648
        %v905 = vxor.u32 %v897, 2147483648
        %v906 = vxor.u32 %v898, 2147483648
        %v907 = vxor.u32 %v899, 2147483648
        %v908 = vmul.f32 %v900, 1.442695
        %v909 = vpow.pop %v908
        %v910 = vmul.f32 %v901, 1.442695
        %v911 = vpow.pop %v910
        %v912 = vmul.f32 %v902, 1.442695
        %v913 = vpow.pop %v912
        %v914 = vmul.f32 %v903, 1.442695
        %v915 = vpow.pop %v914
        %v916 = vmul.f32 %v904, 1.442695
        %v917 = vpow.pop %v916
        %v918 = vmul.f32 %v905, 1.442695
        %v919 = vpow.pop %v918
        %v920 = vmul.f32 %v906, 1.442695
        %v921 = vpow.pop %v920
        %v922 = vmul.f32 %v907, 1.442695
        %v923 = vpow.pop %v922
        %v924 = vadd.f32 %v909, 1.0
        %v925 = vadd.f32 %v911, 1.0
        %v926 = vadd.f32 %v913, 1.0
        %v927 = vadd.f32 %v915, 1.0
        %v928 = vadd.f32 %v917, 1.0
        %v929 = vadd.f32 %v919, 1.0
        %v930 = vadd.f32 %v921, 1.0
        %v931 = vadd.f32 %v923, 1.0
        %v932 = vrcp.pop %v924
        %v933 = vmul.f32 1.0, %v932
        %v934 = vrcp.pop %v925
        %v935 = vmul.f32 1.0, %v934
        %v936 = vrcp.pop %v926
        %v937 = vmul.f32 1.0, %v936
        %v938 = vrcp.pop %v927
        %v939 = vmul.f32 1.0, %v938
        %v940 = vrcp.pop %v928
        %v941 = vmul.f32 1.0, %v940
        %v942 = vrcp.pop %v929
        %v943 = vmul.f32 1.0, %v942
        %v944 = vrcp.pop %v930
        %v945 = vmul.f32 1.0, %v944
        %v946 = vrcp.pop %v931
        %v947 = vmul.f32 1.0, %v946
        %v948 = vmul.f32 %v892, %v933
        %v949 = vmul.f32 %v893, %v935
        %v950 = vmul.f32 %v894, %v937
        %v951 = vmul.f32 %v895, %v939
        %v952 = vmul.f32 %v896, %v941
        %v953 = vmul.f32 %v897, %v943
        %v954 = vmul.f32 %v898, %v945
        %v955 = vmul.f32 %v899, %v947
        %s956 = scalar_lea.vmem [#allocation2], 16
        %957 = vst [vmem:[%s956 + $0x1] sm:$0xff] %v948
        %958 = vst [vmem:[%s956 + $0x11] sm:$0xff] %v949
        %959 = vst [vmem:[%s956 + $0x21] sm:$0xff] %v950
        %960 = vst [vmem:[%s956 + $0x31] sm:$0xff] %v951
        %961 = vst [vmem:[%s956 + $0x41] sm:$0xff] %v952
        %962 = vst [vmem:[%s956 + $0x51] sm:$0xff] %v953
        %963 = vst [vmem:[%s956 + $0x61] sm:$0xff] %v954
        %964 = vst [vmem:[%s956 + $0x71] sm:$0xff] %v955
        %v965 = vld [vmem:[%s956 + $0x1] sm:$0xff]
        %v966 = vld [vmem:[%s956 + $0x11] sm:$0xff]
        %v967 = vld [vmem:[%s956 + $0x21] sm:$0xff]
        %v968 = vld [vmem:[%s956 + $0x31] sm:$0xff]
        %v969 = vld [vmem:[%s956 + $0x41] sm:$0xff]
        %v970 = vld [vmem:[%s956 + $0x51] sm:$0xff]
        %v971 = vld [vmem:[%s956 + $0x61] sm:$0xff]
        %v972 = vld [vmem:[%s956 + $0x71] sm:$0xff]
        %s973 = scalar_lea.vmem %s821, 4
        %v974 = vld [vmem:[%s973] sm:$0x1]
        %v976 = vlaneseq
        %v977 = vshrl.u32 %v976, 7
        %v978 = vsub.s32 0, %v977
        %v979 = vrot.slane %v974, %v978
        %v981 = vmul.f32 %v965, %v979
        %v982 = vmul.f32 %v966, %v979
        %v983 = vmul.f32 %v967, %v979
        %v984 = vmul.f32 %v968, %v979
        %v985 = vmul.f32 %v969, %v979
        %v986 = vmul.f32 %v970, %v979
        %v987 = vmul.f32 %v971, %v979
        %v988 = vmul.f32 %v972, %v979
        %989 = vst [vmem:[%s833] sm:$0xff] %v981
        %990 = vst [vmem:[%s833 + $0x8] sm:$0xff] %v982
        %991 = vst [vmem:[%s833 + $0x10] sm:$0xff] %v983
        %992 = vst [vmem:[%s833 + $0x18] sm:$0xff] %v984
        %993 = vst [vmem:[%s833 + $0x20] sm:$0xff] %v985
        %994 = vst [vmem:[%s833 + $0x28] sm:$0xff] %v986
        %995 = vst [vmem:[%s833 + $0x30] sm:$0xff] %v987
        %996 = vst [vmem:[%s833 + $0x38] sm:$0xff] %v988
        %v997 = vld [vmem:[%s660] sm:$0xff]
        %v998 = vld [vmem:[%s660 + $0x10] sm:$0xff]
        %v999 = vld [vmem:[%s660 + $0x20] sm:$0xff]
        %v1000 = vld [vmem:[%s660 + $0x30] sm:$0xff]
        %v1001 = vld [vmem:[%s660 + $0x40] sm:$0xff]
        %v1002 = vld [vmem:[%s660 + $0x50] sm:$0xff]
        %v1003 = vld [vmem:[%s660 + $0x60] sm:$0xff]
        %v1004 = vld [vmem:[%s660 + $0x70] sm:$0xff]
        %v1005 = vmul.f32 %v997, %v876
        %v1006 = vmul.f32 %v998, %v876
        %v1007 = vmul.f32 %v999, %v876
        %v1008 = vmul.f32 %v1000, %v876
        %v1009 = vmul.f32 %v1001, %v876
        %v1010 = vmul.f32 %v1002, %v876
        %v1011 = vmul.f32 %v1003, %v876
        %v1012 = vmul.f32 %v1004, %v876
        %v1013 = vadd.f32 %v1005, %v890
        %v1014 = vadd.f32 %v1006, %v890
        %v1015 = vadd.f32 %v1007, %v890
        %v1016 = vadd.f32 %v1008, %v890
        %v1017 = vadd.f32 %v1009, %v890
        %v1018 = vadd.f32 %v1010, %v890
        %v1019 = vadd.f32 %v1011, %v890
        %v1020 = vadd.f32 %v1012, %v890
        %v1021 = vxor.u32 %v1013, 2147483648
        %v1022 = vxor.u32 %v1014, 2147483648
        %v1023 = vxor.u32 %v1015, 2147483648
        %v1024 = vxor.u32 %v1016, 2147483648
        %v1025 = vxor.u32 %v1017, 2147483648
        %v1026 = vxor.u32 %v1018, 2147483648
        %v1027 = vxor.u32 %v1019, 2147483648
        %v1028 = vxor.u32 %v1020, 2147483648
        %v1029 = vmul.f32 %v1021, 1.442695
        %v1030 = vpow.pop %v1029
        %v1031 = vmul.f32 %v1022, 1.442695
        %v1032 = vpow.pop %v1031
        %v1033 = vmul.f32 %v1023, 1.442695
        %v1034 = vpow.pop %v1033
        %v1035 = vmul.f32 %v1024, 1.442695
        %v1036 = vpow.pop %v1035
        %v1037 = vmul.f32 %v1025, 1.442695
        %v1038 = vpow.pop %v1037
        %v1039 = vmul.f32 %v1026, 1.442695
        %v1040 = vpow.pop %v1039
        %v1041 = vmul.f32 %v1027, 1.442695
        %v1042 = vpow.pop %v1041
        %v1043 = vmul.f32 %v1028, 1.442695
        %v1044 = vpow.pop %v1043
        %v1045 = vadd.f32 %v1030, 1.0
        %v1046 = vadd.f32 %v1032, 1.0
        %v1047 = vadd.f32 %v1034, 1.0
        %v1048 = vadd.f32 %v1036, 1.0
        %v1049 = vadd.f32 %v1038, 1.0
        %v1050 = vadd.f32 %v1040, 1.0
        %v1051 = vadd.f32 %v1042, 1.0
        %v1052 = vadd.f32 %v1044, 1.0
        %v1053 = vrcp.pop %v1045
        %v1054 = vmul.f32 1.0, %v1053
        %v1055 = vrcp.pop %v1046
        %v1056 = vmul.f32 1.0, %v1055
        %v1057 = vrcp.pop %v1047
        %v1058 = vmul.f32 1.0, %v1057
        %v1059 = vrcp.pop %v1048
        %v1060 = vmul.f32 1.0, %v1059
        %v1061 = vrcp.pop %v1049
        %v1062 = vmul.f32 1.0, %v1061
        %v1063 = vrcp.pop %v1050
        %v1064 = vmul.f32 1.0, %v1063
        %v1065 = vrcp.pop %v1051
        %v1066 = vmul.f32 1.0, %v1065
        %v1067 = vrcp.pop %v1052
        %v1068 = vmul.f32 1.0, %v1067
        %v1069 = vmul.f32 %v1013, %v1054
        %v1070 = vmul.f32 %v1014, %v1056
        %v1071 = vmul.f32 %v1015, %v1058
        %v1072 = vmul.f32 %v1016, %v1060
        %v1073 = vmul.f32 %v1017, %v1062
        %v1074 = vmul.f32 %v1018, %v1064
        %v1075 = vmul.f32 %v1019, %v1066
        %v1076 = vmul.f32 %v1020, %v1068
        %1077 = vst [vmem:[%s956 + $0x1] sm:$0xff] %v1069
        %1078 = vst [vmem:[%s956 + $0x11] sm:$0xff] %v1070
        %1079 = vst [vmem:[%s956 + $0x21] sm:$0xff] %v1071
        %1080 = vst [vmem:[%s956 + $0x31] sm:$0xff] %v1072
        %1081 = vst [vmem:[%s956 + $0x41] sm:$0xff] %v1073
        %1082 = vst [vmem:[%s956 + $0x51] sm:$0xff] %v1074
        %1083 = vst [vmem:[%s956 + $0x61] sm:$0xff] %v1075
        %1084 = vst [vmem:[%s956 + $0x71] sm:$0xff] %v1076
        %v1085 = vld [vmem:[%s956] sm:$0xff]
        %v1086 = vld [vmem:[%s956 + $0x10] sm:$0xff]
        %v1087 = vld [vmem:[%s956 + $0x20] sm:$0xff]
        %v1088 = vld [vmem:[%s956 + $0x30] sm:$0xff]
        %v1089 = vld [vmem:[%s956 + $0x40] sm:$0xff]
        %v1090 = vld [vmem:[%s956 + $0x50] sm:$0xff]
        %v1091 = vld [vmem:[%s956 + $0x60] sm:$0xff]
        %v1092 = vld [vmem:[%s956 + $0x70] sm:$0xff]
        %s1093 = scalar_lea.vmem %s821, 3
        %v1094 = vld [vmem:[%s1093] sm:$0x1]
        %v1096 = vlaneseq
        %v1097 = vshrl.u32 %v1096, 7
        %v1098 = vsub.s32 0, %v1097
        %v1099 = vrot.slane %v1094, %v1098
        %v1101 = vmul.f32 %v1085, %v1099
        %v1102 = vmul.f32 %v1086, %v1099
        %v1103 = vmul.f32 %v1087, %v1099
        %v1104 = vmul.f32 %v1088, %v1099
        %v1105 = vmul.f32 %v1089, %v1099
        %v1106 = vmul.f32 %v1090, %v1099
        %v1107 = vmul.f32 %v1091, %v1099
        %v1108 = vmul.f32 %v1092, %v1099
        %v1109 = vld [vmem:[%s956 + $0x1] sm:$0xff]
        %v1110 = vld [vmem:[%s956 + $0x11] sm:$0xff]
        %v1111 = vld [vmem:[%s956 + $0x21] sm:$0xff]
        %v1112 = vld [vmem:[%s956 + $0x31] sm:$0xff]
        %v1113 = vld [vmem:[%s956 + $0x41] sm:$0xff]
        %v1114 = vld [vmem:[%s956 + $0x51] sm:$0xff]
        %v1115 = vld [vmem:[%s956 + $0x61] sm:$0xff]
        %v1116 = vld [vmem:[%s956 + $0x71] sm:$0xff]
        %s1117 = scalar_lea.vmem %s821, 5
        %v1118 = vld [vmem:[%s1117] sm:$0x1]
        %v1120 = vlaneseq
        %v1121 = vshrl.u32 %v1120, 7
        %v1122 = vsub.s32 0, %v1121
        %v1123 = vrot.slane %v1118, %v1122
        %v1125 = vmul.f32 %v1109, %v1123
        %v1126 = vmul.f32 %v1110, %v1123
        %v1127 = vmul.f32 %v1111, %v1123
        %v1128 = vmul.f32 %v1112, %v1123
        %v1129 = vmul.f32 %v1113, %v1123
        %v1130 = vmul.f32 %v1114, %v1123
        %v1131 = vmul.f32 %v1115, %v1123
        %v1132 = vmul.f32 %v1116, %v1123
        %v1133 = vadd.f32 %v1101, %v1125
        %v1134 = vadd.f32 %v1102, %v1126
        %v1135 = vadd.f32 %v1103, %v1127
        %v1136 = vadd.f32 %v1104, %v1128
        %v1137 = vadd.f32 %v1105, %v1129
        %v1138 = vadd.f32 %v1106, %v1130
        %v1139 = vadd.f32 %v1107, %v1131
        %v1140 = vadd.f32 %v1108, %v1132
        %v1141 = vld [vmem:[%s833] sm:$0xff]
        %v1142 = vld [vmem:[%s833 + $0x8] sm:$0xff]
        %v1143 = vld [vmem:[%s833 + $0x10] sm:$0xff]
        %v1144 = vld [vmem:[%s833 + $0x18] sm:$0xff]
        %v1145 = vld [vmem:[%s833 + $0x20] sm:$0xff]
        %v1146 = vld [vmem:[%s833 + $0x28] sm:$0xff]
        %v1147 = vld [vmem:[%s833 + $0x30] sm:$0xff]
        %v1148 = vld [vmem:[%s833 + $0x38] sm:$0xff]
        %v1149 = vadd.f32 %v1141, %v1133
        %v1150 = vadd.f32 %v1142, %v1134
        %v1151 = vadd.f32 %v1143, %v1135
        %v1152 = vadd.f32 %v1144, %v1136
        %v1153 = vadd.f32 %v1145, %v1137
        %v1154 = vadd.f32 %v1146, %v1138
        %v1155 = vadd.f32 %v1147, %v1139
        %v1156 = vadd.f32 %v1148, %v1140
        %1157 = vst [vmem:[%s833] sm:$0xff] %v1149
        %1158 = vst [vmem:[%s833 + $0x8] sm:$0xff] %v1150
        %1159 = vst [vmem:[%s833 + $0x10] sm:$0xff] %v1151
        %1160 = vst [vmem:[%s833 + $0x18] sm:$0xff] %v1152
        %1161 = vst [vmem:[%s833 + $0x20] sm:$0xff] %v1153
        %1162 = vst [vmem:[%s833 + $0x28] sm:$0xff] %v1154
        %1163 = vst [vmem:[%s833 + $0x30] sm:$0xff] %v1155
        %1164 = vst [vmem:[%s833 + $0x38] sm:$0xff] %v1156
        %s1165 = scalar_lea.vmem %s653, 8 [#allocation3]
        %v1166 = vld [vmem:[%s1165] sm:$0xff]
        %v1167 = vld [vmem:[%s1165 + $0x10] sm:$0xff]
        %v1168 = vld [vmem:[%s1165 + $0x20] sm:$0xff]
        %v1169 = vld [vmem:[%s1165 + $0x30] sm:$0xff]
        %v1170 = vld [vmem:[%s1165 + $0x40] sm:$0xff]
        %v1171 = vld [vmem:[%s1165 + $0x50] sm:$0xff]
        %v1172 = vld [vmem:[%s1165 + $0x60] sm:$0xff]
        %v1173 = vld [vmem:[%s1165 + $0x70] sm:$0xff]
        %v1174 = vmul.f32 %v1166, %v876
        %v1175 = vmul.f32 %v1167, %v876
        %v1176 = vmul.f32 %v1168, %v876
        %v1177 = vmul.f32 %v1169, %v876
        %v1178 = vmul.f32 %v1170, %v876
        %v1179 = vmul.f32 %v1171, %v876
        %v1180 = vmul.f32 %v1172, %v876
        %v1181 = vmul.f32 %v1173, %v876
        %v1182 = vadd.f32 %v1174, %v890
        %v1183 = vadd.f32 %v1175, %v890
        %v1184 = vadd.f32 %v1176, %v890
        %v1185 = vadd.f32 %v1177, %v890
        %v1186 = vadd.f32 %v1178, %v890
        %v1187 = vadd.f32 %v1179, %v890
        %v1188 = vadd.f32 %v1180, %v890
        %v1189 = vadd.f32 %v1181, %v890
        %v1190 = vxor.u32 %v1182, 2147483648
        %v1191 = vxor.u32 %v1183, 2147483648
        %v1192 = vxor.u32 %v1184, 2147483648
        %v1193 = vxor.u32 %v1185, 2147483648
        %v1194 = vxor.u32 %v1186, 2147483648
        %v1195 = vxor.u32 %v1187, 2147483648
        %v1196 = vxor.u32 %v1188, 2147483648
        %v1197 = vxor.u32 %v1189, 2147483648
        %v1198 = vmul.f32 %v1190, 1.442695
        %v1199 = vpow.pop %v1198
        %v1200 = vmul.f32 %v1191, 1.442695
        %v1201 = vpow.pop %v1200
        %v1202 = vmul.f32 %v1192, 1.442695
        %v1203 = vpow.pop %v1202
        %v1204 = vmul.f32 %v1193, 1.442695
        %v1205 = vpow.pop %v1204
        %v1206 = vmul.f32 %v1194, 1.442695
        %v1207 = vpow.pop %v1206
        %v1208 = vmul.f32 %v1195, 1.442695
        %v1209 = vpow.pop %v1208
        %v1210 = vmul.f32 %v1196, 1.442695
        %v1211 = vpow.pop %v1210
        %v1212 = vmul.f32 %v1197, 1.442695
        %v1213 = vpow.pop %v1212
        %v1214 = vadd.f32 %v1199, 1.0
        %v1215 = vadd.f32 %v1201, 1.0
        %v1216 = vadd.f32 %v1203, 1.0
        %v1217 = vadd.f32 %v1205, 1.0
        %v1218 = vadd.f32 %v1207, 1.0
        %v1219 = vadd.f32 %v1209, 1.0
        %v1220 = vadd.f32 %v1211, 1.0
        %v1221 = vadd.f32 %v1213, 1.0
        %v1222 = vrcp.pop %v1214
        %v1223 = vmul.f32 1.0, %v1222
        %v1224 = vrcp.pop %v1215
        %v1225 = vmul.f32 1.0, %v1224
        %v1226 = vrcp.pop %v1216
        %v1227 = vmul.f32 1.0, %v1226
        %v1228 = vrcp.pop %v1217
        %v1229 = vmul.f32 1.0, %v1228
        %v1230 = vrcp.pop %v1218
        %v1231 = vmul.f32 1.0, %v1230
        %v1232 = vrcp.pop %v1219
        %v1233 = vmul.f32 1.0, %v1232
        %v1234 = vrcp.pop %v1220
        %v1235 = vmul.f32 1.0, %v1234
        %v1236 = vrcp.pop %v1221
        %v1237 = vmul.f32 1.0, %v1236
        %v1238 = vmul.f32 %v1182, %v1223
        %v1239 = vmul.f32 %v1183, %v1225
        %v1240 = vmul.f32 %v1184, %v1227
        %v1241 = vmul.f32 %v1185, %v1229
        %v1242 = vmul.f32 %v1186, %v1231
        %v1243 = vmul.f32 %v1187, %v1233
        %v1244 = vmul.f32 %v1188, %v1235
        %v1245 = vmul.f32 %v1189, %v1237
        %1246 = vst [vmem:[%s956 + $0x1] sm:$0xff] %v1238
        %1247 = vst [vmem:[%s956 + $0x11] sm:$0xff] %v1239
        %1248 = vst [vmem:[%s956 + $0x21] sm:$0xff] %v1240
        %1249 = vst [vmem:[%s956 + $0x31] sm:$0xff] %v1241
        %1250 = vst [vmem:[%s956 + $0x41] sm:$0xff] %v1242
        %1251 = vst [vmem:[%s956 + $0x51] sm:$0xff] %v1243
        %1252 = vst [vmem:[%s956 + $0x61] sm:$0xff] %v1244
        %1253 = vst [vmem:[%s956 + $0x71] sm:$0xff] %v1245
        %v1254 = vld [vmem:[%s785] sm:$0xff]
        %v1255 = vmul.f32 %v1254, %v876
        %v1256 = vadd.f32 %v1255, %v890
        %v1257 = vxor.u32 %v1256, 2147483648
        %v1258 = vmul.f32 %v1257, 1.442695
        %v1259 = vpow.pop %v1258
        %v1260 = vadd.f32 %v1259, 1.0
        %v1261 = vrcp.pop %v1260
        %v1262 = vmul.f32 1.0, %v1261
        %v1263 = vmul.f32 %v1256, %v1262
        %p1264 = scmp.gt.s32.totalorder %s27, 0
        %s1265 = scalar_select %p1264, 1, 0
        %v1266 = vstv %s1265
        %vm1267 = vcmp.eq.s32.totalorder %v1266, 1
        %v1268 = vsel %vm1267, %v1263, 0.0
        %1269 = vst [vmem:[#allocation2 + $0x1] sm:$0xff] %v1268
        %v1270 = vld [vmem:[#allocation2 + $0x1] sm:$0xff]
        %v1271 = vld [vmem:[#allocation2 + $0x11] sm:$0xff]
        %v1272 = vld [vmem:[#allocation2 + $0x21] sm:$0xff]
        %v1273 = vld [vmem:[#allocation2 + $0x31] sm:$0xff]
        %v1274 = vld [vmem:[#allocation2 + $0x41] sm:$0xff]
        %v1275 = vld [vmem:[#allocation2 + $0x51] sm:$0xff]
        %v1276 = vld [vmem:[#allocation2 + $0x61] sm:$0xff]
        %v1277 = vld [vmem:[#allocation2 + $0x71] sm:$0xff]
        %s1278 = scalar_lea.vmem %s821, 1
        %v1279 = vld [vmem:[%s1278] sm:$0x1]
        %v1281 = vlaneseq
        %v1282 = vshrl.u32 %v1281, 7
        %v1283 = vsub.s32 0, %v1282
        %v1284 = vrot.slane %v1279, %v1283
        %v1286 = vmul.f32 %v1270, %v1284
        %v1287 = vmul.f32 %v1271, %v1284
        %v1288 = vmul.f32 %v1272, %v1284
        %v1289 = vmul.f32 %v1273, %v1284
        %v1290 = vmul.f32 %v1274, %v1284
        %v1291 = vmul.f32 %v1275, %v1284
        %v1292 = vmul.f32 %v1276, %v1284
        %v1293 = vmul.f32 %v1277, %v1284
        %v1294 = vld [vmem:[%s956 + $0x1] sm:$0xff]
        %v1295 = vld [vmem:[%s956 + $0x11] sm:$0xff]
        %v1296 = vld [vmem:[%s956 + $0x21] sm:$0xff]
        %v1297 = vld [vmem:[%s956 + $0x31] sm:$0xff]
        %v1298 = vld [vmem:[%s956 + $0x41] sm:$0xff]
        %v1299 = vld [vmem:[%s956 + $0x51] sm:$0xff]
        %v1300 = vld [vmem:[%s956 + $0x61] sm:$0xff]
        %v1301 = vld [vmem:[%s956 + $0x71] sm:$0xff]
        %s1302 = scalar_lea.vmem %s821, 7
        %v1303 = vld [vmem:[%s1302] sm:$0x1]
        %v1305 = vlaneseq
        %v1306 = vshrl.u32 %v1305, 7
        %v1307 = vsub.s32 0, %v1306
        %v1308 = vrot.slane %v1303, %v1307
        %v1310 = vmul.f32 %v1294, %v1308
        %v1311 = vmul.f32 %v1295, %v1308
        %v1312 = vmul.f32 %v1296, %v1308
        %v1313 = vmul.f32 %v1297, %v1308
        %v1314 = vmul.f32 %v1298, %v1308
        %v1315 = vmul.f32 %v1299, %v1308
        %v1316 = vmul.f32 %v1300, %v1308
        %v1317 = vmul.f32 %v1301, %v1308
        %v1318 = vadd.f32 %v1286, %v1310
        %v1319 = vadd.f32 %v1287, %v1311
        %v1320 = vadd.f32 %v1288, %v1312
        %v1321 = vadd.f32 %v1289, %v1313
        %v1322 = vadd.f32 %v1290, %v1314
        %v1323 = vadd.f32 %v1291, %v1315
        %v1324 = vadd.f32 %v1292, %v1316
        %v1325 = vadd.f32 %v1293, %v1317
        %v1326 = vld [vmem:[%s833] sm:$0xff]
        %v1327 = vld [vmem:[%s833 + $0x8] sm:$0xff]
        %v1328 = vld [vmem:[%s833 + $0x10] sm:$0xff]
        %v1329 = vld [vmem:[%s833 + $0x18] sm:$0xff]
        %v1330 = vld [vmem:[%s833 + $0x20] sm:$0xff]
        %v1331 = vld [vmem:[%s833 + $0x28] sm:$0xff]
        %v1332 = vld [vmem:[%s833 + $0x30] sm:$0xff]
        %v1333 = vld [vmem:[%s833 + $0x38] sm:$0xff]
        %v1334 = vadd.f32 %v1326, %v1318
        %v1335 = vadd.f32 %v1327, %v1319
        %v1336 = vadd.f32 %v1328, %v1320
        %v1337 = vadd.f32 %v1329, %v1321
        %v1338 = vadd.f32 %v1330, %v1322
        %v1339 = vadd.f32 %v1331, %v1323
        %v1340 = vadd.f32 %v1332, %v1324
        %v1341 = vadd.f32 %v1333, %v1325
        %1342 = vst [vmem:[%s833] sm:$0xff] %v1334
        %1343 = vst [vmem:[%s833 + $0x8] sm:$0xff] %v1335
        %1344 = vst [vmem:[%s833 + $0x10] sm:$0xff] %v1336
        %1345 = vst [vmem:[%s833 + $0x18] sm:$0xff] %v1337
        %1346 = vst [vmem:[%s833 + $0x20] sm:$0xff] %v1338
        %1347 = vst [vmem:[%s833 + $0x28] sm:$0xff] %v1339
        %1348 = vst [vmem:[%s833 + $0x30] sm:$0xff] %v1340
        %1349 = vst [vmem:[%s833 + $0x38] sm:$0xff] %v1341
        %s1350 = scalar_lea.vmem %s660, 8 [#allocation4]
        %v1351 = vld [vmem:[%s1350] sm:$0xff]
        %v1352 = vld [vmem:[%s1350 + $0x10] sm:$0xff]
        %v1353 = vld [vmem:[%s1350 + $0x20] sm:$0xff]
        %v1354 = vld [vmem:[%s1350 + $0x30] sm:$0xff]
        %v1355 = vld [vmem:[%s1350 + $0x40] sm:$0xff]
        %v1356 = vld [vmem:[%s1350 + $0x50] sm:$0xff]
        %v1357 = vld [vmem:[%s1350 + $0x60] sm:$0xff]
        %v1358 = vld [vmem:[%s1350 + $0x70] sm:$0xff]
        %v1359 = vmul.f32 %v1351, %v876
        %v1360 = vmul.f32 %v1352, %v876
        %v1361 = vmul.f32 %v1353, %v876
        %v1362 = vmul.f32 %v1354, %v876
        %v1363 = vmul.f32 %v1355, %v876
        %v1364 = vmul.f32 %v1356, %v876
        %v1365 = vmul.f32 %v1357, %v876
        %v1366 = vmul.f32 %v1358, %v876
        %v1367 = vadd.f32 %v1359, %v890
        %v1368 = vadd.f32 %v1360, %v890
        %v1369 = vadd.f32 %v1361, %v890
        %v1370 = vadd.f32 %v1362, %v890
        %v1371 = vadd.f32 %v1363, %v890
        %v1372 = vadd.f32 %v1364, %v890
        %v1373 = vadd.f32 %v1365, %v890
        %v1374 = vadd.f32 %v1366, %v890
        %v1375 = vxor.u32 %v1367, 2147483648
        %v1376 = vxor.u32 %v1368, 2147483648
        %v1377 = vxor.u32 %v1369, 2147483648
        %v1378 = vxor.u32 %v1370, 2147483648
        %v1379 = vxor.u32 %v1371, 2147483648
        %v1380 = vxor.u32 %v1372, 2147483648
        %v1381 = vxor.u32 %v1373, 2147483648
        %v1382 = vxor.u32 %v1374, 2147483648
        %v1383 = vmul.f32 %v1375, 1.442695
        %v1384 = vpow.pop %v1383
        %v1385 = vmul.f32 %v1376, 1.442695
        %v1386 = vpow.pop %v1385
        %v1387 = vmul.f32 %v1377, 1.442695
        %v1388 = vpow.pop %v1387
        %v1389 = vmul.f32 %v1378, 1.442695
        %v1390 = vpow.pop %v1389
        %v1391 = vmul.f32 %v1379, 1.442695
        %v1392 = vpow.pop %v1391
        %v1393 = vmul.f32 %v1380, 1.442695
        %v1394 = vpow.pop %v1393
        %v1395 = vmul.f32 %v1381, 1.442695
        %v1396 = vpow.pop %v1395
        %v1397 = vmul.f32 %v1382, 1.442695
        %v1398 = vpow.pop %v1397
        %v1399 = vadd.f32 %v1384, 1.0
        %v1400 = vadd.f32 %v1386, 1.0
        %v1401 = vadd.f32 %v1388, 1.0
        %v1402 = vadd.f32 %v1390, 1.0
        %v1403 = vadd.f32 %v1392, 1.0
        %v1404 = vadd.f32 %v1394, 1.0
        %v1405 = vadd.f32 %v1396, 1.0
        %v1406 = vadd.f32 %v1398, 1.0
        %v1407 = vrcp.pop %v1399
        %v1408 = vmul.f32 1.0, %v1407
        %v1409 = vrcp.pop %v1400
        %v1410 = vmul.f32 1.0, %v1409
        %v1411 = vrcp.pop %v1401
        %v1412 = vmul.f32 1.0, %v1411
        %v1413 = vrcp.pop %v1402
        %v1414 = vmul.f32 1.0, %v1413
        %v1415 = vrcp.pop %v1403
        %v1416 = vmul.f32 1.0, %v1415
        %v1417 = vrcp.pop %v1404
        %v1418 = vmul.f32 1.0, %v1417
        %v1419 = vrcp.pop %v1405
        %v1420 = vmul.f32 1.0, %v1419
        %v1421 = vrcp.pop %v1406
        %v1422 = vmul.f32 1.0, %v1421
        %v1423 = vmul.f32 %v1367, %v1408
        %v1424 = vmul.f32 %v1368, %v1410
        %v1425 = vmul.f32 %v1369, %v1412
        %v1426 = vmul.f32 %v1370, %v1414
        %v1427 = vmul.f32 %v1371, %v1416
        %v1428 = vmul.f32 %v1372, %v1418
        %v1429 = vmul.f32 %v1373, %v1420
        %v1430 = vmul.f32 %v1374, %v1422
        %1431 = vst [vmem:[%s956 + $0x1] sm:$0xff] %v1423
        %1432 = vst [vmem:[%s956 + $0x11] sm:$0xff] %v1424
        %1433 = vst [vmem:[%s956 + $0x21] sm:$0xff] %v1425
        %1434 = vst [vmem:[%s956 + $0x31] sm:$0xff] %v1426
        %1435 = vst [vmem:[%s956 + $0x41] sm:$0xff] %v1427
        %1436 = vst [vmem:[%s956 + $0x51] sm:$0xff] %v1428
        %1437 = vst [vmem:[%s956 + $0x61] sm:$0xff] %v1429
        %1438 = vst [vmem:[%s956 + $0x71] sm:$0xff] %v1430
        %v1439 = vld [vmem:[%s807] sm:$0xff]
        %v1440 = vmul.f32 %v1439, %v876
        %v1441 = vadd.f32 %v1440, %v890
        %v1442 = vxor.u32 %v1441, 2147483648
        %v1443 = vmul.f32 %v1442, 1.442695
        %v1444 = vpow.pop %v1443
        %v1445 = vadd.f32 %v1444, 1.0
        %v1446 = vrcp.pop %v1445
        %v1447 = vmul.f32 1.0, %v1446
        %v1448 = vmul.f32 %v1441, %v1447
        %v1449 = vsel %vm1267, %v1448, 0.0
        %1450 = vst [vmem:[#allocation2 + $0x1] sm:$0xff] %v1449
        %v1451 = vld [vmem:[#allocation2] sm:$0xff]
        %v1452 = vld [vmem:[#allocation2 + $0x10] sm:$0xff]
        %v1453 = vld [vmem:[#allocation2 + $0x20] sm:$0xff]
        %v1454 = vld [vmem:[#allocation2 + $0x30] sm:$0xff]
        %v1455 = vld [vmem:[#allocation2 + $0x40] sm:$0xff]
        %v1456 = vld [vmem:[#allocation2 + $0x50] sm:$0xff]
        %v1457 = vld [vmem:[#allocation2 + $0x60] sm:$0xff]
        %v1458 = vld [vmem:[#allocation2 + $0x70] sm:$0xff]
        %v1459 = vld [vmem:[%s821] sm:$0x1]
        %v1461 = vlaneseq
        %v1462 = vshrl.u32 %v1461, 7
        %v1463 = vsub.s32 0, %v1462
        %v1464 = vrot.slane %v1459, %v1463
        %v1466 = vmul.f32 %v1451, %v1464
        %v1467 = vmul.f32 %v1452, %v1464
        %v1468 = vmul.f32 %v1453, %v1464
        %v1469 = vmul.f32 %v1454, %v1464
        %v1470 = vmul.f32 %v1455, %v1464
        %v1471 = vmul.f32 %v1456, %v1464
        %v1472 = vmul.f32 %v1457, %v1464
        %v1473 = vmul.f32 %v1458, %v1464
        %v1474 = vld [vmem:[#allocation2 + $0x1] sm:$0xff]
        %v1475 = vld [vmem:[#allocation2 + $0x11] sm:$0xff]
        %v1476 = vld [vmem:[#allocation2 + $0x21] sm:$0xff]
        %v1477 = vld [vmem:[#allocation2 + $0x31] sm:$0xff]
        %v1478 = vld [vmem:[#allocation2 + $0x41] sm:$0xff]
        %v1479 = vld [vmem:[#allocation2 + $0x51] sm:$0xff]
        %v1480 = vld [vmem:[#allocation2 + $0x61] sm:$0xff]
        %v1481 = vld [vmem:[#allocation2 + $0x71] sm:$0xff]
        %s1482 = scalar_lea.vmem %s821, 2
        %v1483 = vld [vmem:[%s1482] sm:$0x1]
        %v1485 = vlaneseq
        %v1486 = vshrl.u32 %v1485, 7
        %v1487 = vsub.s32 0, %v1486
        %v1488 = vrot.slane %v1483, %v1487
        %v1490 = vmul.f32 %v1474, %v1488
        %v1491 = vmul.f32 %v1475, %v1488
        %v1492 = vmul.f32 %v1476, %v1488
        %v1493 = vmul.f32 %v1477, %v1488
        %v1494 = vmul.f32 %v1478, %v1488
        %v1495 = vmul.f32 %v1479, %v1488
        %v1496 = vmul.f32 %v1480, %v1488
        %v1497 = vmul.f32 %v1481, %v1488
        %v1498 = vadd.f32 %v1466, %v1490
        %v1499 = vadd.f32 %v1467, %v1491
        %v1500 = vadd.f32 %v1468, %v1492
        %v1501 = vadd.f32 %v1469, %v1493
        %v1502 = vadd.f32 %v1470, %v1494
        %v1503 = vadd.f32 %v1471, %v1495
        %v1504 = vadd.f32 %v1472, %v1496
        %v1505 = vadd.f32 %v1473, %v1497
        %v1506 = vld [vmem:[%s956] sm:$0xff]
        %v1507 = vld [vmem:[%s956 + $0x10] sm:$0xff]
        %v1508 = vld [vmem:[%s956 + $0x20] sm:$0xff]
        %v1509 = vld [vmem:[%s956 + $0x30] sm:$0xff]
        %v1510 = vld [vmem:[%s956 + $0x40] sm:$0xff]
        %v1511 = vld [vmem:[%s956 + $0x50] sm:$0xff]
        %v1512 = vld [vmem:[%s956 + $0x60] sm:$0xff]
        %v1513 = vld [vmem:[%s956 + $0x70] sm:$0xff]
        %s1514 = scalar_lea.vmem %s821, 6
        %v1515 = vld [vmem:[%s1514] sm:$0x1]
        %v1517 = vlaneseq
        %v1518 = vshrl.u32 %v1517, 7
        %v1519 = vsub.s32 0, %v1518
        %v1520 = vrot.slane %v1515, %v1519
        %v1522 = vmul.f32 %v1506, %v1520
        %v1523 = vmul.f32 %v1507, %v1520
        %v1524 = vmul.f32 %v1508, %v1520
        %v1525 = vmul.f32 %v1509, %v1520
        %v1526 = vmul.f32 %v1510, %v1520
        %v1527 = vmul.f32 %v1511, %v1520
        %v1528 = vmul.f32 %v1512, %v1520
        %v1529 = vmul.f32 %v1513, %v1520
        %v1530 = vadd.f32 %v1498, %v1522
        %v1531 = vadd.f32 %v1499, %v1523
        %v1532 = vadd.f32 %v1500, %v1524
        %v1533 = vadd.f32 %v1501, %v1525
        %v1534 = vadd.f32 %v1502, %v1526
        %v1535 = vadd.f32 %v1503, %v1527
        %v1536 = vadd.f32 %v1504, %v1528
        %v1537 = vadd.f32 %v1505, %v1529
        %v1538 = vld [vmem:[%s956 + $0x1] sm:$0xff]
        %v1539 = vld [vmem:[%s956 + $0x11] sm:$0xff]
        %v1540 = vld [vmem:[%s956 + $0x21] sm:$0xff]
        %v1541 = vld [vmem:[%s956 + $0x31] sm:$0xff]
        %v1542 = vld [vmem:[%s956 + $0x41] sm:$0xff]
        %v1543 = vld [vmem:[%s956 + $0x51] sm:$0xff]
        %v1544 = vld [vmem:[%s956 + $0x61] sm:$0xff]
        %v1545 = vld [vmem:[%s956 + $0x71] sm:$0xff]
        %s1546 = scalar_lea.vmem %s821, 8
        %v1547 = vld [vmem:[%s1546] sm:$0x1]
        %v1549 = vlaneseq
        %v1550 = vshrl.u32 %v1549, 7
        %v1551 = vsub.s32 0, %v1550
        %v1552 = vrot.slane %v1547, %v1551
        %v1554 = vmul.f32 %v1538, %v1552
        %v1555 = vmul.f32 %v1539, %v1552
        %v1556 = vmul.f32 %v1540, %v1552
        %v1557 = vmul.f32 %v1541, %v1552
        %v1558 = vmul.f32 %v1542, %v1552
        %v1559 = vmul.f32 %v1543, %v1552
        %v1560 = vmul.f32 %v1544, %v1552
        %v1561 = vmul.f32 %v1545, %v1552
        %v1562 = vadd.f32 %v1530, %v1554
        %v1563 = vadd.f32 %v1531, %v1555
        %v1564 = vadd.f32 %v1532, %v1556
        %v1565 = vadd.f32 %v1533, %v1557
        %v1566 = vadd.f32 %v1534, %v1558
        %v1567 = vadd.f32 %v1535, %v1559
        %v1568 = vadd.f32 %v1536, %v1560
        %v1569 = vadd.f32 %v1537, %v1561
        %v1570 = vld [vmem:[%s833] sm:$0xff]
        %v1571 = vld [vmem:[%s833 + $0x8] sm:$0xff]
        %v1572 = vld [vmem:[%s833 + $0x10] sm:$0xff]
        %v1573 = vld [vmem:[%s833 + $0x18] sm:$0xff]
        %v1574 = vld [vmem:[%s833 + $0x20] sm:$0xff]
        %v1575 = vld [vmem:[%s833 + $0x28] sm:$0xff]
        %v1576 = vld [vmem:[%s833 + $0x30] sm:$0xff]
        %v1577 = vld [vmem:[%s833 + $0x38] sm:$0xff]
        %v1578 = vadd.f32 %v1570, %v1562
        %v1579 = vadd.f32 %v1571, %v1563
        %v1580 = vadd.f32 %v1572, %v1564
        %v1581 = vadd.f32 %v1573, %v1565
        %v1582 = vadd.f32 %v1574, %v1566
        %v1583 = vadd.f32 %v1575, %v1567
        %v1584 = vadd.f32 %v1576, %v1568
        %v1585 = vadd.f32 %v1577, %v1569
        %1586 = vst [vmem:[%s833] sm:$0xff] %v1578
        %1587 = vst [vmem:[%s833 + $0x8] sm:$0xff] %v1579
        %1588 = vst [vmem:[%s833 + $0x10] sm:$0xff] %v1580
        %1589 = vst [vmem:[%s833 + $0x18] sm:$0xff] %v1581
        %1590 = vst [vmem:[%s833 + $0x20] sm:$0xff] %v1582
        %1591 = vst [vmem:[%s833 + $0x28] sm:$0xff] %v1583
        %1592 = vst [vmem:[%s833 + $0x30] sm:$0xff] %v1584
        %1593 = vst [vmem:[%s833 + $0x38] sm:$0xff] %v1585
        %v1594 = vld [vmem:[%s833] sm:$0xff]
        %v1595 = vld [vmem:[%s833 + $0x8] sm:$0xff]
        %v1596 = vld [vmem:[%s833 + $0x10] sm:$0xff]
        %v1597 = vld [vmem:[%s833 + $0x18] sm:$0xff]
        %v1598 = vld [vmem:[%s833 + $0x20] sm:$0xff]
        %v1599 = vld [vmem:[%s833 + $0x28] sm:$0xff]
        %v1600 = vld [vmem:[%s833 + $0x30] sm:$0xff]
        %v1601 = vld [vmem:[%s833 + $0x38] sm:$0xff]
        %v1602 = vadd.f32 %v1594, %v1595
        %v1603 = vadd.f32 %v1602, %v1596
        %v1604 = vadd.f32 %v1603, %v1597
        %v1605 = vadd.f32 %v1604, %v1598
        %v1606 = vadd.f32 %v1605, %v1599
        %v1607 = vadd.f32 %v1606, %v1600
        %v1608 = vadd.f32 %v1607, %v1601
        %v1609 = vrot.slane %v1608, 4
        %v1610 = vadd.f32 %v1608, %v1609
        %v1611 = vrot.slane %v1610, 2
        %v1612 = vadd.f32 %v1610, %v1611
        %v1613 = vrot.slane %v1612, 1
        %v1614 = vadd.f32 %v1612, %v1613
        %1615 = vst [vmem:[%s843] sm:$0x1] %v1614
        %v1616 = vmul.f32 %v1594, %v1594
        %v1617 = vmul.f32 %v1595, %v1595
        %v1618 = vmul.f32 %v1596, %v1596
        %v1619 = vmul.f32 %v1597, %v1597
        %v1620 = vmul.f32 %v1598, %v1598
        %v1621 = vmul.f32 %v1599, %v1599
        %v1622 = vmul.f32 %v1600, %v1600
        %v1623 = vmul.f32 %v1601, %v1601
        %v1624 = vadd.f32 %v1616, %v1617
        %v1625 = vadd.f32 %v1624, %v1618
        %v1626 = vadd.f32 %v1625, %v1619
        %v1627 = vadd.f32 %v1626, %v1620
        %v1628 = vadd.f32 %v1627, %v1621
        %v1629 = vadd.f32 %v1628, %v1622
        %v1630 = vadd.f32 %v1629, %v1623
        %v1631 = vrot.slane %v1630, 4
        %v1632 = vadd.f32 %v1630, %v1631
        %v1633 = vrot.slane %v1632, 2
        %v1634 = vadd.f32 %v1632, %v1633
        %v1635 = vrot.slane %v1634, 1
        %v1636 = vadd.f32 %v1634, %v1635
        %1637 = vst [vmem:[%s852] sm:$0x1] %v1636
        %s1638 = smul.u32 8, %s27
        %p1639 = scmp.lt.s32.totalorder %s26, 1
        %s1640 = scalar_select %p1639, %s26, 1
        %p1641 = scmp.lt.s32.totalorder %s1638, 7
        %s1642 = scalar_select %p1641, %s1638, 7
        %p1643 = scmp.lt.s32.totalorder %s28, 0
        %s1644 = scalar_select %p1643, %s28, 0
        %s1645 = sadd.s32 %s1644, %s1642
        %s1646 = smul.addr %s1640, 8
        %s1647 = sadd.s32 %s1645, %s1646
        %s1648 = smul.addr %s1647, 8
        %s1649 = scalar_lea.vmem %s7, %s1648
        %p1650 = scmp.lt.s32.totalorder %s26, 1
        %s1651 = scalar_select %p1650, %s26, 1
        %p1652 = scmp.lt.s32.totalorder %s27, 0
        %s1653 = scalar_select %p1652, %s27, 0
        %p1654 = scmp.lt.s32.totalorder %s28, 0
        %s1655 = scalar_select %p1654, %s28, 0
        %s1656 = sadd.s32 %s1655, %s1653
        %s1657 = sadd.s32 %s1656, %s1651
        %s1658 = scalar_lea.vmem %s8, %s1657
        %p1659 = scmp.lt.s32.totalorder %s26, 1
        %s1660 = scalar_select %p1659, %s26, 1
        %p1661 = scmp.lt.s32.totalorder %s27, 0
        %s1662 = scalar_select %p1661, %s27, 0
        %p1663 = scmp.lt.s32.totalorder %s28, 0
        %s1664 = scalar_select %p1663, %s28, 0
        %s1665 = sadd.s32 %s1664, %s1662
        %s1666 = sadd.s32 %s1665, %s1660
        %s1667 = scalar_lea.vmem %s9, %s1666
        // Predicated region
        $region125: #{scdown_forward.3} parent=115 // pred_check
          %p1668 = pneg %p280
        $region126: #{scdown_forward.3} parent=115 // pred_check_branch
          %1670 = sbr.rel (%p1668) target = $region128
        $region127: #{scdown_forward.3} parent=115 // pred_region
          %s1671 = smul.u32 8, %s27
        $region128: #{scdown_forward.3} parent=115 // pred_fallthru
          _
        // Predicated region
        $region129: #{scdown_forward.3} parent=115 // pred_check
          %p1672 = pneg %p310
        $region130: #{scdown_forward.3} parent=115 // pred_check_branch
          %1674 = sbr.rel (%p1672) target = $region132
        $region131: #{scdown_forward.3} parent=115 // pred_region
          _
        $region132: #{scdown_forward.3} parent=115 // pred_fallthru
          _
        // Predicated region
        $region133: #{scdown_forward.3} parent=115 // pred_check
          %p1675 = pneg %p340
        $region134: #{scdown_forward.3} parent=115 // pred_check_branch
          %1677 = sbr.rel (%p1675) target = $region136
        $region135: #{scdown_forward.3} parent=115 // pred_region
          _
        $region136: #{scdown_forward.3} parent=115 // pred_fallthru
          _
      $region116: #{scdown_forward.3} parent=5 // pred_fallthru
        _
      %p1678 = scmp.le.s32.totalorder 2, %s16
      // Predicated region
      $region137: #{scdown_forward.3} parent=5 // pred_check
        %p1679 = pneg %p1678
      $region138: #{scdown_forward.3} parent=5 // pred_check_branch
        %1681 = sbr.rel (%p1679) target = $region140
      $region139: #{scdown_forward.3} parent=5 // pred_region
        %s1682 = ssub.s32 %s16, 2
        // Predicated region
        $region141: #{scdown_forward.3} parent=139 // pred_check
          %p1683 = pneg %p286
        $region142: #{scdown_forward.3} parent=139 // pred_check_branch
          %1685 = sbr.rel (%p1683) target = $region144
        $region143: #{scdown_forward.3} parent=139 // pred_region
          %s1686 = smul.u32 8, %s30
          %p1687 = scmp.lt.s32.totalorder %s29, 1
          %s1688 = scalar_select %p1687, %s29, 1
          %p1689 = scmp.lt.s32.totalorder %s1686, 7
          %s1690 = scalar_select %p1689, %s1686, 7
          %p1691 = scmp.lt.s32.totalorder %s31, 0
          %s1692 = scalar_select %p1691, %s31, 0
          %s1693 = sadd.s32 %s1692, %s1690
          %s1694 = smul.addr %s1688, 8
          %s1695 = sadd.s32 %s1693, %s1694
          %s1696 = smul.addr %s1695, 8
          %s1697 = scalar_lea.vmem %s7, %s1696
        $region144: #{scdown_forward.3} parent=139 // pred_fallthru
          _
        // Predicated region
        $region145: #{scdown_forward.3} parent=139 // pred_check
          %p1698 = pneg %p316
        $region146: #{scdown_forward.3} parent=139 // pred_check_branch
          %1700 = sbr.rel (%p1698) target = $region148
        $region147: #{scdown_forward.3} parent=139 // pred_region
          %p1701 = scmp.lt.s32.totalorder %s29, 1
          %s1702 = scalar_select %p1701, %s29, 1
          %p1703 = scmp.lt.s32.totalorder %s30, 0
          %s1704 = scalar_select %p1703, %s30, 0
          %p1705 = scmp.lt.s32.totalorder %s31, 0
          %s1706 = scalar_select %p1705, %s31, 0
          %s1707 = sadd.s32 %s1706, %s1704
          %s1708 = sadd.s32 %s1707, %s1702
          %s1709 = scalar_lea.vmem %s8, %s1708
        $region148: #{scdown_forward.3} parent=139 // pred_fallthru
          _
        // Predicated region
        $region149: #{scdown_forward.3} parent=139 // pred_check
          %p1710 = pneg %p346
        $region150: #{scdown_forward.3} parent=139 // pred_check_branch
          %1712 = sbr.rel (%p1710) target = $region152
        $region151: #{scdown_forward.3} parent=139 // pred_region
          %p1713 = scmp.lt.s32.totalorder %s29, 1
          %s1714 = scalar_select %p1713, %s29, 1
          %p1715 = scmp.lt.s32.totalorder %s30, 0
          %s1716 = scalar_select %p1715, %s30, 0
          %p1717 = scmp.lt.s32.totalorder %s31, 0
          %s1718 = scalar_select %p1717, %s31, 0
          %s1719 = sadd.s32 %s1718, %s1716
          %s1720 = sadd.s32 %s1719, %s1714
          %s1721 = scalar_lea.vmem %s9, %s1720
        $region152: #{scdown_forward.3} parent=139 // pred_fallthru
          _
      $region140: #{scdown_forward.3} parent=5 // pred_fallthru
        _
    $region6: #{scdown_forward.3} parent=1 // loop_footer
      %s20 = sadd.s32 1, %s16
    $region7: #{scdown_forward.3} parent=1 // loop_footer_branch
      %15 = sbr.rel target = $region3
    $region8: #{scdown_forward.3} parent=1 // loop_exit
      _

</llo_original>
